<compile_context>
chip_gen: v7x
topology: tpu7x:2x2x1
jax: 0.10.0
libtpu: 0.0.40
codegen_flags: <defaults>
</compile_context>

<pallas_src>
import functools
import numpy as np
import jax
import jax.numpy as jnp
from jax.experimental import pallas as pl
from jax.experimental.pallas import tpu as pltpu


def _round_up(x, m):
    return (x + m - 1) // m * m


# ---------------------------------------------------------------------------
# Pallas kernel: tiled matmul + bias + optional LeakyReLU
# ---------------------------------------------------------------------------

def _mm_bias_act_kernel(a_ref, b_ref, bias_ref, o_ref, acc_ref, *,
                        apply_lrelu, slope):
    k = pl.program_id(2)

    @pl.when(k == 0)
    def _():
        acc_ref[...] = jnp.zeros_like(acc_ref)

    # bf16 x bf16 -> f32 accumulate on the MXU.
    acc_ref[...] += jnp.dot(a_ref[...], b_ref[...],
                            preferred_element_type=jnp.float32)

    # Epilogue once per output tile (last K step only): bias + LeakyReLU in f32.
    @pl.when(k == pl.num_programs(2) - 1)
    def _():
        out = acc_ref[...] + bias_ref[...]
        if apply_lrelu:
            out = jnp.where(out >= 0.0, out, slope * out)
        o_ref[...] = out.astype(o_ref.dtype)


def fused_matmul_bias_act(a, b, bias, apply_lrelu, slope):
    """(M,K) @ (K,N) + bias (+ LeakyReLU). Inputs cast to bf16 for the MXU;
    accumulation/epilogue in f32.  M/N/K are zero-padded to tile multiples."""
    M, K = a.shape
    K2, N = b.shape
    assert K == K2 and bias.shape == (N,)

    # Tile sizes: lane dims multiples of 128, sublane dims multiples of 16
    # (bf16 packing).  Small enough to fit comfortably in scoped VMEM on
    # v5e / v6e / v7x with double buffering.
    tm = min(256, _round_up(M, 16))
    tn = min(256, _round_up(N, 128))
    tk = min(512, _round_up(K, 128))
    Mp, Np, Kp = _round_up(M, tm), _round_up(N, tn), _round_up(K, tk)

    a_p = jnp.pad(a, ((0, Mp - M), (0, Kp - K))).astype(jnp.bfloat16)
    b_p = jnp.pad(b, ((0, Kp - K), (0, Np - N))).astype(jnp.bfloat16)
    bias_p = jnp.pad(bias, (0, Np - N)).reshape(1, Np).astype(jnp.float32)

    grid = (Mp // tm, Np // tn, Kp // tk)
    kern = functools.partial(_mm_bias_act_kernel,
                             apply_lrelu=apply_lrelu, slope=slope)

    out = pl.pallas_call(
        kern,
        out_shape=jax.ShapeDtypeStruct((Mp, Np), jnp.float32),
        grid_spec=pltpu.PrefetchScalarGridSpec(
            num_scalar_prefetch=0,
            grid=grid,
            in_specs=[
                pl.BlockSpec((tm, tk), lambda i, j, k: (i, k)),
                pl.BlockSpec((tk, tn), lambda i, j, k: (k, j)),
                pl.BlockSpec((1, tn), lambda i, j, k: (0, j)),  # bias per N-tile
            ],
            out_specs=pl.BlockSpec((tm, tn), lambda i, j, k: (i, j)),
            scratch_shapes=[pltpu.VMEM((tm, tn), jnp.float32)],
        ),
        compiler_params=pltpu.CompilerParams(
            dimension_semantics=("parallel", "parallel", "arbitrary"),
            vmem_limit_bytes=32 * 1024 * 1024,
        ),
        cost_estimate=pl.CostEstimate(
            flops=2 * Mp * Np * Kp,
            transcendentals=0,
            bytes_accessed=(Mp * Kp + Kp * Np) * 2 + Mp * Np * 4 + Np * 4,
        ),
    )(a_p, b_p, bias_p)

    return out[:M, :N]


# ---------------------------------------------------------------------------
# JAX glue: im2col, conv layer, bilinear interpolation
# ---------------------------------------------------------------------------

def im2col(x_nhwc, kh, kw, stride, pad):
    N, H, W, C = x_nhwc.shape
    Ho = (H + 2 * pad - kh) // stride + 1
    Wo = (W + 2 * pad - kw) // stride + 1
    xp = jnp.pad(x_nhwc, ((0, 0), (pad, pad), (pad, pad), (0, 0)))
    cols = []
    for i in range(kh):
        for j in range(kw):
            cols.append(xp[:, i:i + stride * Ho:stride, j:j + stride * Wo:stride, :])
    # (N, Ho, Wo, kh*kw, C); contraction axis ordered (kh, kw, C_in)
    patches = jnp.stack(cols, axis=3)
    return patches.reshape(N * Ho * Wo, kh * kw * C), (N, Ho, Wo)


def conv4x4_s2_p2(x_nhwc, w_oihw, bias, apply_lrelu, slope):
    Cout, Cin, kh, kw = w_oihw.shape
    patches, (N, Ho, Wo) = im2col(x_nhwc, kh, kw, stride=2, pad=2)
    # weight (Cout, Cin, kh, kw) -> (kh, kw, Cin, Cout) -> (kh*kw*Cin, Cout)
    w_mat = jnp.transpose(w_oihw, (2, 3, 1, 0)).reshape(kh * kw * Cin, Cout)
    y = fused_matmul_bias_act(patches, w_mat, bias, apply_lrelu, slope)
    return y.reshape(N, Ho, Wo, Cout)


def _bilinear_matrix(out_size, in_size):
    """PyTorch F.interpolate(mode='bilinear', align_corners=False) as a matrix."""
    M = np.zeros((out_size, in_size), dtype=np.float32)
    scale = in_size / out_size
    for p in range(out_size):
        src = max((p + 0.5) * scale - 0.5, 0.0)
        i0 = min(int(np.floor(src)), in_size - 1)
        i1 = min(i0 + 1, in_size - 1)
        lam = src - i0
        M[p, i0] += 1.0 - lam
        M[p, i1] += lam
    return jnp.asarray(M)


# ---------------------------------------------------------------------------
# Dis forward pass
# ---------------------------------------------------------------------------

def dis_forward(x_nchw, params, negative_slope=0.2):
    N, Cin, H, W = x_nchw.shape
    x = jnp.transpose(x_nchw, (0, 2, 3, 1))  # NCHW -> NHWC

    for idx in range(1, 5):
        w, b = params[f"conv{idx}"]
        x = conv4x4_s2_p2(x, w, b, apply_lrelu=True, slope=negative_slope)
    w, b = params["conv5"]
    x = conv4x4_s2_p2(x, w, b, apply_lrelu=False, slope=negative_slope)

    # Single bilinear resize back to the original spatial size; the remaining
    # 4 same-size interpolations of the reference are identities for
    # align_corners=False.  Tiny contraction -> plain XLA einsum, C stays on
    # the lane dim.
    Nb, H5, W5, C = x.shape
    Wh = _bilinear_matrix(H, H5)   # (H, H5)
    Ww = _bilinear_matrix(W, W5)   # (W, W5)
    x = jnp.einsum('yh,nhwc->nywc', Wh, x)
    x = jnp.einsum('xw,nywc->nyxc', Ww, x)

    return jnp.transpose(x, (0, 3, 1, 2))  # NHWC -> NCHW


def init_params(key, in_channels):
    chans = [in_channels, 64, 128, 256, 512, 2]
    params = {}
    for i in range(5):
        key, k1, k2 = jax.random.split(key, 3)
        cin, cout = chans[i], chans[i + 1]
        fan_in = cin * 4 * 4
        w = jax.random.normal(k1, (cout, cin, 4, 4), jnp.float32) / np.sqrt(fan_in)
        b = 0.01 * jax.random.normal(k2, (cout,), jnp.float32)
        params[f"conv{i + 1}"] = (w, b)
    return params


if __name__ == "__main__":
    key = jax.random.PRNGKey(0)
    key, kx, kp = jax.random.split(key, 3)

    in_channels = 4
    x = jax.random.normal(kx, (2, in_channels, 16, 16), jnp.float32)  # NCHW
    params = init_params(kp, in_channels)

    fwd = jax.jit(dis_forward)
    out = jax.block_until_ready(fwd(x, params))

    assert out.shape == (2, 2, 16, 16), out.shape
    assert out.dtype == jnp.float32
    print("KERNEL_OK")
</pallas_src>

<mosaic_0001>
module attributes {stable_mosaic.version = 11 : i64} {
  func.func @_mm_bias_act_kernel(%arg0: i32, %arg1: i32, %arg2: i32, %arg3: memref<176x128xbf16, #tpu.memory_space<vmem>>, %arg4: memref<128x128xbf16, #tpu.memory_space<vmem>>, %arg5: memref<1x128xf32, #tpu.memory_space<vmem>>, %arg6: memref<176x128xf32, #tpu.memory_space<vmem>>, %arg7: memref<176x128xf32, #tpu.memory_space<vmem>>) attributes {dimension_semantics = [#tpu.dimension_semantics<parallel>, #tpu.dimension_semantics<parallel>, #tpu.dimension_semantics<arbitrary>], iteration_bounds = array<i64: 1, 1, 1>, scalar_prefetch = 0 : i64, scratch_operands = 1 : i64, tpu.core_type = #tpu.core_type<tc>, window_params = [{transform_indices = @transform_0, window_bounds = array<i64: 176, 128>}, {transform_indices = @transform_1, window_bounds = array<i64: 128, 128>}, {transform_indices = @transform_2, window_bounds = array<i64: 1, 128>}, {transform_indices = @transform_3, window_bounds = array<i64: 176, 128>}]} {
    %c0_i32 = arith.constant 0 : i32
    %0 = arith.cmpi eq, %arg2, %c0_i32 : i32
    %1 = arith.extui %0 : i1 to i32
    %c0_i32_0 = arith.constant 0 : i32
    %2 = arith.cmpi ne, %1, %c0_i32_0 : i32
    scf.if %2 {
      %cst_10 = arith.constant 0.000000e+00 : f32
      %12 = vector.broadcast %cst_10 : f32 to vector<176x128xf32>
      %c0_11 = arith.constant 0 : index
      %c0_12 = arith.constant 0 : index
      %13 = vector.load %arg7[%c0_11, %c0_12] : memref<176x128xf32, #tpu.memory_space<vmem>>, vector<176x128xf32>
      tpu.vector_store %arg7[%c0_11, %c0_12], %12 {strides = array<i32>} : memref<176x128xf32, #tpu.memory_space<vmem>>, vector<176x128xf32>,
    } else {
    }
    %c0 = arith.constant 0 : index
    %c0_1 = arith.constant 0 : index
    %3 = vector.load %arg7[%c0, %c0_1] : memref<176x128xf32, #tpu.memory_space<vmem>>, vector<176x128xf32>
    %c0_2 = arith.constant 0 : index
    %c0_3 = arith.constant 0 : index
    %4 = vector.load %arg3[%c0_2, %c0_3] : memref<176x128xbf16, #tpu.memory_space<vmem>>, vector<176x128xbf16>
    %c0_4 = arith.constant 0 : index
    %c0_5 = arith.constant 0 : index
    %5 = vector.load %arg4[%c0_4, %c0_5] : memref<128x128xbf16, #tpu.memory_space<vmem>>, vector<128x128xbf16>
    %cst = arith.constant dense<0.000000e+00> : vector<176x128xf32>
    %6 = tpu.matmul %4, %5, %cst {dimension_numbers = #tpu.dot_dimension_numbers<[1], [0], [0], [1], [0, 0, 1, 1], [], []>} : vector<176x128xbf16>, vector<128x128xbf16>, vector<176x128xf32> -> vector<176x128xf32>
    %7 = arith.addf %3, %6 : vector<176x128xf32>
    %c0_6 = arith.constant 0 : index
    %c0_7 = arith.constant 0 : index
    %8 = vector.load %arg7[%c0_6, %c0_7] : memref<176x128xf32, #tpu.memory_space<vmem>>, vector<176x128xf32>
    tpu.vector_store %arg7[%c0_6, %c0_7], %7 {strides = array<i32>} : memref<176x128xf32, #tpu.memory_space<vmem>>, vector<176x128xf32>,
    %c0_i32_8 = arith.constant 0 : i32
    %9 = arith.cmpi eq, %arg2, %c0_i32_8 : i32
    %10 = arith.extui %9 : i1 to i32
    %c0_i32_9 = arith.constant 0 : i32
    %11 = arith.cmpi ne, %10, %c0_i32_9 : i32
    scf.if %11 {
      %c0_10 = arith.constant 0 : index
      %c0_11 = arith.constant 0 : index
      %12 = vector.load %arg7[%c0_10, %c0_11] : memref<176x128xf32, #tpu.memory_space<vmem>>, vector<176x128xf32>
      %c0_12 = arith.constant 0 : index
      %c0_13 = arith.constant 0 : index
      %13 = vector.load %arg5[%c0_12, %c0_13] : memref<1x128xf32, #tpu.memory_space<vmem>>, vector<1x128xf32>
      %14 = vector.broadcast %13 : vector<1x128xf32> to vector<176x128xf32>
      %15 = arith.addf %12, %14 : vector<176x128xf32>
      %cst_14 = arith.constant 0.000000e+00 : f32
      %16 = vector.broadcast %cst_14 : f32 to vector<176x128xf32>
      %17 = arith.cmpf oge, %15, %16 : vector<176x128xf32>
      %cst_15 = arith.constant 2.000000e-01 : f32
      %18 = vector.broadcast %cst_15 : f32 to vector<176x128xf32>
      %19 = arith.mulf %18, %15 : vector<176x128xf32>
      %20 = arith.select %17, %15, %19 : vector<176x128xi1>, vector<176x128xf32>
      %c0_16 = arith.constant 0 : index
      %c0_17 = arith.constant 0 : index
      %21 = vector.load %arg6[%c0_16, %c0_17] : memref<176x128xf32, #tpu.memory_space<vmem>>, vector<176x128xf32>
      tpu.vector_store %arg6[%c0_16, %c0_17], %20 {strides = array<i32>} : memref<176x128xf32, #tpu.memory_space<vmem>>, vector<176x128xf32>,
    } else {
    }
    return
  }
  func.func @transform_0(%arg0: i32, %arg1: i32, %arg2: i32) -> (i32, i32) {
    %c0_i32 = arith.constant 0 : i32
    return %arg0, %arg2 : i32, i32
  }
  func.func @transform_1(%arg0: i32, %arg1: i32, %arg2: i32) -> (i32, i32) {
    %c0_i32 = arith.constant 0 : i32
    return %arg2, %arg1 : i32, i32
  }
  func.func @transform_2(%arg0: i32, %arg1: i32, %arg2: i32) -> (i32, i32) {
    %c0_i32 = arith.constant 0 : i32
    %c0_i32_0 = arith.constant 0 : i32
    return %c0_i32, %arg1 : i32, i32
  }
  func.func @transform_3(%arg0: i32, %arg1: i32, %arg2: i32) -> (i32, i32) {
    %c0_i32 = arith.constant 0 : i32
    return %arg0, %arg1 : i32, i32
  }
}

module attributes {stable_mosaic.version = 11 : i64} {
  func.func @_mm_bias_act_kernel(%arg0: i32, %arg1: i32, %arg2: i32, %arg3: memref<64x512xbf16, #tpu.memory_space<vmem>>, %arg4: memref<512x128xbf16, #tpu.memory_space<vmem>>, %arg5: memref<1x128xf32, #tpu.memory_space<vmem>>, %arg6: memref<64x128xf32, #tpu.memory_space<vmem>>, %arg7: memref<64x128xf32, #tpu.memory_space<vmem>>) attributes {dimension_semantics = [#tpu.dimension_semantics<parallel>, #tpu.dimension_semantics<parallel>, #tpu.dimension_semantics<arbitrary>], iteration_bounds = array<i64: 1, 1, 2>, scalar_prefetch = 0 : i64, scratch_operands = 1 : i64, tpu.core_type = #tpu.core_type<tc>, window_params = [{transform_indices = @transform_0, window_bounds = array<i64: 64, 512>}, {transform_indices = @transform_1, window_bounds = array<i64: 512, 128>}, {transform_indices = @transform_2, window_bounds = array<i64: 1, 128>}, {transform_indices = @transform_3, window_bounds = array<i64: 64, 128>}]} {
    %c0_i32 = arith.constant 0 : i32
    %0 = arith.cmpi eq, %arg2, %c0_i32 : i32
    %1 = arith.extui %0 : i1 to i32
    %c0_i32_0 = arith.constant 0 : i32
    %2 = arith.cmpi ne, %1, %c0_i32_0 : i32
    scf.if %2 {
      %cst_9 = arith.constant 0.000000e+00 : f32
      %12 = vector.broadcast %cst_9 : f32 to vector<64x128xf32>
      %c0_10 = arith.constant 0 : index
      %c0_11 = arith.constant 0 : index
      %13 = vector.load %arg7[%c0_10, %c0_11] : memref<64x128xf32, #tpu.memory_space<vmem>>, vector<64x128xf32>
      tpu.vector_store %arg7[%c0_10, %c0_11], %12 {strides = array<i32>} : memref<64x128xf32, #tpu.memory_space<vmem>>, vector<64x128xf32>,
    } else {
    }
    %c0 = arith.constant 0 : index
    %c0_1 = arith.constant 0 : index
    %3 = vector.load %arg7[%c0, %c0_1] : memref<64x128xf32, #tpu.memory_space<vmem>>, vector<64x128xf32>
    %c0_2 = arith.constant 0 : index
    %c0_3 = arith.constant 0 : index
    %4 = vector.load %arg3[%c0_2, %c0_3] : memref<64x512xbf16, #tpu.memory_space<vmem>>, vector<64x512xbf16>
    %c0_4 = arith.constant 0 : index
    %c0_5 = arith.constant 0 : index
    %5 = vector.load %arg4[%c0_4, %c0_5] : memref<512x128xbf16, #tpu.memory_space<vmem>>, vector<512x128xbf16>
    %cst = arith.constant dense<0.000000e+00> : vector<64x128xf32>
    %6 = tpu.matmul %4, %5, %cst {dimension_numbers = #tpu.dot_dimension_numbers<[1], [0], [0], [1], [0, 0, 1, 1], [], []>} : vector<64x512xbf16>, vector<512x128xbf16>, vector<64x128xf32> -> vector<64x128xf32>
    %7 = arith.addf %3, %6 : vector<64x128xf32>
    %c0_6 = arith.constant 0 : index
    %c0_7 = arith.constant 0 : index
    %8 = vector.load %arg7[%c0_6, %c0_7] : memref<64x128xf32, #tpu.memory_space<vmem>>, vector<64x128xf32>
    tpu.vector_store %arg7[%c0_6, %c0_7], %7 {strides = array<i32>} : memref<64x128xf32, #tpu.memory_space<vmem>>, vector<64x128xf32>,
    %c1_i32 = arith.constant 1 : i32
    %9 = arith.cmpi eq, %arg2, %c1_i32 : i32
    %10 = arith.extui %9 : i1 to i32
    %c0_i32_8 = arith.constant 0 : i32
    %11 = arith.cmpi ne, %10, %c0_i32_8 : i32
    scf.if %11 {
      %c0_9 = arith.constant 0 : index
      %c0_10 = arith.constant 0 : index
      %12 = vector.load %arg7[%c0_9, %c0_10] : memref<64x128xf32, #tpu.memory_space<vmem>>, vector<64x128xf32>
      %c0_11 = arith.constant 0 : index
      %c0_12 = arith.constant 0 : index
      %13 = vector.load %arg5[%c0_11, %c0_12] : memref<1x128xf32, #tpu.memory_space<vmem>>, vector<1x128xf32>
      %14 = vector.broadcast %13 : vector<1x128xf32> to vector<64x128xf32>
      %15 = arith.addf %12, %14 : vector<64x128xf32>
      %cst_13 = arith.constant 0.000000e+00 : f32
      %16 = vector.broadcast %cst_13 : f32 to vector<64x128xf32>
      %17 = arith.cmpf oge, %15, %16 : vector<64x128xf32>
      %cst_14 = arith.constant 2.000000e-01 : f32
      %18 = vector.broadcast %cst_14 : f32 to vector<64x128xf32>
      %19 = arith.mulf %18, %15 : vector<64x128xf32>
      %20 = arith.select %17, %15, %19 : vector<64x128xi1>, vector<64x128xf32>
      %c0_15 = arith.constant 0 : index
      %c0_16 = arith.constant 0 : index
      %21 = vector.load %arg6[%c0_15, %c0_16] : memref<64x128xf32, #tpu.memory_space<vmem>>, vector<64x128xf32>
      tpu.vector_store %arg6[%c0_15, %c0_16], %20 {strides = array<i32>} : memref<64x128xf32, #tpu.memory_space<vmem>>, vector<64x128xf32>,
    } else {
    }
    return
  }
  func.func @transform_0(%arg0: i32, %arg1: i32, %arg2: i32) -> (i32, i32) {
    %c0_i32 = arith.constant 0 : i32
    return %arg0, %arg2 : i32, i32
  }
  func.func @transform_1(%arg0: i32, %arg1: i32, %arg2: i32) -> (i32, i32) {
    %c0_i32 = arith.constant 0 : i32
    return %arg2, %arg1 : i32, i32
  }
  func.func @transform_2(%arg0: i32, %arg1: i32, %arg2: i32) -> (i32, i32) {
    %c0_i32 = arith.constant 0 : i32
    %c0_i32_0 = arith.constant 0 : i32
    return %c0_i32, %arg1 : i32, i32
  }
  func.func @transform_3(%arg0: i32, %arg1: i32, %arg2: i32) -> (i32, i32) {
    %c0_i32 = arith.constant 0 : i32
    return %arg0, %arg1 : i32, i32
  }
}

module attributes {stable_mosaic.version = 11 : i64} {
  func.func @_mm_bias_act_kernel(%arg0: i32, %arg1: i32, %arg2: i32, %arg3: memref<32x512xbf16, #tpu.memory_space<vmem>>, %arg4: memref<512x256xbf16, #tpu.memory_space<vmem>>, %arg5: memref<1x256xf32, #tpu.memory_space<vmem>>, %arg6: memref<32x256xf32, #tpu.memory_space<vmem>>, %arg7: memref<32x256xf32, #tpu.memory_space<vmem>>) attributes {dimension_semantics = [#tpu.dimension_semantics<parallel>, #tpu.dimension_semantics<parallel>, #tpu.dimension_semantics<arbitrary>], iteration_bounds = array<i64: 1, 1, 4>, scalar_prefetch = 0 : i64, scratch_operands = 1 : i64, tpu.core_type = #tpu.core_type<tc>, window_params = [{transform_indices = @transform_0, window_bounds = array<i64: 32, 512>}, {transform_indices = @transform_1, window_bounds = array<i64: 512, 256>}, {transform_indices = @transform_2, window_bounds = array<i64: 1, 256>}, {transform_indices = @transform_3, window_bounds = array<i64: 32, 256>}]} {
    %c0_i32 = arith.constant 0 : i32
    %0 = arith.cmpi eq, %arg2, %c0_i32 : i32
    %1 = arith.extui %0 : i1 to i32
    %c0_i32_0 = arith.constant 0 : i32
    %2 = arith.cmpi ne, %1, %c0_i32_0 : i32
    scf.if %2 {
      %cst_9 = arith.constant 0.000000e+00 : f32
      %12 = vector.broadcast %cst_9 : f32 to vector<32x256xf32>
      %c0_10 = arith.constant 0 : index
      %c0_11 = arith.constant 0 : index
      %13 = vector.load %arg7[%c0_10, %c0_11] : memref<32x256xf32, #tpu.memory_space<vmem>>, vector<32x256xf32>
      tpu.vector_store %arg7[%c0_10, %c0_11], %12 {strides = array<i32>} : memref<32x256xf32, #tpu.memory_space<vmem>>, vector<32x256xf32>,
    } else {
    }
    %c0 = arith.constant 0 : index
    %c0_1 = arith.constant 0 : index
    %3 = vector.load %arg7[%c0, %c0_1] : memref<32x256xf32, #tpu.memory_space<vmem>>, vector<32x256xf32>
    %c0_2 = arith.constant 0 : index
    %c0_3 = arith.constant 0 : index
    %4 = vector.load %arg3[%c0_2, %c0_3] : memref<32x512xbf16, #tpu.memory_space<vmem>>, vector<32x512xbf16>
    %c0_4 = arith.constant 0 : index
    %c0_5 = arith.constant 0 : index
    %5 = vector.load %arg4[%c0_4, %c0_5] : memref<512x256xbf16, #tpu.memory_space<vmem>>, vector<512x256xbf16>
    %cst = arith.constant dense<0.000000e+00> : vector<32x256xf32>
    %6 = tpu.matmul %4, %5, %cst {dimension_numbers = #tpu.dot_dimension_numbers<[1], [0], [0], [1], [0, 0, 1, 1], [], []>} : vector<32x512xbf16>, vector<512x256xbf16>, vector<32x256xf32> -> vector<32x256xf32>
    %7 = arith.addf %3, %6 : vector<32x256xf32>
    %c0_6 = arith.constant 0 : index
    %c0_7 = arith.constant 0 : index
    %8 = vector.load %arg7[%c0_6, %c0_7] : memref<32x256xf32, #tpu.memory_space<vmem>>, vector<32x256xf32>
    tpu.vector_store %arg7[%c0_6, %c0_7], %7 {strides = array<i32>} : memref<32x256xf32, #tpu.memory_space<vmem>>, vector<32x256xf32>,
    %c3_i32 = arith.constant 3 : i32
    %9 = arith.cmpi eq, %arg2, %c3_i32 : i32
    %10 = arith.extui %9 : i1 to i32
    %c0_i32_8 = arith.constant 0 : i32
    %11 = arith.cmpi ne, %10, %c0_i32_8 : i32
    scf.if %11 {
      %c0_9 = arith.constant 0 : index
      %c0_10 = arith.constant 0 : index
      %12 = vector.load %arg7[%c0_9, %c0_10] : memref<32x256xf32, #tpu.memory_space<vmem>>, vector<32x256xf32>
      %c0_11 = arith.constant 0 : index
      %c0_12 = arith.constant 0 : index
      %13 = vector.load %arg5[%c0_11, %c0_12] : memref<1x256xf32, #tpu.memory_space<vmem>>, vector<1x256xf32>
      %14 = vector.broadcast %13 : vector<1x256xf32> to vector<32x256xf32>
      %15 = arith.addf %12, %14 : vector<32x256xf32>
      %cst_13 = arith.constant 0.000000e+00 : f32
      %16 = vector.broadcast %cst_13 : f32 to vector<32x256xf32>
      %17 = arith.cmpf oge, %15, %16 : vector<32x256xf32>
      %cst_14 = arith.constant 2.000000e-01 : f32
      %18 = vector.broadcast %cst_14 : f32 to vector<32x256xf32>
      %19 = arith.mulf %18, %15 : vector<32x256xf32>
      %20 = arith.select %17, %15, %19 : vector<32x256xi1>, vector<32x256xf32>
      %c0_15 = arith.constant 0 : index
      %c0_16 = arith.constant 0 : index
      %21 = vector.load %arg6[%c0_15, %c0_16] : memref<32x256xf32, #tpu.memory_space<vmem>>, vector<32x256xf32>
      tpu.vector_store %arg6[%c0_15, %c0_16], %20 {strides = array<i32>} : memref<32x256xf32, #tpu.memory_space<vmem>>, vector<32x256xf32>,
    } else {
    }
    return
  }
  func.func @transform_0(%arg0: i32, %arg1: i32, %arg2: i32) -> (i32, i32) {
    %c0_i32 = arith.constant 0 : i32
    return %arg0, %arg2 : i32, i32
  }
  func.func @transform_1(%arg0: i32, %arg1: i32, %arg2: i32) -> (i32, i32) {
    %c0_i32 = arith.constant 0 : i32
    return %arg2, %arg1 : i32, i32
  }
  func.func @transform_2(%arg0: i32, %arg1: i32, %arg2: i32) -> (i32, i32) {
    %c0_i32 = arith.constant 0 : i32
    %c0_i32_0 = arith.constant 0 : i32
    return %c0_i32, %arg1 : i32, i32
  }
  func.func @transform_3(%arg0: i32, %arg1: i32, %arg2: i32) -> (i32, i32) {
    %c0_i32 = arith.constant 0 : i32
    return %arg0, %arg1 : i32, i32
  }
}

module attributes {stable_mosaic.version = 11 : i64} {
  func.func @_mm_bias_act_kernel(%arg0: i32, %arg1: i32, %arg2: i32, %arg3: memref<16x512xbf16, #tpu.memory_space<vmem>>, %arg4: memref<512x256xbf16, #tpu.memory_space<vmem>>, %arg5: memref<1x256xf32, #tpu.memory_space<vmem>>, %arg6: memref<16x256xf32, #tpu.memory_space<vmem>>, %arg7: memref<16x256xf32, #tpu.memory_space<vmem>>) attributes {dimension_semantics = [#tpu.dimension_semantics<parallel>, #tpu.dimension_semantics<parallel>, #tpu.dimension_semantics<arbitrary>], iteration_bounds = array<i64: 1, 2, 8>, scalar_prefetch = 0 : i64, scratch_operands = 1 : i64, tpu.core_type = #tpu.core_type<tc>, window_params = [{transform_indices = @transform_0, window_bounds = array<i64: 16, 512>}, {transform_indices = @transform_1, window_bounds = array<i64: 512, 256>}, {transform_indices = @transform_2, window_bounds = array<i64: 1, 256>}, {transform_indices = @transform_3, window_bounds = array<i64: 16, 256>}]} {
    %c0_i32 = arith.constant 0 : i32
    %0 = arith.cmpi eq, %arg2, %c0_i32 : i32
    %1 = arith.extui %0 : i1 to i32
    %c0_i32_0 = arith.constant 0 : i32
    %2 = arith.cmpi ne, %1, %c0_i32_0 : i32
    scf.if %2 {
      %cst_9 = arith.constant 0.000000e+00 : f32
      %12 = vector.broadcast %cst_9 : f32 to vector<16x256xf32>
      %c0_10 = arith.constant 0 : index
      %c0_11 = arith.constant 0 : index
      %13 = vector.load %arg7[%c0_10, %c0_11] : memref<16x256xf32, #tpu.memory_space<vmem>>, vector<16x256xf32>
      tpu.vector_store %arg7[%c0_10, %c0_11], %12 {strides = array<i32>} : memref<16x256xf32, #tpu.memory_space<vmem>>, vector<16x256xf32>,
    } else {
    }
    %c0 = arith.constant 0 : index
    %c0_1 = arith.constant 0 : index
    %3 = vector.load %arg7[%c0, %c0_1] : memref<16x256xf32, #tpu.memory_space<vmem>>, vector<16x256xf32>
    %c0_2 = arith.constant 0 : index
    %c0_3 = arith.constant 0 : index
    %4 = vector.load %arg3[%c0_2, %c0_3] : memref<16x512xbf16, #tpu.memory_space<vmem>>, vector<16x512xbf16>
    %c0_4 = arith.constant 0 : index
    %c0_5 = arith.constant 0 : index
    %5 = vector.load %arg4[%c0_4, %c0_5] : memref<512x256xbf16, #tpu.memory_space<vmem>>, vector<512x256xbf16>
    %cst = arith.constant dense<0.000000e+00> : vector<16x256xf32>
    %6 = tpu.matmul %4, %5, %cst {dimension_numbers = #tpu.dot_dimension_numbers<[1], [0], [0], [1], [0, 0, 1, 1], [], []>} : vector<16x512xbf16>, vector<512x256xbf16>, vector<16x256xf32> -> vector<16x256xf32>
    %7 = arith.addf %3, %6 : vector<16x256xf32>
    %c0_6 = arith.constant 0 : index
    %c0_7 = arith.constant 0 : index
    %8 = vector.load %arg7[%c0_6, %c0_7] : memref<16x256xf32, #tpu.memory_space<vmem>>, vector<16x256xf32>
    tpu.vector_store %arg7[%c0_6, %c0_7], %7 {strides = array<i32>} : memref<16x256xf32, #tpu.memory_space<vmem>>, vector<16x256xf32>,
    %c7_i32 = arith.constant 7 : i32
    %9 = arith.cmpi eq, %arg2, %c7_i32 : i32
    %10 = arith.extui %9 : i1 to i32
    %c0_i32_8 = arith.constant 0 : i32
    %11 = arith.cmpi ne, %10, %c0_i32_8 : i32
    scf.if %11 {
      %c0_9 = arith.constant 0 : index
      %c0_10 = arith.constant 0 : index
      %12 = vector.load %arg7[%c0_9, %c0_10] : memref<16x256xf32, #tpu.memory_space<vmem>>, vector<16x256xf32>
      %c0_11 = arith.constant 0 : index
      %c0_12 = arith.constant 0 : index
      %13 = vector.load %arg5[%c0_11, %c0_12] : memref<1x256xf32, #tpu.memory_space<vmem>>, vector<1x256xf32>
      %14 = vector.broadcast %13 : vector<1x256xf32> to vector<16x256xf32>
      %15 = arith.addf %12, %14 : vector<16x256xf32>
      %cst_13 = arith.constant 0.000000e+00 : f32
      %16 = vector.broadcast %cst_13 : f32 to vector<16x256xf32>
      %17 = arith.cmpf oge, %15, %16 : vector<16x256xf32>
      %cst_14 = arith.constant 2.000000e-01 : f32
      %18 = vector.broadcast %cst_14 : f32 to vector<16x256xf32>
      %19 = arith.mulf %18, %15 : vector<16x256xf32>
      %20 = arith.select %17, %15, %19 : vector<16x256xi1>, vector<16x256xf32>
      %c0_15 = arith.constant 0 : index
      %c0_16 = arith.constant 0 : index
      %21 = vector.load %arg6[%c0_15, %c0_16] : memref<16x256xf32, #tpu.memory_space<vmem>>, vector<16x256xf32>
      tpu.vector_store %arg6[%c0_15, %c0_16], %20 {strides = array<i32>} : memref<16x256xf32, #tpu.memory_space<vmem>>, vector<16x256xf32>,
    } else {
    }
    return
  }
  func.func @transform_0(%arg0: i32, %arg1: i32, %arg2: i32) -> (i32, i32) {
    %c0_i32 = arith.constant 0 : i32
    return %arg0, %arg2 : i32, i32
  }
  func.func @transform_1(%arg0: i32, %arg1: i32, %arg2: i32) -> (i32, i32) {
    %c0_i32 = arith.constant 0 : i32
    return %arg2, %arg1 : i32, i32
  }
  func.func @transform_2(%arg0: i32, %arg1: i32, %arg2: i32) -> (i32, i32) {
    %c0_i32 = arith.constant 0 : i32
    %c0_i32_0 = arith.constant 0 : i32
    return %c0_i32, %arg1 : i32, i32
  }
  func.func @transform_3(%arg0: i32, %arg1: i32, %arg2: i32) -> (i32, i32) {
    %c0_i32 = arith.constant 0 : i32
    return %arg0, %arg1 : i32, i32
  }
}

module attributes {stable_mosaic.version = 11 : i64} {
  func.func @_mm_bias_act_kernel(%arg0: i32, %arg1: i32, %arg2: i32, %arg3: memref<16x512xbf16, #tpu.memory_space<vmem>>, %arg4: memref<512x128xbf16, #tpu.memory_space<vmem>>, %arg5: memref<1x128xf32, #tpu.memory_space<vmem>>, %arg6: memref<16x128xf32, #tpu.memory_space<vmem>>, %arg7: memref<16x128xf32, #tpu.memory_space<vmem>>) attributes {dimension_semantics = [#tpu.dimension_semantics<parallel>, #tpu.dimension_semantics<parallel>, #tpu.dimension_semantics<arbitrary>], iteration_bounds = array<i64: 1, 1, 16>, scalar_prefetch = 0 : i64, scratch_operands = 1 : i64, tpu.core_type = #tpu.core_type<tc>, window_params = [{transform_indices = @transform_0, window_bounds = array<i64: 16, 512>}, {transform_indices = @transform_1, window_bounds = array<i64: 512, 128>}, {transform_indices = @transform_2, window_bounds = array<i64: 1, 128>}, {transform_indices = @transform_3, window_bounds = array<i64: 16, 128>}]} {
    %c0_i32 = arith.constant 0 : i32
    %0 = arith.cmpi eq, %arg2, %c0_i32 : i32
    %1 = arith.extui %0 : i1 to i32
    %c0_i32_0 = arith.constant 0 : i32
    %2 = arith.cmpi ne, %1, %c0_i32_0 : i32
    scf.if %2 {
      %cst_9 = arith.constant 0.000000e+00 : f32
      %12 = vector.broadcast %cst_9 : f32 to vector<16x128xf32>
      %c0_10 = arith.constant 0 : index
      %c0_11 = arith.constant 0 : index
      %13 = vector.load %arg7[%c0_10, %c0_11] : memref<16x128xf32, #tpu.memory_space<vmem>>, vector<16x128xf32>
      tpu.vector_store %arg7[%c0_10, %c0_11], %12 {strides = array<i32>} : memref<16x128xf32, #tpu.memory_space<vmem>>, vector<16x128xf32>,
    } else {
    }
    %c0 = arith.constant 0 : index
    %c0_1 = arith.constant 0 : index
    %3 = vector.load %arg7[%c0, %c0_1] : memref<16x128xf32, #tpu.memory_space<vmem>>, vector<16x128xf32>
    %c0_2 = arith.constant 0 : index
    %c0_3 = arith.constant 0 : index
    %4 = vector.load %arg3[%c0_2, %c0_3] : memref<16x512xbf16, #tpu.memory_space<vmem>>, vector<16x512xbf16>
    %c0_4 = arith.constant 0 : index
    %c0_5 = arith.constant 0 : index
    %5 = vector.load %arg4[%c0_4, %c0_5] : memref<512x128xbf16, #tpu.memory_space<vmem>>, vector<512x128xbf16>
    %cst = arith.constant dense<0.000000e+00> : vector<16x128xf32>
    %6 = tpu.matmul %4, %5, %cst {dimension_numbers = #tpu.dot_dimension_numbers<[1], [0], [0], [1], [0, 0, 1, 1], [], []>} : vector<16x512xbf16>, vector<512x128xbf16>, vector<16x128xf32> -> vector<16x128xf32>
    %7 = arith.addf %3, %6 : vector<16x128xf32>
    %c0_6 = arith.constant 0 : index
    %c0_7 = arith.constant 0 : index
    %8 = vector.load %arg7[%c0_6, %c0_7] : memref<16x128xf32, #tpu.memory_space<vmem>>, vector<16x128xf32>
    tpu.vector_store %arg7[%c0_6, %c0_7], %7 {strides = array<i32>} : memref<16x128xf32, #tpu.memory_space<vmem>>, vector<16x128xf32>,
    %c15_i32 = arith.constant 15 : i32
    %9 = arith.cmpi eq, %arg2, %c15_i32 : i32
    %10 = arith.extui %9 : i1 to i32
    %c0_i32_8 = arith.constant 0 : i32
    %11 = arith.cmpi ne, %10, %c0_i32_8 : i32
    scf.if %11 {
      %c0_9 = arith.constant 0 : index
      %c0_10 = arith.constant 0 : index
      %12 = vector.load %arg7[%c0_9, %c0_10] : memref<16x128xf32, #tpu.memory_space<vmem>>, vector<16x128xf32>
      %c0_11 = arith.constant 0 : index
      %c0_12 = arith.constant 0 : index
      %13 = vector.load %arg5[%c0_11, %c0_12] : memref<1x128xf32, #tpu.memory_space<vmem>>, vector<1x128xf32>
      %14 = vector.broadcast %13 : vector<1x128xf32> to vector<16x128xf32>
      %15 = arith.addf %12, %14 : vector<16x128xf32>
      %c0_13 = arith.constant 0 : index
      %c0_14 = arith.constant 0 : index
      %16 = vector.load %arg6[%c0_13, %c0_14] : memref<16x128xf32, #tpu.memory_space<vmem>>, vector<16x128xf32>
      tpu.vector_store %arg6[%c0_13, %c0_14], %15 {strides = array<i32>} : memref<16x128xf32, #tpu.memory_space<vmem>>, vector<16x128xf32>,
    } else {
    }
    return
  }
  func.func @transform_0(%arg0: i32, %arg1: i32, %arg2: i32) -> (i32, i32) {
    %c0_i32 = arith.constant 0 : i32
    return %arg0, %arg2 : i32, i32
  }
  func.func @transform_1(%arg0: i32, %arg1: i32, %arg2: i32) -> (i32, i32) {
    %c0_i32 = arith.constant 0 : i32
    return %arg2, %arg1 : i32, i32
  }
  func.func @transform_2(%arg0: i32, %arg1: i32, %arg2: i32) -> (i32, i32) {
    %c0_i32 = arith.constant 0 : i32
    %c0_i32_0 = arith.constant 0 : i32
    return %c0_i32, %arg1 : i32, i32
  }
  func.func @transform_3(%arg0: i32, %arg1: i32, %arg2: i32) -> (i32, i32) {
    %c0_i32 = arith.constant 0 : i32
    return %arg0, %arg1 : i32, i32
  }
}

</mosaic_0001>

<llo_original>
// kernel: dis_forward.5
$region0: #{dis_forward.5}
  #allocation0 [shape = 'u32[]', space=smem, size = 0x4, offset = 0x4, fixed_abs, tag = 'smem constant byte address 0x4 - core index']
  #allocation1 [shape = 'u32[144,128]{1,0:T(1,128)}', space=vmem, size = 0x12000, scoped, tag = 'internal scratch']
  #allocation2 [shape = 'f32[176,128]{1,0:T(8,128)}', space=vmem, size = 0x16000, scoped, tag = 'scratch operand']
  %s0 = inlined_call_operand.vmem [shape: bf16[176,128], index: 0, kind: input, shape index: {}]
  %s1 = inlined_call_operand.vmem [shape: bf16[128,128], index: 1, kind: input, shape index: {}]
  %s2 = inlined_call_operand.vmem [shape: f32[1,128], index: 2, kind: input, shape index: {}]
  %s3 = inlined_call_operand.vmem [shape: f32[176,128], index: 3, kind: output, shape index: {}]
  %s4 = sld [smem:[#allocation0]]
  $region30: #{dis_forward.5} parent=0
    _
  %s6 = ssub.s32 1, %s4
  %s7 = scalar_select 0, %s6, %s4
  // Predicated region
  $region2: #{dis_forward.5} parent=0 // pred_check
    _
  $region3: #{dis_forward.5} parent=0 // pred_check_branch
    %9 = sbr.rel (0) target = $region5
  $region4: #{dis_forward.5} parent=0 // pred_region
    _
  $region5: #{dis_forward.5} parent=0 // pred_fallthru
    _
  // Predicated region
  $region6: #{dis_forward.5} parent=0 // pred_check
    _
  $region7: #{dis_forward.5} parent=0 // pred_check_branch
    %11 = sbr.rel (0) target = $region9
  $region8: #{dis_forward.5} parent=0 // pred_region
    _
  $region9: #{dis_forward.5} parent=0 // pred_fallthru
    _
  // Predicated region
  $region10: #{dis_forward.5} parent=0 // pred_check
    _
  $region11: #{dis_forward.5} parent=0 // pred_check_branch
    %13 = sbr.rel (0) target = $region13
  $region12: #{dis_forward.5} parent=0 // pred_region
    _
  $region13: #{dis_forward.5} parent=0 // pred_fallthru
    _
  %p15 = scmp.eq.s32.totalorder 0, 0
  // Predicated region
  $region14: #{dis_forward.5} parent=0 // pred_check
    %p16 = pneg %p15
  $region15: #{dis_forward.5} parent=0 // pred_check_branch
    %18 = sbr.rel (%p16) target = $region17
  $region16: #{dis_forward.5} parent=0 // pred_region
    %19 = vst [vmem:[#allocation2] sm:$0xff] 0.0
    %20 = vst [vmem:[#allocation2 + $0x8] sm:$0xff] 0.0
    %21 = vst [vmem:[#allocation2 + $0x10] sm:$0xff] 0.0
    %22 = vst [vmem:[#allocation2 + $0x18] sm:$0xff] 0.0
    %23 = vst [vmem:[#allocation2 + $0x20] sm:$0xff] 0.0
    %24 = vst [vmem:[#allocation2 + $0x28] sm:$0xff] 0.0
    %25 = vst [vmem:[#allocation2 + $0x30] sm:$0xff] 0.0
    %26 = vst [vmem:[#allocation2 + $0x38] sm:$0xff] 0.0
    %27 = vst [vmem:[#allocation2 + $0x40] sm:$0xff] 0.0
    %28 = vst [vmem:[#allocation2 + $0x48] sm:$0xff] 0.0
    %29 = vst [vmem:[#allocation2 + $0x50] sm:$0xff] 0.0
    %30 = vst [vmem:[#allocation2 + $0x58] sm:$0xff] 0.0
    %31 = vst [vmem:[#allocation2 + $0x60] sm:$0xff] 0.0
    %32 = vst [vmem:[#allocation2 + $0x68] sm:$0xff] 0.0
    %33 = vst [vmem:[#allocation2 + $0x70] sm:$0xff] 0.0
    %34 = vst [vmem:[#allocation2 + $0x78] sm:$0xff] 0.0
    %35 = vst [vmem:[#allocation2 + $0x80] sm:$0xff] 0.0
    %36 = vst [vmem:[#allocation2 + $0x88] sm:$0xff] 0.0
    %37 = vst [vmem:[#allocation2 + $0x90] sm:$0xff] 0.0
    %38 = vst [vmem:[#allocation2 + $0x98] sm:$0xff] 0.0
    %39 = vst [vmem:[#allocation2 + $0xa0] sm:$0xff] 0.0
    %40 = vst [vmem:[#allocation2 + $0xa8] sm:$0xff] 0.0
  $region17: #{dis_forward.5} parent=0 // pred_fallthru
    _
  %v41 = vld [vmem:[#allocation2] sm:$0xff]
  %v42 = vld [vmem:[#allocation2 + $0x8] sm:$0xff]
  %v43 = vld [vmem:[#allocation2 + $0x10] sm:$0xff]
  %v44 = vld [vmem:[#allocation2 + $0x18] sm:$0xff]
  %v45 = vld [vmem:[#allocation2 + $0x20] sm:$0xff]
  %v46 = vld [vmem:[#allocation2 + $0x28] sm:$0xff]
  %v47 = vld [vmem:[#allocation2 + $0x30] sm:$0xff]
  %v48 = vld [vmem:[#allocation2 + $0x38] sm:$0xff]
  %v49 = vld [vmem:[#allocation2 + $0x40] sm:$0xff]
  %v50 = vld [vmem:[#allocation2 + $0x48] sm:$0xff]
  %v51 = vld [vmem:[#allocation2 + $0x50] sm:$0xff]
  %v52 = vld [vmem:[#allocation2 + $0x58] sm:$0xff]
  %v53 = vld [vmem:[#allocation2 + $0x60] sm:$0xff]
  %v54 = vld [vmem:[#allocation2 + $0x68] sm:$0xff]
  %v55 = vld [vmem:[#allocation2 + $0x70] sm:$0xff]
  %v56 = vld [vmem:[#allocation2 + $0x78] sm:$0xff]
  %v57 = vld [vmem:[#allocation2 + $0x80] sm:$0xff]
  %v58 = vld [vmem:[#allocation2 + $0x88] sm:$0xff]
  %v59 = vld [vmem:[#allocation2 + $0x90] sm:$0xff]
  %v60 = vld [vmem:[#allocation2 + $0x98] sm:$0xff]
  %v61 = vld [vmem:[#allocation2 + $0xa0] sm:$0xff]
  %v62 = vld [vmem:[#allocation2 + $0xa8] sm:$0xff]
  %v63 = vld [vmem:[%s0] sm:$0xf]
  %v64 = vld [vmem:[%s0 + $0x4] sm:$0xf]
  %v65 = vld [vmem:[%s0 + $0x8] sm:$0xf]
  %v66 = vld [vmem:[%s0 + $0xc] sm:$0xf]
  %v67 = vld [vmem:[%s0 + $0x10] sm:$0xf]
  %v68 = vld [vmem:[%s0 + $0x14] sm:$0xf]
  %v69 = vld [vmem:[%s0 + $0x18] sm:$0xf]
  %v70 = vld [vmem:[%s0 + $0x1c] sm:$0xf]
  %v71 = vld [vmem:[%s0 + $0x20] sm:$0xf]
  %v72 = vld [vmem:[%s0 + $0x24] sm:$0xf]
  %v73 = vld [vmem:[%s0 + $0x28] sm:$0xf]
  %v74 = vld [vmem:[%s0 + $0x2c] sm:$0xf]
  %v75 = vld [vmem:[%s0 + $0x30] sm:$0xf]
  %v76 = vld [vmem:[%s0 + $0x34] sm:$0xf]
  %v77 = vld [vmem:[%s0 + $0x38] sm:$0xf]
  %v78 = vld [vmem:[%s0 + $0x3c] sm:$0xf]
  %v79 = vld [vmem:[%s0 + $0x40] sm:$0xf]
  %v80 = vld [vmem:[%s0 + $0x44] sm:$0xf]
  %v81 = vld [vmem:[%s0 + $0x48] sm:$0xf]
  %v82 = vld [vmem:[%s0 + $0x4c] sm:$0xf]
  %v83 = vld [vmem:[%s0 + $0x50] sm:$0xf]
  %v84 = vld [vmem:[%s0 + $0x54] sm:$0xf]
  %v85 = vld [vmem:[%s1] sm:$0xf]
  %v86 = vld [vmem:[%s1 + $0x4] sm:$0xf]
  %v87 = vld [vmem:[%s1 + $0x8] sm:$0xf]
  %v88 = vld [vmem:[%s1 + $0xc] sm:$0xf]
  %v89 = vld [vmem:[%s1 + $0x10] sm:$0xf]
  %v90 = vld [vmem:[%s1 + $0x14] sm:$0xf]
  %v91 = vld [vmem:[%s1 + $0x18] sm:$0xf]
  %v92 = vld [vmem:[%s1 + $0x1c] sm:$0xf]
  %v93 = vld [vmem:[%s1 + $0x20] sm:$0xf]
  %v94 = vld [vmem:[%s1 + $0x24] sm:$0xf]
  %v95 = vld [vmem:[%s1 + $0x28] sm:$0xf]
  %v96 = vld [vmem:[%s1 + $0x2c] sm:$0xf]
  %v97 = vld [vmem:[%s1 + $0x30] sm:$0xf]
  %v98 = vld [vmem:[%s1 + $0x34] sm:$0xf]
  %v99 = vld [vmem:[%s1 + $0x38] sm:$0xf]
  %v100 = vld [vmem:[%s1 + $0x3c] sm:$0xf]
  %v123 = vunpack.c.l.b16 %v63
  %v124 = vunpack.c.l.b16 %v64
  %v125 = vunpack.c.l.b16 %v65
  %v126 = vunpack.c.l.b16 %v66
  %v127 = vunpack.c.l.b16 %v67
  %v128 = vunpack.c.l.b16 %v68
  %v129 = vunpack.c.l.b16 %v69
  %v130 = vunpack.c.l.b16 %v70
  %v131 = vunpack.c.l.b16 %v71
  %v132 = vunpack.c.l.b16 %v72
  %v133 = vunpack.c.l.b16 %v73
  %v134 = vunpack.c.l.b16 %v74
  %v135 = vunpack.c.l.b16 %v75
  %v136 = vunpack.c.l.b16 %v76
  %v137 = vunpack.c.l.b16 %v77
  %v138 = vunpack.c.l.b16 %v78
  %v139 = vunpack.c.l.b16 %v79
  %v140 = vunpack.c.l.b16 %v80
  %v141 = vunpack.c.l.b16 %v81
  %v142 = vunpack.c.l.b16 %v82
  %v143 = vunpack.c.l.b16 %v83
  %v144 = vunpack.c.l.b16 %v84
  %v145 = vpack.c.b16 %v124, %v123
  %v146 = vpack.c.b16 %v126, %v125
  %v147 = vpack.c.b16 %v128, %v127
  %v148 = vpack.c.b16 %v130, %v129
  %v149 = vpack.c.b16 %v132, %v131
  %v150 = vpack.c.b16 %v134, %v133
  %v151 = vpack.c.b16 %v136, %v135
  %v152 = vpack.c.b16 %v138, %v137
  %v153 = vpack.c.b16 %v140, %v139
  %v154 = vpack.c.b16 %v142, %v141
  %v155 = vpack.c.b16 %v144, %v143
  %v183 = vunpack.c.l.b16 %v85
  %v184 = vunpack.c.l.b16 %v86
  %v185 = vunpack.c.l.b16 %v87
  %v186 = vunpack.c.l.b16 %v88
  %v187 = vunpack.c.l.b16 %v89
  %v188 = vunpack.c.l.b16 %v90
  %v189 = vunpack.c.l.b16 %v91
  %v190 = vunpack.c.l.b16 %v92
  %v191 = vunpack.c.l.b16 %v93
  %v192 = vunpack.c.l.b16 %v94
  %v193 = vunpack.c.l.b16 %v95
  %v194 = vunpack.c.l.b16 %v96
  %v195 = vunpack.c.l.b16 %v97
  %v196 = vunpack.c.l.b16 %v98
  %v197 = vunpack.c.l.b16 %v99
  %v198 = vunpack.c.l.b16 %v100
  %v199 = vpack.c.b16 %v184, %v183
  %v200 = vpack.c.b16 %v186, %v185
  %v201 = vpack.c.b16 %v188, %v187
  %v202 = vpack.c.b16 %v190, %v189
  %v203 = vpack.c.b16 %v192, %v191
  %v204 = vpack.c.b16 %v194, %v193
  %v205 = vpack.c.b16 %v196, %v195
  %v206 = vpack.c.b16 %v198, %v197
  %215 = vmatprep.subr.bf16.mxu0 0
  %216 = vmatpush1.bf16.msra.mxu0 %v199
  %217 = vmatprep.subr.bf16.mxu0 0
  %218 = vmatpush1.bf16.msra.mxu0 %v200
  %219 = vmatprep.subr.bf16.mxu0 0
  %220 = vmatpush1.bf16.msra.mxu0 %v201
  %221 = vmatprep.subr.bf16.mxu0 0
  %222 = vmatpush1.bf16.msra.mxu0 %v202
  %223 = vmatprep.subr.bf16.mxu0 0
  %224 = vmatpush1.bf16.msra.mxu0 %v203
  %225 = vmatprep.subr.bf16.mxu0 0
  %226 = vmatpush1.bf16.msra.mxu0 %v204
  %227 = vmatprep.subr.bf16.mxu0 0
  %228 = vmatpush1.bf16.msra.mxu0 %v205
  %229 = vmatprep.subr.bf16.mxu0 0
  %230 = vmatpush1.bf16.msra.mxu0 %v206
  %231 = vmatprep.subr.bf16.mxu0 0
  %232 = vmatpush1.bf16.msra.mxu0 0
  %233 = vmatprep.subr.bf16.mxu0 0
  %234 = vmatpush1.bf16.msra.mxu0 0
  %235 = vmatprep.subr.bf16.mxu0 0
  %236 = vmatpush1.bf16.msra.mxu0 0
  %237 = vmatprep.subr.bf16.mxu0 0
  %238 = vmatpush1.bf16.msra.mxu0 0
  %239 = vmatprep.subr.bf16.mxu0 0
  %240 = vmatpush1.bf16.msra.mxu0 0
  %241 = vmatprep.subr.bf16.mxu0 0
  %242 = vmatpush1.bf16.msra.mxu0 0
  %243 = vmatprep.subr.bf16.mxu0 0
  %244 = vmatpush1.bf16.msra.mxu0 0
  %245 = vmatprep.subr.bf16.mxu0 0
  %246 = vmatpush1.bf16.msra.mxu0 0
  %247 = vmatprep.mubr.bf16.mxu0 0
  %248 = vmatmul.mubr.bf16.gmra.mrb[0].mxu0 %v145
  %v249 = vpop.f32.mrb[0].mxu0
  %v250 = vadd.f32 0.0, %v249
  %v251 = vpop.f32.mrb[0].mxu0
  %v252 = vpop.f32.mrb[0].mxu0
  %v253 = vadd.f32 0.0, %v252
  %v254 = vpop.f32.mrb[0].mxu0
  %255 = vmatprep.mubr.bf16.mxu0 0
  %256 = vmatmul.mubr.bf16.gmra.mrb[0].mxu0 %v146
  %v257 = vpop.f32.mrb[0].mxu0
  %v258 = vadd.f32 0.0, %v257
  %v259 = vpop.f32.mrb[0].mxu0
  %v260 = vpop.f32.mrb[0].mxu0
  %v261 = vadd.f32 0.0, %v260
  %v262 = vpop.f32.mrb[0].mxu0
  %263 = vmatprep.mubr.bf16.mxu0 0
  %264 = vmatmul.mubr.bf16.gmra.mrb[0].mxu0 %v147
  %v265 = vpop.f32.mrb[0].mxu0
  %v266 = vadd.f32 0.0, %v265
  %v267 = vpop.f32.mrb[0].mxu0
  %v268 = vpop.f32.mrb[0].mxu0
  %v269 = vadd.f32 0.0, %v268
  %v270 = vpop.f32.mrb[0].mxu0
  %271 = vmatprep.mubr.bf16.mxu0 0
  %272 = vmatmul.mubr.bf16.gmra.mrb[0].mxu0 %v148
  %v273 = vpop.f32.mrb[0].mxu0
  %v274 = vadd.f32 0.0, %v273
  %v275 = vpop.f32.mrb[0].mxu0
  %v276 = vpop.f32.mrb[0].mxu0
  %v277 = vadd.f32 0.0, %v276
  %v278 = vpop.f32.mrb[0].mxu0
  %279 = vmatprep.mubr.bf16.mxu0 0
  %280 = vmatmul.mubr.bf16.gmra.mrb[0].mxu0 %v149
  %v281 = vpop.f32.mrb[0].mxu0
  %v282 = vadd.f32 0.0, %v281
  %v283 = vpop.f32.mrb[0].mxu0
  %v284 = vpop.f32.mrb[0].mxu0
  %v285 = vadd.f32 0.0, %v284
  %v286 = vpop.f32.mrb[0].mxu0
  %287 = vmatprep.mubr.bf16.mxu0 0
  %288 = vmatmul.mubr.bf16.gmra.mrb[0].mxu0 %v150
  %v289 = vpop.f32.mrb[0].mxu0
  %v290 = vadd.f32 0.0, %v289
  %v291 = vpop.f32.mrb[0].mxu0
  %v292 = vpop.f32.mrb[0].mxu0
  %v293 = vadd.f32 0.0, %v292
  %v294 = vpop.f32.mrb[0].mxu0
  %295 = vmatprep.mubr.bf16.mxu0 0
  %296 = vmatmul.mubr.bf16.gmra.mrb[0].mxu0 %v151
  %v297 = vpop.f32.mrb[0].mxu0
  %v298 = vadd.f32 0.0, %v297
  %v299 = vpop.f32.mrb[0].mxu0
  %v300 = vpop.f32.mrb[0].mxu0
  %v301 = vadd.f32 0.0, %v300
  %v302 = vpop.f32.mrb[0].mxu0
  %303 = vmatprep.mubr.bf16.mxu0 0
  %304 = vmatmul.mubr.bf16.gmra.mrb[0].mxu0 %v152
  %v305 = vpop.f32.mrb[0].mxu0
  %v306 = vadd.f32 0.0, %v305
  %v307 = vpop.f32.mrb[0].mxu0
  %v308 = vpop.f32.mrb[0].mxu0
  %v309 = vadd.f32 0.0, %v308
  %v310 = vpop.f32.mrb[0].mxu0
  %311 = vmatprep.mubr.bf16.mxu0 0
  %312 = vmatmul.mubr.bf16.gmra.mrb[0].mxu0 %v153
  %v313 = vpop.f32.mrb[0].mxu0
  %v314 = vadd.f32 0.0, %v313
  %v315 = vpop.f32.mrb[0].mxu0
  %v316 = vpop.f32.mrb[0].mxu0
  %v317 = vadd.f32 0.0, %v316
  %v318 = vpop.f32.mrb[0].mxu0
  %319 = vmatprep.mubr.bf16.mxu0 0
  %320 = vmatmul.mubr.bf16.gmra.mrb[0].mxu0 %v154
  %v321 = vpop.f32.mrb[0].mxu0
  %v322 = vadd.f32 0.0, %v321
  %v323 = vpop.f32.mrb[0].mxu0
  %v324 = vpop.f32.mrb[0].mxu0
  %v325 = vadd.f32 0.0, %v324
  %v326 = vpop.f32.mrb[0].mxu0
  %327 = vmatprep.mubr.bf16.mxu0 0
  %328 = vmatmul.mubr.bf16.gmra.mrb[0].mxu0 %v155
  %v329 = vpop.f32.mrb[0].mxu0
  %v330 = vadd.f32 0.0, %v329
  %v331 = vpop.f32.mrb[0].mxu0
  %v332 = vpop.f32.mrb[0].mxu0
  %v333 = vadd.f32 0.0, %v332
  %v334 = vpop.f32.mrb[0].mxu0
  %335 = vdwg.mxu0
  %v336 = vadd.f32 %v41, %v250
  %v337 = vadd.f32 %v42, %v253
  %v338 = vadd.f32 %v43, %v258
  %v339 = vadd.f32 %v44, %v261
  %v340 = vadd.f32 %v45, %v266
  %v341 = vadd.f32 %v46, %v269
  %v342 = vadd.f32 %v47, %v274
  %v343 = vadd.f32 %v48, %v277
  %v344 = vadd.f32 %v49, %v282
  %v345 = vadd.f32 %v50, %v285
  %v346 = vadd.f32 %v51, %v290
  %v347 = vadd.f32 %v52, %v293
  %v348 = vadd.f32 %v53, %v298
  %v349 = vadd.f32 %v54, %v301
  %v350 = vadd.f32 %v55, %v306
  %v351 = vadd.f32 %v56, %v309
  %v352 = vadd.f32 %v57, %v314
  %v353 = vadd.f32 %v58, %v317
  %v354 = vadd.f32 %v59, %v322
  %v355 = vadd.f32 %v60, %v325
  %v356 = vadd.f32 %v61, %v330
  %v357 = vadd.f32 %v62, %v333
  %358 = vst [vmem:[#allocation2] sm:$0xff] %v336
  %359 = vst [vmem:[#allocation2 + $0x8] sm:$0xff] %v337
  %360 = vst [vmem:[#allocation2 + $0x10] sm:$0xff] %v338
  %361 = vst [vmem:[#allocation2 + $0x18] sm:$0xff] %v339
  %362 = vst [vmem:[#allocation2 + $0x20] sm:$0xff] %v340
  %363 = vst [vmem:[#allocation2 + $0x28] sm:$0xff] %v341
  %364 = vst [vmem:[#allocation2 + $0x30] sm:$0xff] %v342
  %365 = vst [vmem:[#allocation2 + $0x38] sm:$0xff] %v343
  %366 = vst [vmem:[#allocation2 + $0x40] sm:$0xff] %v344
  %367 = vst [vmem:[#allocation2 + $0x48] sm:$0xff] %v345
  %368 = vst [vmem:[#allocation2 + $0x50] sm:$0xff] %v346
  %369 = vst [vmem:[#allocation2 + $0x58] sm:$0xff] %v347
  %370 = vst [vmem:[#allocation2 + $0x60] sm:$0xff] %v348
  %371 = vst [vmem:[#allocation2 + $0x68] sm:$0xff] %v349
  %372 = vst [vmem:[#allocation2 + $0x70] sm:$0xff] %v350
  %373 = vst [vmem:[#allocation2 + $0x78] sm:$0xff] %v351
  %374 = vst [vmem:[#allocation2 + $0x80] sm:$0xff] %v352
  %375 = vst [vmem:[#allocation2 + $0x88] sm:$0xff] %v353
  %376 = vst [vmem:[#allocation2 + $0x90] sm:$0xff] %v354
  %377 = vst [vmem:[#allocation2 + $0x98] sm:$0xff] %v355
  %378 = vst [vmem:[#allocation2 + $0xa0] sm:$0xff] %v356
  %379 = vst [vmem:[#allocation2 + $0xa8] sm:$0xff] %v357
  // Predicated region
  $region18: #{dis_forward.5} parent=0 // pred_check
    %p380 = pneg %p15
  $region19: #{dis_forward.5} parent=0 // pred_check_branch
    %382 = sbr.rel (%p380) target = $region21
  $region20: #{dis_forward.5} parent=0 // pred_region
    %v383 = vld [vmem:[#allocation2] sm:$0xff]
    %v384 = vld [vmem:[#allocation2 + $0x8] sm:$0xff]
    %v385 = vld [vmem:[#allocation2 + $0x10] sm:$0xff]
    %v386 = vld [vmem:[#allocation2 + $0x18] sm:$0xff]
    %v387 = vld [vmem:[#allocation2 + $0x20] sm:$0xff]
    %v388 = vld [vmem:[#allocation2 + $0x28] sm:$0xff]
    %v389 = vld [vmem:[#allocation2 + $0x30] sm:$0xff]
    %v390 = vld [vmem:[#allocation2 + $0x38] sm:$0xff]
    %v391 = vld [vmem:[#allocation2 + $0x40] sm:$0xff]
    %v392 = vld [vmem:[#allocation2 + $0x48] sm:$0xff]
    %v393 = vld [vmem:[#allocation2 + $0x50] sm:$0xff]
    %v394 = vld [vmem:[#allocation2 + $0x58] sm:$0xff]
    %v395 = vld [vmem:[#allocation2 + $0x60] sm:$0xff]
    %v396 = vld [vmem:[#allocation2 + $0x68] sm:$0xff]
    %v397 = vld [vmem:[#allocation2 + $0x70] sm:$0xff]
    %v398 = vld [vmem:[#allocation2 + $0x78] sm:$0xff]
    %v399 = vld [vmem:[#allocation2 + $0x80] sm:$0xff]
    %v400 = vld [vmem:[#allocation2 + $0x88] sm:$0xff]
    %v401 = vld [vmem:[#allocation2 + $0x90] sm:$0xff]
    %v402 = vld [vmem:[#allocation2 + $0x98] sm:$0xff]
    %v403 = vld [vmem:[#allocation2 + $0xa0] sm:$0xff]
    %v404 = vld [vmem:[#allocation2 + $0xa8] sm:$0xff]
    %v405 = vld [vmem:[%s2] sm:$0x1]
    %v407 = vlaneseq
    %v408 = vshrl.u32 %v407, 7
    %v409 = vsub.s32 0, %v408
    %v410 = vrot.slane %v405, %v409
    %v412 = vadd.f32 %v383, %v410
    %v413 = vadd.f32 %v384, %v410
    %v414 = vadd.f32 %v385, %v410
    %v415 = vadd.f32 %v386, %v410
    %v416 = vadd.f32 %v387, %v410
    %v417 = vadd.f32 %v388, %v410
    %v418 = vadd.f32 %v389, %v410
    %v419 = vadd.f32 %v390, %v410
    %v420 = vadd.f32 %v391, %v410
    %v421 = vadd.f32 %v392, %v410
    %v422 = vadd.f32 %v393, %v410
    %v423 = vadd.f32 %v394, %v410
    %v424 = vadd.f32 %v395, %v410
    %v425 = vadd.f32 %v396, %v410
    %v426 = vadd.f32 %v397, %v410
    %v427 = vadd.f32 %v398, %v410
    %v428 = vadd.f32 %v399, %v410
    %v429 = vadd.f32 %v400, %v410
    %v430 = vadd.f32 %v401, %v410
    %v431 = vadd.f32 %v402, %v410
    %v432 = vadd.f32 %v403, %v410
    %v433 = vadd.f32 %v404, %v410
    %vm434 = vcmp.ge.f32.partialorder %v412, 0.0
    %vm435 = vcmp.ge.f32.partialorder %v413, 0.0
    %vm436 = vcmp.ge.f32.partialorder %v414, 0.0
    %vm437 = vcmp.ge.f32.partialorder %v415, 0.0
    %vm438 = vcmp.ge.f32.partialorder %v416, 0.0
    %vm439 = vcmp.ge.f32.partialorder %v417, 0.0
    %vm440 = vcmp.ge.f32.partialorder %v418, 0.0
    %vm441 = vcmp.ge.f32.partialorder %v419, 0.0
    %vm442 = vcmp.ge.f32.partialorder %v420, 0.0
    %vm443 = vcmp.ge.f32.partialorder %v421, 0.0
    %vm444 = vcmp.ge.f32.partialorder %v422, 0.0
    %vm445 = vcmp.ge.f32.partialorder %v423, 0.0
    %vm446 = vcmp.ge.f32.partialorder %v424, 0.0
    %vm447 = vcmp.ge.f32.partialorder %v425, 0.0
    %vm448 = vcmp.ge.f32.partialorder %v426, 0.0
    %vm449 = vcmp.ge.f32.partialorder %v427, 0.0
    %vm450 = vcmp.ge.f32.partialorder %v428, 0.0
    %vm451 = vcmp.ge.f32.partialorder %v429, 0.0
    %vm452 = vcmp.ge.f32.partialorder %v430, 0.0
    %vm453 = vcmp.ge.f32.partialorder %v431, 0.0
    %vm454 = vcmp.ge.f32.partialorder %v432, 0.0
    %vm455 = vcmp.ge.f32.partialorder %v433, 0.0
    %v456 = vmul.f32 %v412, 0.2
    %v457 = vmul.f32 %v413, 0.2
    %v458 = vmul.f32 %v414, 0.2
    %v459 = vmul.f32 %v415, 0.2
    %v460 = vmul.f32 %v416, 0.2
    %v461 = vmul.f32 %v417, 0.2
    %v462 = vmul.f32 %v418, 0.2
    %v463 = vmul.f32 %v419, 0.2
    %v464 = vmul.f32 %v420, 0.2
    %v465 = vmul.f32 %v421, 0.2
    %v466 = vmul.f32 %v422, 0.2
    %v467 = vmul.f32 %v423, 0.2
    %v468 = vmul.f32 %v424, 0.2
    %v469 = vmul.f32 %v425, 0.2
    %v470 = vmul.f32 %v426, 0.2
    %v471 = vmul.f32 %v427, 0.2
    %v472 = vmul.f32 %v428, 0.2
    %v473 = vmul.f32 %v429, 0.2
    %v474 = vmul.f32 %v430, 0.2
    %v475 = vmul.f32 %v431, 0.2
    %v476 = vmul.f32 %v432, 0.2
    %v477 = vmul.f32 %v433, 0.2
    %v478 = vsel %vm434, %v412, %v456
    %v479 = vsel %vm435, %v413, %v457
    %v480 = vsel %vm436, %v414, %v458
    %v481 = vsel %vm437, %v415, %v459
    %v482 = vsel %vm438, %v416, %v460
    %v483 = vsel %vm439, %v417, %v461
    %v484 = vsel %vm440, %v418, %v462
    %v485 = vsel %vm441, %v419, %v463
    %v486 = vsel %vm442, %v420, %v464
    %v487 = vsel %vm443, %v421, %v465
    %v488 = vsel %vm444, %v422, %v466
    %v489 = vsel %vm445, %v423, %v467
    %v490 = vsel %vm446, %v424, %v468
    %v491 = vsel %vm447, %v425, %v469
    %v492 = vsel %vm448, %v426, %v470
    %v493 = vsel %vm449, %v427, %v471
    %v494 = vsel %vm450, %v428, %v472
    %v495 = vsel %vm451, %v429, %v473
    %v496 = vsel %vm452, %v430, %v474
    %v497 = vsel %vm453, %v431, %v475
    %v498 = vsel %vm454, %v432, %v476
    %v499 = vsel %vm455, %v433, %v477
    %500 = vst [vmem:[%s3] sm:$0xff] %v478
    %501 = vst [vmem:[%s3 + $0x8] sm:$0xff] %v479
    %502 = vst [vmem:[%s3 + $0x10] sm:$0xff] %v480
    %503 = vst [vmem:[%s3 + $0x18] sm:$0xff] %v481
    %504 = vst [vmem:[%s3 + $0x20] sm:$0xff] %v482
    %505 = vst [vmem:[%s3 + $0x28] sm:$0xff] %v483
    %506 = vst [vmem:[%s3 + $0x30] sm:$0xff] %v484
    %507 = vst [vmem:[%s3 + $0x38] sm:$0xff] %v485
    %508 = vst [vmem:[%s3 + $0x40] sm:$0xff] %v486
    %509 = vst [vmem:[%s3 + $0x48] sm:$0xff] %v487
    %510 = vst [vmem:[%s3 + $0x50] sm:$0xff] %v488
    %511 = vst [vmem:[%s3 + $0x58] sm:$0xff] %v489
    %512 = vst [vmem:[%s3 + $0x60] sm:$0xff] %v490
    %513 = vst [vmem:[%s3 + $0x68] sm:$0xff] %v491
    %514 = vst [vmem:[%s3 + $0x70] sm:$0xff] %v492
    %515 = vst [vmem:[%s3 + $0x78] sm:$0xff] %v493
    %516 = vst [vmem:[%s3 + $0x80] sm:$0xff] %v494
    %517 = vst [vmem:[%s3 + $0x88] sm:$0xff] %v495
    %518 = vst [vmem:[%s3 + $0x90] sm:$0xff] %v496
    %519 = vst [vmem:[%s3 + $0x98] sm:$0xff] %v497
    %520 = vst [vmem:[%s3 + $0xa0] sm:$0xff] %v498
    %521 = vst [vmem:[%s3 + $0xa8] sm:$0xff] %v499
  $region21: #{dis_forward.5} parent=0 // pred_fallthru
    _
  // Predicated region
  $region22: #{dis_forward.5} parent=0 // pred_check
    _
  $region23: #{dis_forward.5} parent=0 // pred_check_branch
    %523 = sbr.rel (0) target = $region25
  $region24: #{dis_forward.5} parent=0 // pred_region
    _
  $region25: #{dis_forward.5} parent=0 // pred_fallthru
    _
  // Predicated region
  $region26: #{dis_forward.5} parent=0 // pred_check
    _
  $region27: #{dis_forward.5} parent=0 // pred_check_branch
    %525 = sbr.rel (0) target = $region29
  $region28: #{dis_forward.5} parent=0 // pred_region
    _
  $region29: #{dis_forward.5} parent=0 // pred_fallthru
    _

// kernel: dis_forward.6
$region0: #{dis_forward.6}
  #allocation0 [shape = 'u32[]', space=smem, size = 0x4, offset = 0x4, fixed_abs, tag = 'smem constant byte address 0x4 - core index']
  #allocation1 [shape = 'u32[144,128]{1,0:T(1,128)}', space=vmem, size = 0x12000, scoped, tag = 'internal scratch']
  #allocation2 [shape = 'f32[64,128]{1,0:T(8,128)}', space=vmem, size = 0x8000, scoped, tag = 'scratch operand']
  %s0 = inlined_call_operand.vmem [shape: bf16[64,1024], index: 0, kind: input, shape index: {}]
  %s1 = inlined_call_operand.vmem [shape: bf16[1024,128], index: 1, kind: input, shape index: {}]
  %s2 = inlined_call_operand.vmem [shape: f32[1,128], index: 2, kind: input, shape index: {}]
  %s3 = inlined_call_operand.vmem [shape: f32[64,128], index: 3, kind: output, shape index: {}]
  %s4 = sld [smem:[#allocation0]]
  $region76: #{dis_forward.6} parent=0
    _
  %s6 = ssub.s32 1, %s4
  %s7 = scalar_select 0, %s6, %s4
  $region1: #{dis_forward.6} parent=0
    #allocation3 [shape = 'u8[131072]{0}', space=vmem, size = 0x20000, scoped, tag = 'input window, operand 0']
    loop: start=0, step=1, limit=4
    $region2: #{dis_forward.6} parent=1 // loop_pre_header
      _
    $region3: #{dis_forward.6} parent=1 // loop_header
      %s9 = sphi 0, %s13
      %p10 = scmp.ge.s32.totalorder %s9, 4
      %s16 = sphi 0, %s35
      %s17 = sphi 0, %s31
      %s18 = sphi 0, %s27
      %s19 = sphi 0, %s16
      %s20 = sphi 0, %s17
      %s21 = sphi 0, %s18
      %s22 = sphi 0, %s19
      %s23 = sphi 0, %s20
      %s24 = sphi 0, %s21
      %s40 = sphi 0, %s42
      %s43 = sphi 0, %s40
      %s44 = sphi 0, %s43
      %s60 = sphi 0, %s44
      %s68 = sphi 0, %s70
      %s71 = sphi 0, %s68
      %s72 = sphi 0, %s71
      %s88 = sphi 0, %s72
      %s94 = sphi 0, %s96
      %s97 = sphi 0, %s94
      %s98 = sphi 0, %s97
      %s114 = sphi 0, %s98
      %s122 = sphi 0, %s124
      %s125 = sphi 0, %s122
      %s126 = sphi 0, %s125
      %s142 = sphi 0, %s126
    $region4: #{dis_forward.6} parent=1 // loop_header_branch
      %12 = sbr.rel (%p10) target = $region8
    $region5: #{dis_forward.6} parent=1 // loop_body
      %s14 = ssub.s32 %s9, 1
      %s15 = ssub.s32 %s9, 2
      %s25 = sadd.s32 1, %s18
      %p26 = scmp.ge.s32.totalorder %s25, 2
      %s27 = scalar_select %p26, 0, %s25
      %s28 = sadd.s32 1, %s17
      %s29 = scalar_select %p26, %s28, %s17
      %p30 = scmp.ge.s32.totalorder %s29, 1
      %s31 = scalar_select %p30, 0, %s29
      %s32 = sadd.s32 1, %s16
      %s33 = scalar_select %p30, %s32, %s16
      %p34 = scmp.ge.s32.totalorder %s33, 1
      %s35 = scalar_select %p34, 0, %s33
      %s36 = ssub.s32 %s16, %s35
      %s37 = ssub.s32 %s18, %s27
      %s38 = sor.u32 %s36, %s37
      %p39 = scmp.eq.s32.totalorder %s38, 0
      %s41 = sadd.s32 %s40, 1
      %s42 = scalar_select %p39, %s40, %s41
      %p45 = pneg %p39
      %p46 = scmp.eq.s32.totalorder %s9, 1
      %p47 = por %p45, %p46
      %p48 = scmp.ne.s32.totalorder %s40, %s43
      %p49 = scmp.eq.s32.totalorder %s9, 0
      %p50 = por %p48, %p49
      %p51 = scmp.ne.s32.totalorder %s40, %s43
      %p52 = scmp.eq.s32.totalorder %s14, 1
      %p53 = por %p51, %p52
      %p54 = scmp.ne.s32.totalorder %s43, %s44
      %p55 = scmp.eq.s32.totalorder %s14, 0
      %p56 = por %p54, %p55
      %p57 = scmp.ne.s32.totalorder %s43, %s44
      %p58 = scmp.eq.s32.totalorder %s15, 1
      %p59 = por %p57, %p58
      %p61 = scmp.ne.s32.totalorder %s44, %s60
      %p62 = scmp.eq.s32.totalorder %s15, 0
      %p63 = por %p61, %p62
      %s64 = ssub.s32 %s18, %s27
      %s65 = ssub.s32 %s17, %s31
      %s66 = sor.u32 %s64, %s65
      %p67 = scmp.eq.s32.totalorder %s66, 0
      %s69 = sadd.s32 %s68, 1
      %s70 = scalar_select %p67, %s68, %s69
      %p73 = pneg %p67
      %p74 = scmp.eq.s32.totalorder %s9, 1
      %p75 = por %p73, %p74
      %p76 = scmp.ne.s32.totalorder %s68, %s71
      %p77 = scmp.eq.s32.totalorder %s9, 0
      %p78 = por %p76, %p77
      %p79 = scmp.ne.s32.totalorder %s68, %s71
      %p80 = scmp.eq.s32.totalorder %s14, 1
      %p81 = por %p79, %p80
      %p82 = scmp.ne.s32.totalorder %s71, %s72
      %p83 = scmp.eq.s32.totalorder %s14, 0
      %p84 = por %p82, %p83
      %p85 = scmp.ne.s32.totalorder %s71, %s72
      %p86 = scmp.eq.s32.totalorder %s15, 1
      %p87 = por %p85, %p86
      %p89 = scmp.ne.s32.totalorder %s72, %s88
      %p90 = scmp.eq.s32.totalorder %s15, 0
      %p91 = por %p89, %p90
      %s92 = ssub.s32 %s17, %s31
      %p93 = scmp.eq.s32.totalorder %s92, 0
      %s95 = sadd.s32 %s94, 1
      %s96 = scalar_select %p93, %s94, %s95
      %p99 = pneg %p93
      %p100 = scmp.eq.s32.totalorder %s9, 1
      %p101 = por %p99, %p100
      %p102 = scmp.ne.s32.totalorder %s94, %s97
      %p103 = scmp.eq.s32.totalorder %s9, 0
      %p104 = por %p102, %p103
      %p105 = scmp.ne.s32.totalorder %s94, %s97
      %p106 = scmp.eq.s32.totalorder %s14, 1
      %p107 = por %p105, %p106
      %p108 = scmp.ne.s32.totalorder %s97, %s98
      %p109 = scmp.eq.s32.totalorder %s14, 0
      %p110 = por %p108, %p109
      %p111 = scmp.ne.s32.totalorder %s97, %s98
      %p112 = scmp.eq.s32.totalorder %s15, 1
      %p113 = por %p111, %p112
      %p115 = scmp.ne.s32.totalorder %s98, %s114
      %p116 = scmp.eq.s32.totalorder %s15, 0
      %p117 = por %p115, %p116
      %s118 = ssub.s32 %s16, %s35
      %s119 = ssub.s32 %s17, %s31
      %s120 = sor.u32 %s118, %s119
      %p121 = scmp.eq.s32.totalorder %s120, 0
      %s123 = sadd.s32 %s122, 1
      %s124 = scalar_select %p121, %s122, %s123
      %p127 = pneg %p121
      %p128 = scmp.eq.s32.totalorder %s9, 1
      %p129 = por %p127, %p128
      %p130 = scmp.ne.s32.totalorder %s122, %s125
      %p131 = scmp.eq.s32.totalorder %s9, 0
      %p132 = por %p130, %p131
      %p133 = scmp.ne.s32.totalorder %s122, %s125
      %p134 = scmp.eq.s32.totalorder %s14, 1
      %p135 = por %p133, %p134
      %p136 = scmp.ne.s32.totalorder %s125, %s126
      %p137 = scmp.eq.s32.totalorder %s14, 0
      %p138 = por %p136, %p137
      %p139 = scmp.ne.s32.totalorder %s125, %s126
      %p140 = scmp.eq.s32.totalorder %s15, 1
      %p141 = por %p139, %p140
      %p143 = scmp.ne.s32.totalorder %s126, %s142
      %p144 = scmp.eq.s32.totalorder %s15, 0
      %p145 = por %p143, %p144
      %p146 = scmp.le.s32.totalorder 1, %s9
      %p147 = scmp.lt.s32.totalorder %s9, 3
      %p148 = pnand %p146, %p147
      %p149 = pneg %p148
      // Predicated region
      $region9: #{dis_forward.6} parent=5 // pred_check
        _
      $region10: #{dis_forward.6} parent=5 // pred_check_branch
        %151 = sbr.rel (%p148) target = $region12
      $region11: #{dis_forward.6} parent=5 // pred_region
        %s152 = ssub.s32 %s9, 1
        // Predicated region
        $region13: #{dis_forward.6} parent=11 // pred_check
          %p153 = pneg %p110
        $region14: #{dis_forward.6} parent=11 // pred_check_branch
          %155 = sbr.rel (%p153) target = $region16
        $region15: #{dis_forward.6} parent=11 // pred_region
          %p156 = scmp.lt.s32.totalorder %s20, 0
          %s157 = scalar_select %p156, %s20, 0
          %s158 = scalar_lea.vmem %s2, %s157
        $region16: #{dis_forward.6} parent=11 // pred_fallthru
          _
      $region12: #{dis_forward.6} parent=5 // pred_fallthru
        _
      %p159 = scmp.lt.s32.totalorder %s9, 2
      // Predicated region
      $region17: #{dis_forward.6} parent=5 // pred_check
        %p160 = pneg %p159
      $region18: #{dis_forward.6} parent=5 // pred_check_branch
        %162 = sbr.rel (%p160) target = $region20
      $region19: #{dis_forward.6} parent=5 // pred_region
        // Predicated region
        $region21: #{dis_forward.6} parent=19 // pred_check
          %p163 = pneg %p50
        $region22: #{dis_forward.6} parent=19 // pred_check_branch
          %165 = sbr.rel (%p163) target = $region24
        $region23: #{dis_forward.6} parent=19 // pred_region
          %s166 = sand.u32 %s40, 1
          %s167 = sand.u32 %s40, 1
          %s168 = smul.addr %s167, 128
          %s169 = scalar_lea.vmem [#allocation3], %s168
          %s170 = smul.u32 8, %s16
          %s171 = smul.u32 4, %s18
          %s172 = smul.addr %s170, 8
          %s173 = sadd.s32 %s171, %s172
          %s174 = smul.addr %s173, 4
          %s175 = scalar_lea.vmem %s0, %s174
          // Predicated region
          $region25: #{dis_forward.6} parent=23 // pred_check
            _
          $region26: #{dis_forward.6} parent=23 // pred_check_branch
            %177 = sbr.rel (0) target = $region28
          $region27: #{dis_forward.6} parent=23 // pred_region
            // Predicated region
            $region29: #{dis_forward.6} parent=27 // pred_check
              _
            $region30: #{dis_forward.6} parent=27 // pred_check_branch
              %179 = sbr.rel (0) target = $region32
            $region31: #{dis_forward.6} parent=27 // pred_region
              loop: start=0, step=1, limit=1
              $region33: #{dis_forward.6} parent=31 // loop_pre_header
                _
              $region34: #{dis_forward.6} parent=31 // loop_header
                %s181 = sphi 0, %s185
                %p182 = scmp.ge.s32.totalorder %s181, 1
                %s186 = sphi %s175, %s175
                %s187 = sphi %s169, %s169
              $region35: #{dis_forward.6} parent=31 // loop_header_branch
                %184 = sbr.rel (%p182) target = $region39
              $region36: #{dis_forward.6} parent=31 // loop_body
                %v188 = vld [vmem:[%s186] sm:$0xff]
                %189 = vst [vmem:[%s187] sm:$0xff] %v188
                %v190 = vld [vmem:[%s186 + $0x8] sm:$0xff]
                %191 = vst [vmem:[%s187 + $0x8] sm:$0xff] %v190
                %v192 = vld [vmem:[%s186 + $0x20] sm:$0xff]
                %193 = vst [vmem:[%s187 + $0x10] sm:$0xff] %v192
                %v194 = vld [vmem:[%s186 + $0x28] sm:$0xff]
                %195 = vst [vmem:[%s187 + $0x18] sm:$0xff] %v194
                %v196 = vld [vmem:[%s186 + $0x40] sm:$0xff]
                %197 = vst [vmem:[%s187 + $0x20] sm:$0xff] %v196
                %v198 = vld [vmem:[%s186 + $0x48] sm:$0xff]
                %199 = vst [vmem:[%s187 + $0x28] sm:$0xff] %v198
                %v200 = vld [vmem:[%s186 + $0x60] sm:$0xff]
                %201 = vst [vmem:[%s187 + $0x30] sm:$0xff] %v200
                %v202 = vld [vmem:[%s186 + $0x68] sm:$0xff]
                %203 = vst [vmem:[%s187 + $0x38] sm:$0xff] %v202
                %v204 = vld [vmem:[%s186 + $0x80] sm:$0xff]
                %205 = vst [vmem:[%s187 + $0x40] sm:$0xff] %v204
                %v206 = vld [vmem:[%s186 + $0x88] sm:$0xff]
                %207 = vst [vmem:[%s187 + $0x48] sm:$0xff] %v206
                %v208 = vld [vmem:[%s186 + $0xa0] sm:$0xff]
                %209 = vst [vmem:[%s187 + $0x50] sm:$0xff] %v208
                %v210 = vld [vmem:[%s186 + $0xa8] sm:$0xff]
                %211 = vst [vmem:[%s187 + $0x58] sm:$0xff] %v210
                %v212 = vld [vmem:[%s186 + $0xc0] sm:$0xff]
                %213 = vst [vmem:[%s187 + $0x60] sm:$0xff] %v212
                %v214 = vld [vmem:[%s186 + $0xc8] sm:$0xff]
                %215 = vst [vmem:[%s187 + $0x68] sm:$0xff] %v214
                %v216 = vld [vmem:[%s186 + $0xe0] sm:$0xff]
                %217 = vst [vmem:[%s187 + $0x70] sm:$0xff] %v216
                %v218 = vld [vmem:[%s186 + $0xe8] sm:$0xff]
                %219 = vst [vmem:[%s187 + $0x78] sm:$0xff] %v218
              $region37: #{dis_forward.6} parent=31 // loop_footer
                %s185 = sadd.s32 1, %s181
              $region38: #{dis_forward.6} parent=31 // loop_footer_branch
                %180 = sbr.rel target = $region34
              $region39: #{dis_forward.6} parent=31 // loop_exit
                _
            $region32: #{dis_forward.6} parent=27 // pred_fallthru
              _
            // Predicated region
            $region40: #{dis_forward.6} parent=27 // pred_check
              _
            $region41: #{dis_forward.6} parent=27 // pred_check_branch
              %221 = sbr.rel target = $region43
            $region42: #{dis_forward.6} parent=27 // pred_region
              _
            $region43: #{dis_forward.6} parent=27 // pred_fallthru
              _
          $region28: #{dis_forward.6} parent=23 // pred_fallthru
            _
          %222 = vnop
        $region24: #{dis_forward.6} parent=19 // pred_fallthru
          _
        // Predicated region
        $region44: #{dis_forward.6} parent=19 // pred_check
          %p223 = pneg %p78
        $region45: #{dis_forward.6} parent=19 // pred_check_branch
          %225 = sbr.rel (%p223) target = $region47
        $region46: #{dis_forward.6} parent=19 // pred_region
          %s226 = smul.u32 64, %s18
          %p227 = scmp.lt.s32.totalorder %s226, 127
          %s228 = scalar_select %p227, %s226, 127
          %p229 = scmp.lt.s32.totalorder %s17, 0
          %s230 = scalar_select %p229, %s17, 0
          %s231 = sadd.s32 %s230, %s228
          %s232 = smul.addr %s231, 4
          %s233 = scalar_lea.vmem %s1, %s232
          %s234 = smul.u32 64, %s18
        $region47: #{dis_forward.6} parent=19 // pred_fallthru
          _
      $region20: #{dis_forward.6} parent=5 // pred_fallthru
        _
      %p235 = scmp.le.s32.totalorder 1, %s9
      %p236 = scmp.lt.s32.totalorder %s9, 3
      %p237 = pnand %p235, %p236
      %p238 = pneg %p237
      // Predicated region
      $region48: #{dis_forward.6} parent=5 // pred_check
        _
      $region49: #{dis_forward.6} parent=5 // pred_check_branch
        %240 = sbr.rel (%p237) target = $region51
      $region50: #{dis_forward.6} parent=5 // pred_region
        %s241 = ssub.s32 %s9, 1
        %s242 = sand.u32 %s43, 1
        %s243 = sand.u32 %s43, 1
        %s244 = smul.addr %s243, 128
        %s245 = scalar_lea.vmem [#allocation3], %s244
        // Predicated region
        $region52: #{dis_forward.6} parent=50 // pred_check
          %p246 = pneg %p56
        $region53: #{dis_forward.6} parent=50 // pred_check_branch
          %248 = sbr.rel (%p246) target = $region55
        $region54: #{dis_forward.6} parent=50 // pred_region
          _
        $region55: #{dis_forward.6} parent=50 // pred_fallthru
          _
        %s249 = sand.u32 %s43, 1
        %s250 = sand.u32 %s43, 1
        %s251 = smul.addr %s250, 128
        %s252 = scalar_lea.vmem [#allocation3], %s251
        %p253 = pneg %p56
        %p254 = pneg %p53
        %s255 = smul.u32 64, %s21
        %p256 = scmp.lt.s32.totalorder %s255, 127
        %s257 = scalar_select %p256, %s255, 127
        %p258 = scmp.lt.s32.totalorder %s20, 0
        %s259 = scalar_select %p258, %s20, 0
        %s260 = sadd.s32 %s259, %s257
        %s261 = smul.addr %s260, 4
        %s262 = scalar_lea.vmem %s1, %s261
        %p263 = pneg %p84
        %p264 = pneg %p81
        %p265 = scmp.lt.s32.totalorder %s20, 0
        %s266 = scalar_select %p265, %s20, 0
        %s267 = scalar_lea.vmem %s2, %s266
        %p268 = pneg %p110
        %p269 = pneg %p107
        %p270 = pneg %p138
        %p271 = pneg %p135
        %s272 = smul.u32 8, %s19
        %p273 = scmp.lt.s32.totalorder %s272, 7
        %s274 = scalar_select %p273, %s272, 7
        %p275 = scmp.lt.s32.totalorder %s20, 0
        %s276 = scalar_select %p275, %s20, 0
        %s277 = sadd.s32 %s276, %s274
        %s278 = smul.addr %s277, 8
        %s279 = scalar_lea.vmem %s3, %s278
        %s280 = smul.u32 8, %s19
        %s281 = smul.u32 4, %s21
        %s282 = smul.u32 64, %s21
        %p283 = scmp.lt.s32.totalorder %s282, 127
        %s284 = scalar_select %p283, %s282, 127
        %p285 = scmp.lt.s32.totalorder %s20, 0
        %s286 = scalar_select %p285, %s20, 0
        %s287 = sadd.s32 %s286, %s284
        %s288 = smul.addr %s287, 4
        %s289 = scalar_lea.vmem %s1, %s288
        %s290 = smul.u32 64, %s21
        %p291 = scmp.lt.s32.totalorder %s20, 0
        %s292 = scalar_select %p291, %s20, 0
        %s293 = scalar_lea.vmem %s2, %s292
        %s294 = smul.u32 8, %s19
        %p295 = scmp.lt.s32.totalorder %s294, 7
        %s296 = scalar_select %p295, %s294, 7
        %p297 = scmp.lt.s32.totalorder %s20, 0
        %s298 = scalar_select %p297, %s20, 0
        %s299 = sadd.s32 %s298, %s296
        %s300 = smul.addr %s299, 8
        %s301 = scalar_lea.vmem %s3, %s300
        %s302 = smul.u32 8, %s19
        %p304 = scmp.eq.s32.totalorder %s21, 0
        // Predicated region
        $region56: #{dis_forward.6} parent=50 // pred_check
          %p305 = pneg %p304
        $region57: #{dis_forward.6} parent=50 // pred_check_branch
          %307 = sbr.rel (%p305) target = $region59
        $region58: #{dis_forward.6} parent=50 // pred_region
          %308 = vst [vmem:[#allocation2] sm:$0xff] 0.0
          %309 = vst [vmem:[#allocation2 + $0x8] sm:$0xff] 0.0
          %310 = vst [vmem:[#allocation2 + $0x10] sm:$0xff] 0.0
          %311 = vst [vmem:[#allocation2 + $0x18] sm:$0xff] 0.0
          %312 = vst [vmem:[#allocation2 + $0x20] sm:$0xff] 0.0
          %313 = vst [vmem:[#allocation2 + $0x28] sm:$0xff] 0.0
          %314 = vst [vmem:[#allocation2 + $0x30] sm:$0xff] 0.0
          %315 = vst [vmem:[#allocation2 + $0x38] sm:$0xff] 0.0
        $region59: #{dis_forward.6} parent=50 // pred_fallthru
          _
        %v316 = vld [vmem:[#allocation2] sm:$0xff]
        %v317 = vld [vmem:[#allocation2 + $0x8] sm:$0xff]
        %v318 = vld [vmem:[#allocation2 + $0x10] sm:$0xff]
        %v319 = vld [vmem:[#allocation2 + $0x18] sm:$0xff]
        %v320 = vld [vmem:[#allocation2 + $0x20] sm:$0xff]
        %v321 = vld [vmem:[#allocation2 + $0x28] sm:$0xff]
        %v322 = vld [vmem:[#allocation2 + $0x30] sm:$0xff]
        %v323 = vld [vmem:[#allocation2 + $0x38] sm:$0xff]
        %v324 = vld [vmem:[%s245] sm:$0xff]
        %v325 = vld [vmem:[%s245 + $0x8] sm:$0xff]
        %v326 = vld [vmem:[%s245 + $0x10] sm:$0xff]
        %v327 = vld [vmem:[%s245 + $0x18] sm:$0xff]
        %v328 = vld [vmem:[%s245 + $0x20] sm:$0xff]
        %v329 = vld [vmem:[%s245 + $0x28] sm:$0xff]
        %v330 = vld [vmem:[%s245 + $0x30] sm:$0xff]
        %v331 = vld [vmem:[%s245 + $0x38] sm:$0xff]
        %v332 = vld [vmem:[%s245 + $0x40] sm:$0xff]
        %v333 = vld [vmem:[%s245 + $0x48] sm:$0xff]
        %v334 = vld [vmem:[%s245 + $0x50] sm:$0xff]
        %v335 = vld [vmem:[%s245 + $0x58] sm:$0xff]
        %v336 = vld [vmem:[%s245 + $0x60] sm:$0xff]
        %v337 = vld [vmem:[%s245 + $0x68] sm:$0xff]
        %v338 = vld [vmem:[%s245 + $0x70] sm:$0xff]
        %v339 = vld [vmem:[%s245 + $0x78] sm:$0xff]
        %v340 = vld [vmem:[%s289] sm:$0xf]
        %v341 = vld [vmem:[%s289 + $0x4] sm:$0xf]
        %v342 = vld [vmem:[%s289 + $0x8] sm:$0xf]
        %v343 = vld [vmem:[%s289 + $0xc] sm:$0xf]
        %v344 = vld [vmem:[%s289 + $0x10] sm:$0xf]
        %v345 = vld [vmem:[%s289 + $0x14] sm:$0xf]
        %v346 = vld [vmem:[%s289 + $0x18] sm:$0xf]
        %v347 = vld [vmem:[%s289 + $0x1c] sm:$0xf]
        %v348 = vld [vmem:[%s289 + $0x20] sm:$0xf]
        %v349 = vld [vmem:[%s289 + $0x24] sm:$0xf]
        %v350 = vld [vmem:[%s289 + $0x28] sm:$0xf]
        %v351 = vld [vmem:[%s289 + $0x2c] sm:$0xf]
        %v352 = vld [vmem:[%s289 + $0x30] sm:$0xf]
        %v353 = vld [vmem:[%s289 + $0x34] sm:$0xf]
        %v354 = vld [vmem:[%s289 + $0x38] sm:$0xf]
        %v355 = vld [vmem:[%s289 + $0x3c] sm:$0xf]
        %v356 = vld [vmem:[%s289 + $0x40] sm:$0xf]
        %v357 = vld [vmem:[%s289 + $0x44] sm:$0xf]
        %v358 = vld [vmem:[%s289 + $0x48] sm:$0xf]
        %v359 = vld [vmem:[%s289 + $0x4c] sm:$0xf]
        %v360 = vld [vmem:[%s289 + $0x50] sm:$0xf]
        %v361 = vld [vmem:[%s289 + $0x54] sm:$0xf]
        %v362 = vld [vmem:[%s289 + $0x58] sm:$0xf]
        %v363 = vld [vmem:[%s289 + $0x5c] sm:$0xf]
        %v364 = vld [vmem:[%s289 + $0x60] sm:$0xf]
        %v365 = vld [vmem:[%s289 + $0x64] sm:$0xf]
        %v366 = vld [vmem:[%s289 + $0x68] sm:$0xf]
        %v367 = vld [vmem:[%s289 + $0x6c] sm:$0xf]
        %v368 = vld [vmem:[%s289 + $0x70] sm:$0xf]
        %v369 = vld [vmem:[%s289 + $0x74] sm:$0xf]
        %v370 = vld [vmem:[%s289 + $0x78] sm:$0xf]
        %v371 = vld [vmem:[%s289 + $0x7c] sm:$0xf]
        %v372 = vld [vmem:[%s289 + $0x80] sm:$0xf]
        %v373 = vld [vmem:[%s289 + $0x84] sm:$0xf]
        %v374 = vld [vmem:[%s289 + $0x88] sm:$0xf]
        %v375 = vld [vmem:[%s289 + $0x8c] sm:$0xf]
        %v376 = vld [vmem:[%s289 + $0x90] sm:$0xf]
        %v377 = vld [vmem:[%s289 + $0x94] sm:$0xf]
        %v378 = vld [vmem:[%s289 + $0x98] sm:$0xf]
        %v379 = vld [vmem:[%s289 + $0x9c] sm:$0xf]
        %v380 = vld [vmem:[%s289 + $0xa0] sm:$0xf]
        %v381 = vld [vmem:[%s289 + $0xa4] sm:$0xf]
        %v382 = vld [vmem:[%s289 + $0xa8] sm:$0xf]
        %v383 = vld [vmem:[%s289 + $0xac] sm:$0xf]
        %v384 = vld [vmem:[%s289 + $0xb0] sm:$0xf]
        %v385 = vld [vmem:[%s289 + $0xb4] sm:$0xf]
        %v386 = vld [vmem:[%s289 + $0xb8] sm:$0xf]
        %v387 = vld [vmem:[%s289 + $0xbc] sm:$0xf]
        %v388 = vld [vmem:[%s289 + $0xc0] sm:$0xf]
        %v389 = vld [vmem:[%s289 + $0xc4] sm:$0xf]
        %v390 = vld [vmem:[%s289 + $0xc8] sm:$0xf]
        %v391 = vld [vmem:[%s289 + $0xcc] sm:$0xf]
        %v392 = vld [vmem:[%s289 + $0xd0] sm:$0xf]
        %v393 = vld [vmem:[%s289 + $0xd4] sm:$0xf]
        %v394 = vld [vmem:[%s289 + $0xd8] sm:$0xf]
        %v395 = vld [vmem:[%s289 + $0xdc] sm:$0xf]
        %v396 = vld [vmem:[%s289 + $0xe0] sm:$0xf]
        %v397 = vld [vmem:[%s289 + $0xe4] sm:$0xf]
        %v398 = vld [vmem:[%s289 + $0xe8] sm:$0xf]
        %v399 = vld [vmem:[%s289 + $0xec] sm:$0xf]
        %v400 = vld [vmem:[%s289 + $0xf0] sm:$0xf]
        %v401 = vld [vmem:[%s289 + $0xf4] sm:$0xf]
        %v402 = vld [vmem:[%s289 + $0xf8] sm:$0xf]
        %v403 = vld [vmem:[%s289 + $0xfc] sm:$0xf]
        %v420 = vunpack.c.l.b16 %v324
        %v421 = vunpack.c.h.b16 %v324
        %v422 = vunpack.c.l.b16 %v325
        %v423 = vunpack.c.h.b16 %v325
        %v424 = vunpack.c.l.b16 %v326
        %v425 = vunpack.c.h.b16 %v326
        %v426 = vunpack.c.l.b16 %v327
        %v427 = vunpack.c.h.b16 %v327
        %v428 = vunpack.c.l.b16 %v328
        %v429 = vunpack.c.h.b16 %v328
        %v430 = vunpack.c.l.b16 %v329
        %v431 = vunpack.c.h.b16 %v329
        %v432 = vunpack.c.l.b16 %v330
        %v433 = vunpack.c.h.b16 %v330
        %v434 = vunpack.c.l.b16 %v331
        %v435 = vunpack.c.h.b16 %v331
        %v436 = vunpack.c.l.b16 %v332
        %v437 = vunpack.c.h.b16 %v332
        %v438 = vunpack.c.l.b16 %v333
        %v439 = vunpack.c.h.b16 %v333
        %v440 = vunpack.c.l.b16 %v334
        %v441 = vunpack.c.h.b16 %v334
        %v442 = vunpack.c.l.b16 %v335
        %v443 = vunpack.c.h.b16 %v335
        %v444 = vunpack.c.l.b16 %v336
        %v445 = vunpack.c.h.b16 %v336
        %v446 = vunpack.c.l.b16 %v337
        %v447 = vunpack.c.h.b16 %v337
        %v448 = vunpack.c.l.b16 %v338
        %v449 = vunpack.c.h.b16 %v338
        %v450 = vunpack.c.l.b16 %v339
        %v451 = vunpack.c.h.b16 %v339
        %v452 = vpack.c.b16 %v424, %v420
        %v453 = vpack.c.b16 %v425, %v421
        %v454 = vpack.c.b16 %v426, %v422
        %v455 = vpack.c.b16 %v427, %v423
        %v456 = vpack.c.b16 %v432, %v428
        %v457 = vpack.c.b16 %v433, %v429
        %v458 = vpack.c.b16 %v434, %v430
        %v459 = vpack.c.b16 %v435, %v431
        %v460 = vpack.c.b16 %v440, %v436
        %v461 = vpack.c.b16 %v441, %v437
        %v462 = vpack.c.b16 %v442, %v438
        %v463 = vpack.c.b16 %v443, %v439
        %v464 = vpack.c.b16 %v448, %v444
        %v465 = vpack.c.b16 %v449, %v445
        %v466 = vpack.c.b16 %v450, %v446
        %v467 = vpack.c.b16 %v451, %v447
        %v548 = vunpack.c.l.b16 %v340
        %v549 = vunpack.c.l.b16 %v341
        %v550 = vunpack.c.l.b16 %v342
        %v551 = vunpack.c.l.b16 %v343
        %v552 = vunpack.c.l.b16 %v344
        %v553 = vunpack.c.l.b16 %v345
        %v554 = vunpack.c.l.b16 %v346
        %v555 = vunpack.c.l.b16 %v347
        %v556 = vunpack.c.l.b16 %v348
        %v557 = vunpack.c.l.b16 %v349
        %v558 = vunpack.c.l.b16 %v350
        %v559 = vunpack.c.l.b16 %v351
        %v560 = vunpack.c.l.b16 %v352
        %v561 = vunpack.c.l.b16 %v353
        %v562 = vunpack.c.l.b16 %v354
        %v563 = vunpack.c.l.b16 %v355
        %v564 = vunpack.c.l.b16 %v356
        %v565 = vunpack.c.l.b16 %v357
        %v566 = vunpack.c.l.b16 %v358
        %v567 = vunpack.c.l.b16 %v359
        %v568 = vunpack.c.l.b16 %v360
        %v569 = vunpack.c.l.b16 %v361
        %v570 = vunpack.c.l.b16 %v362
        %v571 = vunpack.c.l.b16 %v363
        %v572 = vunpack.c.l.b16 %v364
        %v573 = vunpack.c.l.b16 %v365
        %v574 = vunpack.c.l.b16 %v366
        %v575 = vunpack.c.l.b16 %v367
        %v576 = vunpack.c.l.b16 %v368
        %v577 = vunpack.c.l.b16 %v369
        %v578 = vunpack.c.l.b16 %v370
        %v579 = vunpack.c.l.b16 %v371
        %v580 = vunpack.c.l.b16 %v372
        %v581 = vunpack.c.l.b16 %v373
        %v582 = vunpack.c.l.b16 %v374
        %v583 = vunpack.c.l.b16 %v375
        %v584 = vunpack.c.l.b16 %v376
        %v585 = vunpack.c.l.b16 %v377
        %v586 = vunpack.c.l.b16 %v378
        %v587 = vunpack.c.l.b16 %v379
        %v588 = vunpack.c.l.b16 %v380
        %v589 = vunpack.c.l.b16 %v381
        %v590 = vunpack.c.l.b16 %v382
        %v591 = vunpack.c.l.b16 %v383
        %v592 = vunpack.c.l.b16 %v384
        %v593 = vunpack.c.l.b16 %v385
        %v594 = vunpack.c.l.b16 %v386
        %v595 = vunpack.c.l.b16 %v387
        %v596 = vunpack.c.l.b16 %v388
        %v597 = vunpack.c.l.b16 %v389
        %v598 = vunpack.c.l.b16 %v390
        %v599 = vunpack.c.l.b16 %v391
        %v600 = vunpack.c.l.b16 %v392
        %v601 = vunpack.c.l.b16 %v393
        %v602 = vunpack.c.l.b16 %v394
        %v603 = vunpack.c.l.b16 %v395
        %v604 = vunpack.c.l.b16 %v396
        %v605 = vunpack.c.l.b16 %v397
        %v606 = vunpack.c.l.b16 %v398
        %v607 = vunpack.c.l.b16 %v399
        %v608 = vunpack.c.l.b16 %v400
        %v609 = vunpack.c.l.b16 %v401
        %v610 = vunpack.c.l.b16 %v402
        %v611 = vunpack.c.l.b16 %v403
        %v612 = vpack.c.b16 %v549, %v548
        %v613 = vpack.c.b16 %v551, %v550
        %v614 = vpack.c.b16 %v553, %v552
        %v615 = vpack.c.b16 %v555, %v554
        %v616 = vpack.c.b16 %v557, %v556
        %v617 = vpack.c.b16 %v559, %v558
        %v618 = vpack.c.b16 %v561, %v560
        %v619 = vpack.c.b16 %v563, %v562
        %v620 = vpack.c.b16 %v565, %v564
        %v621 = vpack.c.b16 %v567, %v566
        %v622 = vpack.c.b16 %v569, %v568
        %v623 = vpack.c.b16 %v571, %v570
        %v624 = vpack.c.b16 %v573, %v572
        %v625 = vpack.c.b16 %v575, %v574
        %v626 = vpack.c.b16 %v577, %v576
        %v627 = vpack.c.b16 %v579, %v578
        %v628 = vpack.c.b16 %v581, %v580
        %v629 = vpack.c.b16 %v583, %v582
        %v630 = vpack.c.b16 %v585, %v584
        %v631 = vpack.c.b16 %v587, %v586
        %v632 = vpack.c.b16 %v589, %v588
        %v633 = vpack.c.b16 %v591, %v590
        %v634 = vpack.c.b16 %v593, %v592
        %v635 = vpack.c.b16 %v595, %v594
        %v636 = vpack.c.b16 %v597, %v596
        %v637 = vpack.c.b16 %v599, %v598
        %v638 = vpack.c.b16 %v601, %v600
        %v639 = vpack.c.b16 %v603, %v602
        %v640 = vpack.c.b16 %v605, %v604
        %v641 = vpack.c.b16 %v607, %v606
        %v642 = vpack.c.b16 %v609, %v608
        %v643 = vpack.c.b16 %v611, %v610
        %676 = vmatprep.subr.bf16.mxu0 0
        %677 = vmatpush1.bf16.msra.mxu0 %v612
        %678 = vmatprep.subr.bf16.mxu0 0
        %679 = vmatpush1.bf16.msra.mxu0 %v613
        %680 = vmatprep.subr.bf16.mxu0 0
        %681 = vmatpush1.bf16.msra.mxu0 %v614
        %682 = vmatprep.subr.bf16.mxu0 0
        %683 = vmatpush1.bf16.msra.mxu0 %v615
        %684 = vmatprep.subr.bf16.mxu0 0
        %685 = vmatpush1.bf16.msra.mxu0 %v616
        %686 = vmatprep.subr.bf16.mxu0 0
        %687 = vmatpush1.bf16.msra.mxu0 %v617
        %688 = vmatprep.subr.bf16.mxu0 0
        %689 = vmatpush1.bf16.msra.mxu0 %v618
        %690 = vmatprep.subr.bf16.mxu0 0
        %691 = vmatpush1.bf16.msra.mxu0 %v619
        %692 = vmatprep.subr.bf16.mxu0 0
        %693 = vmatpush1.bf16.msra.mxu0 %v620
        %694 = vmatprep.subr.bf16.mxu0 0
        %695 = vmatpush1.bf16.msra.mxu0 %v621
        %696 = vmatprep.subr.bf16.mxu0 0
        %697 = vmatpush1.bf16.msra.mxu0 %v622
        %698 = vmatprep.subr.bf16.mxu0 0
        %699 = vmatpush1.bf16.msra.mxu0 %v623
        %700 = vmatprep.subr.bf16.mxu0 0
        %701 = vmatpush1.bf16.msra.mxu0 %v624
        %702 = vmatprep.subr.bf16.mxu0 0
        %703 = vmatpush1.bf16.msra.mxu0 %v625
        %704 = vmatprep.subr.bf16.mxu0 0
        %705 = vmatpush1.bf16.msra.mxu0 %v626
        %706 = vmatprep.subr.bf16.mxu0 0
        %707 = vmatpush1.bf16.msra.mxu0 %v627
        %708 = vmatprep.mubr.bf16.mxu0 %v453
        %709 = vmatmul.mubr.bf16.gmra.mrb[0].mxu0 %v452
        %v710 = vpop.f32.mrb[0].mxu0
        %v711 = vadd.f32 0.0, %v710
        %v712 = vpop.f32.mrb[0].mxu0
        %v713 = vpop.f32.mrb[0].mxu0
        %v714 = vadd.f32 0.0, %v713
        %v715 = vpop.f32.mrb[0].mxu0
        %716 = vmatprep.mubr.bf16.mxu0 %v457
        %717 = vmatmul.mubr.bf16.gmra.mrb[0].mxu0 %v456
        %v718 = vpop.f32.mrb[0].mxu0
        %v719 = vadd.f32 0.0, %v718
        %v720 = vpop.f32.mrb[0].mxu0
        %v721 = vpop.f32.mrb[0].mxu0
        %v722 = vadd.f32 0.0, %v721
        %v723 = vpop.f32.mrb[0].mxu0
        %724 = vmatprep.mubr.bf16.mxu0 %v461
        %725 = vmatmul.mubr.bf16.gmra.mrb[0].mxu0 %v460
        %v726 = vpop.f32.mrb[0].mxu0
        %v727 = vadd.f32 0.0, %v726
        %v728 = vpop.f32.mrb[0].mxu0
        %v729 = vpop.f32.mrb[0].mxu0
        %v730 = vadd.f32 0.0, %v729
        %v731 = vpop.f32.mrb[0].mxu0
        %732 = vmatprep.mubr.bf16.mxu0 %v465
        %733 = vmatmul.mubr.bf16.gmra.mrb[0].mxu0 %v464
        %v734 = vpop.f32.mrb[0].mxu0
        %v735 = vadd.f32 0.0, %v734
        %v736 = vpop.f32.mrb[0].mxu0
        %v737 = vpop.f32.mrb[0].mxu0
        %v738 = vadd.f32 0.0, %v737
        %v739 = vpop.f32.mrb[0].mxu0
        %740 = vdwg.mxu0
        %741 = vmatprep.subr.bf16.mxu0 0
        %742 = vmatpush1.bf16.msra.mxu0 %v628
        %743 = vmatprep.subr.bf16.mxu0 0
        %744 = vmatpush1.bf16.msra.mxu0 %v629
        %745 = vmatprep.subr.bf16.mxu0 0
        %746 = vmatpush1.bf16.msra.mxu0 %v630
        %747 = vmatprep.subr.bf16.mxu0 0
        %748 = vmatpush1.bf16.msra.mxu0 %v631
        %749 = vmatprep.subr.bf16.mxu0 0
        %750 = vmatpush1.bf16.msra.mxu0 %v632
        %751 = vmatprep.subr.bf16.mxu0 0
        %752 = vmatpush1.bf16.msra.mxu0 %v633
        %753 = vmatprep.subr.bf16.mxu0 0
        %754 = vmatpush1.bf16.msra.mxu0 %v634
        %755 = vmatprep.subr.bf16.mxu0 0
        %756 = vmatpush1.bf16.msra.mxu0 %v635
        %757 = vmatprep.subr.bf16.mxu0 0
        %758 = vmatpush1.bf16.msra.mxu0 %v636
        %759 = vmatprep.subr.bf16.mxu0 0
        %760 = vmatpush1.bf16.msra.mxu0 %v637
        %761 = vmatprep.subr.bf16.mxu0 0
        %762 = vmatpush1.bf16.msra.mxu0 %v638
        %763 = vmatprep.subr.bf16.mxu0 0
        %764 = vmatpush1.bf16.msra.mxu0 %v639
        %765 = vmatprep.subr.bf16.mxu0 0
        %766 = vmatpush1.bf16.msra.mxu0 %v640
        %767 = vmatprep.subr.bf16.mxu0 0
        %768 = vmatpush1.bf16.msra.mxu0 %v641
        %769 = vmatprep.subr.bf16.mxu0 0
        %770 = vmatpush1.bf16.msra.mxu0 %v642
        %771 = vmatprep.subr.bf16.mxu0 0
        %772 = vmatpush1.bf16.msra.mxu0 %v643
        %773 = vmatprep.mubr.bf16.mxu0 %v455
        %774 = vmatmul.mubr.bf16.gmra.mrb[0].mxu0 %v454
        %v775 = vpop.f32.mrb[0].mxu0
        %v776 = vadd.f32 %v711, %v775
        %v777 = vpop.f32.mrb[0].mxu0
        %v778 = vpop.f32.mrb[0].mxu0
        %v779 = vadd.f32 %v714, %v778
        %v780 = vpop.f32.mrb[0].mxu0
        %781 = vmatprep.mubr.bf16.mxu0 %v459
        %782 = vmatmul.mubr.bf16.gmra.mrb[0].mxu0 %v458
        %v783 = vpop.f32.mrb[0].mxu0
        %v784 = vadd.f32 %v719, %v783
        %v785 = vpop.f32.mrb[0].mxu0
        %v786 = vpop.f32.mrb[0].mxu0
        %v787 = vadd.f32 %v722, %v786
        %v788 = vpop.f32.mrb[0].mxu0
        %789 = vmatprep.mubr.bf16.mxu0 %v463
        %790 = vmatmul.mubr.bf16.gmra.mrb[0].mxu0 %v462
        %v791 = vpop.f32.mrb[0].mxu0
        %v792 = vadd.f32 %v727, %v791
        %v793 = vpop.f32.mrb[0].mxu0
        %v794 = vpop.f32.mrb[0].mxu0
        %v795 = vadd.f32 %v730, %v794
        %v796 = vpop.f32.mrb[0].mxu0
        %797 = vmatprep.mubr.bf16.mxu0 %v467
        %798 = vmatmul.mubr.bf16.gmra.mrb[0].mxu0 %v466
        %v799 = vpop.f32.mrb[0].mxu0
        %v800 = vadd.f32 %v735, %v799
        %v801 = vpop.f32.mrb[0].mxu0
        %v802 = vpop.f32.mrb[0].mxu0
        %v803 = vadd.f32 %v738, %v802
        %v804 = vpop.f32.mrb[0].mxu0
        %805 = vdwg.mxu0
        %v806 = vadd.f32 %v316, %v776
        %v807 = vadd.f32 %v317, %v779
        %v808 = vadd.f32 %v318, %v784
        %v809 = vadd.f32 %v319, %v787
        %v810 = vadd.f32 %v320, %v792
        %v811 = vadd.f32 %v321, %v795
        %v812 = vadd.f32 %v322, %v800
        %v813 = vadd.f32 %v323, %v803
        %814 = vst [vmem:[#allocation2] sm:$0xff] %v806
        %815 = vst [vmem:[#allocation2 + $0x8] sm:$0xff] %v807
        %816 = vst [vmem:[#allocation2 + $0x10] sm:$0xff] %v808
        %817 = vst [vmem:[#allocation2 + $0x18] sm:$0xff] %v809
        %818 = vst [vmem:[#allocation2 + $0x20] sm:$0xff] %v810
        %819 = vst [vmem:[#allocation2 + $0x28] sm:$0xff] %v811
        %820 = vst [vmem:[#allocation2 + $0x30] sm:$0xff] %v812
        %821 = vst [vmem:[#allocation2 + $0x38] sm:$0xff] %v813
        %p822 = scmp.eq.s32.totalorder %s21, 1
        // Predicated region
        $region60: #{dis_forward.6} parent=50 // pred_check
          %p823 = pneg %p822
        $region61: #{dis_forward.6} parent=50 // pred_check_branch
          %825 = sbr.rel (%p823) target = $region63
        $region62: #{dis_forward.6} parent=50 // pred_region
          %v826 = vld [vmem:[#allocation2] sm:$0xff]
          %v827 = vld [vmem:[#allocation2 + $0x8] sm:$0xff]
          %v828 = vld [vmem:[#allocation2 + $0x10] sm:$0xff]
          %v829 = vld [vmem:[#allocation2 + $0x18] sm:$0xff]
          %v830 = vld [vmem:[#allocation2 + $0x20] sm:$0xff]
          %v831 = vld [vmem:[#allocation2 + $0x28] sm:$0xff]
          %v832 = vld [vmem:[#allocation2 + $0x30] sm:$0xff]
          %v833 = vld [vmem:[#allocation2 + $0x38] sm:$0xff]
          %v834 = vld [vmem:[%s293] sm:$0x1]
          %v836 = vlaneseq
          %v837 = vshrl.u32 %v836, 7
          %v838 = vsub.s32 0, %v837
          %v839 = vrot.slane %v834, %v838
          %v841 = vadd.f32 %v826, %v839
          %v842 = vadd.f32 %v827, %v839
          %v843 = vadd.f32 %v828, %v839
          %v844 = vadd.f32 %v829, %v839
          %v845 = vadd.f32 %v830, %v839
          %v846 = vadd.f32 %v831, %v839
          %v847 = vadd.f32 %v832, %v839
          %v848 = vadd.f32 %v833, %v839
          %vm849 = vcmp.ge.f32.partialorder %v841, 0.0
          %vm850 = vcmp.ge.f32.partialorder %v842, 0.0
          %vm851 = vcmp.ge.f32.partialorder %v843, 0.0
          %vm852 = vcmp.ge.f32.partialorder %v844, 0.0
          %vm853 = vcmp.ge.f32.partialorder %v845, 0.0
          %vm854 = vcmp.ge.f32.partialorder %v846, 0.0
          %vm855 = vcmp.ge.f32.partialorder %v847, 0.0
          %vm856 = vcmp.ge.f32.partialorder %v848, 0.0
          %v857 = vmul.f32 %v841, 0.2
          %v858 = vmul.f32 %v842, 0.2
          %v859 = vmul.f32 %v843, 0.2
          %v860 = vmul.f32 %v844, 0.2
          %v861 = vmul.f32 %v845, 0.2
          %v862 = vmul.f32 %v846, 0.2
          %v863 = vmul.f32 %v847, 0.2
          %v864 = vmul.f32 %v848, 0.2
          %v865 = vsel %vm849, %v841, %v857
          %v866 = vsel %vm850, %v842, %v858
          %v867 = vsel %vm851, %v843, %v859
          %v868 = vsel %vm852, %v844, %v860
          %v869 = vsel %vm853, %v845, %v861
          %v870 = vsel %vm854, %v846, %v862
          %v871 = vsel %vm855, %v847, %v863
          %v872 = vsel %vm856, %v848, %v864
          %873 = vst [vmem:[%s301] sm:$0xff] %v865
          %874 = vst [vmem:[%s301 + $0x8] sm:$0xff] %v866
          %875 = vst [vmem:[%s301 + $0x10] sm:$0xff] %v867
          %876 = vst [vmem:[%s301 + $0x18] sm:$0xff] %v868
          %877 = vst [vmem:[%s301 + $0x20] sm:$0xff] %v869
          %878 = vst [vmem:[%s301 + $0x28] sm:$0xff] %v870
          %879 = vst [vmem:[%s301 + $0x30] sm:$0xff] %v871
          %880 = vst [vmem:[%s301 + $0x38] sm:$0xff] %v872
        $region63: #{dis_forward.6} parent=50 // pred_fallthru
          _
        %s881 = smul.u32 8, %s19
        %p882 = scmp.lt.s32.totalorder %s881, 7
        %s883 = scalar_select %p882, %s881, 7
        %p884 = scmp.lt.s32.totalorder %s20, 0
        %s885 = scalar_select %p884, %s20, 0
        %s886 = sadd.s32 %s885, %s883
        %s887 = smul.addr %s886, 8
        %s888 = scalar_lea.vmem %s3, %s887
        // Predicated region
        $region64: #{dis_forward.6} parent=50 // pred_check
          %p889 = pneg %p135
        $region65: #{dis_forward.6} parent=50 // pred_check_branch
          %891 = sbr.rel (%p889) target = $region67
        $region66: #{dis_forward.6} parent=50 // pred_region
          %s892 = smul.u32 8, %s19
        $region67: #{dis_forward.6} parent=50 // pred_fallthru
          _
        // Predicated region
        $region68: #{dis_forward.6} parent=50 // pred_check
          %p893 = pneg %p135
        $region69: #{dis_forward.6} parent=50 // pred_check_branch
          %895 = sbr.rel (%p893) target = $region71
        $region70: #{dis_forward.6} parent=50 // pred_region
          %s896 = smul.u32 8, %s19
          %p897 = scmp.lt.s32.totalorder %s896, 7
          %s898 = scalar_select %p897, %s896, 7
          %p899 = scmp.lt.s32.totalorder %s20, 0
          %s900 = scalar_select %p899, %s20, 0
          %s901 = sadd.s32 %s900, %s898
          %s902 = smul.addr %s901, 8
          %s903 = scalar_lea.vmem %s3, %s902
        $region71: #{dis_forward.6} parent=50 // pred_fallthru
          _
      $region51: #{dis_forward.6} parent=5 // pred_fallthru
        _
      %p904 = scmp.le.s32.totalorder 2, %s9
      // Predicated region
      $region72: #{dis_forward.6} parent=5 // pred_check
        %p905 = pneg %p904
      $region73: #{dis_forward.6} parent=5 // pred_check_branch
        %907 = sbr.rel (%p905) target = $region75
      $region74: #{dis_forward.6} parent=5 // pred_region
        %s908 = ssub.s32 %s9, 2
      $region75: #{dis_forward.6} parent=5 // pred_fallthru
        _
    $region6: #{dis_forward.6} parent=1 // loop_footer
      %s13 = sadd.s32 1, %s9
    $region7: #{dis_forward.6} parent=1 // loop_footer_branch
      %8 = sbr.rel target = $region3
    $region8: #{dis_forward.6} parent=1 // loop_exit
      _

// kernel: dis_forward.7
$region0: #{dis_forward.7}
  #allocation0 [shape = 'u32[]', space=smem, size = 0x4, offset = 0x4, fixed_abs, tag = 'smem constant byte address 0x4 - core index']
  #allocation1 [shape = 'u32[144,128]{1,0:T(1,128)}', space=vmem, size = 0x12000, scoped, tag = 'internal scratch']
  #allocation2 [shape = 'f32[32,256]{1,0:T(8,128)}', space=vmem, size = 0x8000, scoped, tag = 'scratch operand']
  %s0 = inlined_call_operand.vmem [shape: bf16[32,2048], index: 0, kind: input, shape index: {}]
  %s1 = inlined_call_operand.vmem [shape: bf16[2048,256], index: 1, kind: input, shape index: {}]
  %s2 = inlined_call_operand.vmem [shape: f32[1,256], index: 2, kind: input, shape index: {}]
  %s3 = inlined_call_operand.vmem [shape: f32[32,256], index: 3, kind: output, shape index: {}]
  %s4 = sld [smem:[#allocation0]]
  $region76: #{dis_forward.7} parent=0
    _
  %s6 = ssub.s32 1, %s4
  %s7 = scalar_select 0, %s6, %s4
  $region1: #{dis_forward.7} parent=0
    #allocation3 [shape = 'u8[65536]{0}', space=vmem, size = 0x10000, scoped, tag = 'input window, operand 0']
    loop: start=0, step=1, limit=6
    $region2: #{dis_forward.7} parent=1 // loop_pre_header
      _
    $region3: #{dis_forward.7} parent=1 // loop_header
      %s9 = sphi 0, %s13
      %p10 = scmp.ge.s32.totalorder %s9, 6
      %s16 = sphi 0, %s35
      %s17 = sphi 0, %s31
      %s18 = sphi 0, %s27
      %s19 = sphi 0, %s16
      %s20 = sphi 0, %s17
      %s21 = sphi 0, %s18
      %s22 = sphi 0, %s19
      %s23 = sphi 0, %s20
      %s24 = sphi 0, %s21
      %s40 = sphi 0, %s42
      %s43 = sphi 0, %s40
      %s44 = sphi 0, %s43
      %s60 = sphi 0, %s44
      %s68 = sphi 0, %s70
      %s71 = sphi 0, %s68
      %s72 = sphi 0, %s71
      %s88 = sphi 0, %s72
      %s94 = sphi 0, %s96
      %s97 = sphi 0, %s94
      %s98 = sphi 0, %s97
      %s114 = sphi 0, %s98
      %s122 = sphi 0, %s124
      %s125 = sphi 0, %s122
      %s126 = sphi 0, %s125
      %s142 = sphi 0, %s126
    $region4: #{dis_forward.7} parent=1 // loop_header_branch
      %12 = sbr.rel (%p10) target = $region8
    $region5: #{dis_forward.7} parent=1 // loop_body
      %s14 = ssub.s32 %s9, 1
      %s15 = ssub.s32 %s9, 2
      %s25 = sadd.s32 1, %s18
      %p26 = scmp.ge.s32.totalorder %s25, 4
      %s27 = scalar_select %p26, 0, %s25
      %s28 = sadd.s32 1, %s17
      %s29 = scalar_select %p26, %s28, %s17
      %p30 = scmp.ge.s32.totalorder %s29, 1
      %s31 = scalar_select %p30, 0, %s29
      %s32 = sadd.s32 1, %s16
      %s33 = scalar_select %p30, %s32, %s16
      %p34 = scmp.ge.s32.totalorder %s33, 1
      %s35 = scalar_select %p34, 0, %s33
      %s36 = ssub.s32 %s16, %s35
      %s37 = ssub.s32 %s18, %s27
      %s38 = sor.u32 %s36, %s37
      %p39 = scmp.eq.s32.totalorder %s38, 0
      %s41 = sadd.s32 %s40, 1
      %s42 = scalar_select %p39, %s40, %s41
      %p45 = pneg %p39
      %p46 = scmp.eq.s32.totalorder %s9, 3
      %p47 = por %p45, %p46
      %p48 = scmp.ne.s32.totalorder %s40, %s43
      %p49 = scmp.eq.s32.totalorder %s9, 0
      %p50 = por %p48, %p49
      %p51 = scmp.ne.s32.totalorder %s40, %s43
      %p52 = scmp.eq.s32.totalorder %s14, 3
      %p53 = por %p51, %p52
      %p54 = scmp.ne.s32.totalorder %s43, %s44
      %p55 = scmp.eq.s32.totalorder %s14, 0
      %p56 = por %p54, %p55
      %p57 = scmp.ne.s32.totalorder %s43, %s44
      %p58 = scmp.eq.s32.totalorder %s15, 3
      %p59 = por %p57, %p58
      %p61 = scmp.ne.s32.totalorder %s44, %s60
      %p62 = scmp.eq.s32.totalorder %s15, 0
      %p63 = por %p61, %p62
      %s64 = ssub.s32 %s18, %s27
      %s65 = ssub.s32 %s17, %s31
      %s66 = sor.u32 %s64, %s65
      %p67 = scmp.eq.s32.totalorder %s66, 0
      %s69 = sadd.s32 %s68, 1
      %s70 = scalar_select %p67, %s68, %s69
      %p73 = pneg %p67
      %p74 = scmp.eq.s32.totalorder %s9, 3
      %p75 = por %p73, %p74
      %p76 = scmp.ne.s32.totalorder %s68, %s71
      %p77 = scmp.eq.s32.totalorder %s9, 0
      %p78 = por %p76, %p77
      %p79 = scmp.ne.s32.totalorder %s68, %s71
      %p80 = scmp.eq.s32.totalorder %s14, 3
      %p81 = por %p79, %p80
      %p82 = scmp.ne.s32.totalorder %s71, %s72
      %p83 = scmp.eq.s32.totalorder %s14, 0
      %p84 = por %p82, %p83
      %p85 = scmp.ne.s32.totalorder %s71, %s72
      %p86 = scmp.eq.s32.totalorder %s15, 3
      %p87 = por %p85, %p86
      %p89 = scmp.ne.s32.totalorder %s72, %s88
      %p90 = scmp.eq.s32.totalorder %s15, 0
      %p91 = por %p89, %p90
      %s92 = ssub.s32 %s17, %s31
      %p93 = scmp.eq.s32.totalorder %s92, 0
      %s95 = sadd.s32 %s94, 1
      %s96 = scalar_select %p93, %s94, %s95
      %p99 = pneg %p93
      %p100 = scmp.eq.s32.totalorder %s9, 3
      %p101 = por %p99, %p100
      %p102 = scmp.ne.s32.totalorder %s94, %s97
      %p103 = scmp.eq.s32.totalorder %s9, 0
      %p104 = por %p102, %p103
      %p105 = scmp.ne.s32.totalorder %s94, %s97
      %p106 = scmp.eq.s32.totalorder %s14, 3
      %p107 = por %p105, %p106
      %p108 = scmp.ne.s32.totalorder %s97, %s98
      %p109 = scmp.eq.s32.totalorder %s14, 0
      %p110 = por %p108, %p109
      %p111 = scmp.ne.s32.totalorder %s97, %s98
      %p112 = scmp.eq.s32.totalorder %s15, 3
      %p113 = por %p111, %p112
      %p115 = scmp.ne.s32.totalorder %s98, %s114
      %p116 = scmp.eq.s32.totalorder %s15, 0
      %p117 = por %p115, %p116
      %s118 = ssub.s32 %s16, %s35
      %s119 = ssub.s32 %s17, %s31
      %s120 = sor.u32 %s118, %s119
      %p121 = scmp.eq.s32.totalorder %s120, 0
      %s123 = sadd.s32 %s122, 1
      %s124 = scalar_select %p121, %s122, %s123
      %p127 = pneg %p121
      %p128 = scmp.eq.s32.totalorder %s9, 3
      %p129 = por %p127, %p128
      %p130 = scmp.ne.s32.totalorder %s122, %s125
      %p131 = scmp.eq.s32.totalorder %s9, 0
      %p132 = por %p130, %p131
      %p133 = scmp.ne.s32.totalorder %s122, %s125
      %p134 = scmp.eq.s32.totalorder %s14, 3
      %p135 = por %p133, %p134
      %p136 = scmp.ne.s32.totalorder %s125, %s126
      %p137 = scmp.eq.s32.totalorder %s14, 0
      %p138 = por %p136, %p137
      %p139 = scmp.ne.s32.totalorder %s125, %s126
      %p140 = scmp.eq.s32.totalorder %s15, 3
      %p141 = por %p139, %p140
      %p143 = scmp.ne.s32.totalorder %s126, %s142
      %p144 = scmp.eq.s32.totalorder %s15, 0
      %p145 = por %p143, %p144
      %p146 = scmp.le.s32.totalorder 1, %s9
      %p147 = scmp.lt.s32.totalorder %s9, 5
      %p148 = pnand %p146, %p147
      %p149 = pneg %p148
      // Predicated region
      $region9: #{dis_forward.7} parent=5 // pred_check
        _
      $region10: #{dis_forward.7} parent=5 // pred_check_branch
        %151 = sbr.rel (%p148) target = $region12
      $region11: #{dis_forward.7} parent=5 // pred_region
        %s152 = ssub.s32 %s9, 1
        // Predicated region
        $region13: #{dis_forward.7} parent=11 // pred_check
          %p153 = pneg %p110
        $region14: #{dis_forward.7} parent=11 // pred_check_branch
          %155 = sbr.rel (%p153) target = $region16
        $region15: #{dis_forward.7} parent=11 // pred_region
          %s156 = smul.u32 2, %s20
          %p157 = scmp.lt.s32.totalorder %s156, 1
          %s158 = scalar_select %p157, %s156, 1
          %s159 = scalar_lea.vmem %s2, %s158
          %s160 = smul.u32 2, %s20
        $region16: #{dis_forward.7} parent=11 // pred_fallthru
          _
      $region12: #{dis_forward.7} parent=5 // pred_fallthru
        _
      %p161 = scmp.lt.s32.totalorder %s9, 4
      // Predicated region
      $region17: #{dis_forward.7} parent=5 // pred_check
        %p162 = pneg %p161
      $region18: #{dis_forward.7} parent=5 // pred_check_branch
        %164 = sbr.rel (%p162) target = $region20
      $region19: #{dis_forward.7} parent=5 // pred_region
        // Predicated region
        $region21: #{dis_forward.7} parent=19 // pred_check
          %p165 = pneg %p50
        $region22: #{dis_forward.7} parent=19 // pred_check_branch
          %167 = sbr.rel (%p165) target = $region24
        $region23: #{dis_forward.7} parent=19 // pred_region
          %s168 = sand.u32 %s40, 1
          %s169 = sand.u32 %s40, 1
          %s170 = smul.addr %s169, 64
          %s171 = scalar_lea.vmem [#allocation3], %s170
          %s172 = smul.u32 4, %s16
          %s173 = smul.u32 4, %s18
          %s174 = smul.addr %s172, 16
          %s175 = sadd.s32 %s173, %s174
          %s176 = smul.addr %s175, 4
          %s177 = scalar_lea.vmem %s0, %s176
          // Predicated region
          $region25: #{dis_forward.7} parent=23 // pred_check
            _
          $region26: #{dis_forward.7} parent=23 // pred_check_branch
            %179 = sbr.rel (0) target = $region28
          $region27: #{dis_forward.7} parent=23 // pred_region
            // Predicated region
            $region29: #{dis_forward.7} parent=27 // pred_check
              _
            $region30: #{dis_forward.7} parent=27 // pred_check_branch
              %181 = sbr.rel (0) target = $region32
            $region31: #{dis_forward.7} parent=27 // pred_region
              loop: start=0, step=1, limit=1
              $region33: #{dis_forward.7} parent=31 // loop_pre_header
                _
              $region34: #{dis_forward.7} parent=31 // loop_header
                %s183 = sphi 0, %s187
                %p184 = scmp.ge.s32.totalorder %s183, 1
                %s188 = sphi %s177, %s177
                %s189 = sphi %s171, %s171
              $region35: #{dis_forward.7} parent=31 // loop_header_branch
                %186 = sbr.rel (%p184) target = $region39
              $region36: #{dis_forward.7} parent=31 // loop_body
                %v190 = vld [vmem:[%s188] sm:$0xff]
                %191 = vst [vmem:[%s189] sm:$0xff] %v190
                %v192 = vld [vmem:[%s188 + $0x8] sm:$0xff]
                %193 = vst [vmem:[%s189 + $0x8] sm:$0xff] %v192
                %v194 = vld [vmem:[%s188 + $0x40] sm:$0xff]
                %195 = vst [vmem:[%s189 + $0x10] sm:$0xff] %v194
                %v196 = vld [vmem:[%s188 + $0x48] sm:$0xff]
                %197 = vst [vmem:[%s189 + $0x18] sm:$0xff] %v196
                %v198 = vld [vmem:[%s188 + $0x80] sm:$0xff]
                %199 = vst [vmem:[%s189 + $0x20] sm:$0xff] %v198
                %v200 = vld [vmem:[%s188 + $0x88] sm:$0xff]
                %201 = vst [vmem:[%s189 + $0x28] sm:$0xff] %v200
                %v202 = vld [vmem:[%s188 + $0xc0] sm:$0xff]
                %203 = vst [vmem:[%s189 + $0x30] sm:$0xff] %v202
                %v204 = vld [vmem:[%s188 + $0xc8] sm:$0xff]
                %205 = vst [vmem:[%s189 + $0x38] sm:$0xff] %v204
              $region37: #{dis_forward.7} parent=31 // loop_footer
                %s187 = sadd.s32 1, %s183
              $region38: #{dis_forward.7} parent=31 // loop_footer_branch
                %182 = sbr.rel target = $region34
              $region39: #{dis_forward.7} parent=31 // loop_exit
                _
            $region32: #{dis_forward.7} parent=27 // pred_fallthru
              _
            // Predicated region
            $region40: #{dis_forward.7} parent=27 // pred_check
              _
            $region41: #{dis_forward.7} parent=27 // pred_check_branch
              %207 = sbr.rel target = $region43
            $region42: #{dis_forward.7} parent=27 // pred_region
              _
            $region43: #{dis_forward.7} parent=27 // pred_fallthru
              _
          $region28: #{dis_forward.7} parent=23 // pred_fallthru
            _
          %208 = vnop
        $region24: #{dis_forward.7} parent=19 // pred_fallthru
          _
        // Predicated region
        $region44: #{dis_forward.7} parent=19 // pred_check
          %p209 = pneg %p78
        $region45: #{dis_forward.7} parent=19 // pred_check_branch
          %211 = sbr.rel (%p209) target = $region47
        $region46: #{dis_forward.7} parent=19 // pred_region
          %s212 = smul.u32 64, %s18
          %s213 = smul.u32 2, %s17
          %p214 = scmp.lt.s32.totalorder %s212, 255
          %s215 = scalar_select %p214, %s212, 255
          %p216 = scmp.lt.s32.totalorder %s213, 1
          %s217 = scalar_select %p216, %s213, 1
          %s218 = smul.addr %s215, 2
          %s219 = sadd.s32 %s217, %s218
          %s220 = smul.addr %s219, 4
          %s221 = scalar_lea.vmem %s1, %s220
          %s222 = smul.u32 64, %s18
          %s223 = smul.u32 2, %s17
        $region47: #{dis_forward.7} parent=19 // pred_fallthru
          _
      $region20: #{dis_forward.7} parent=5 // pred_fallthru
        _
      %p224 = scmp.le.s32.totalorder 1, %s9
      %p225 = scmp.lt.s32.totalorder %s9, 5
      %p226 = pnand %p224, %p225
      %p227 = pneg %p226
      // Predicated region
      $region48: #{dis_forward.7} parent=5 // pred_check
        _
      $region49: #{dis_forward.7} parent=5 // pred_check_branch
        %229 = sbr.rel (%p226) target = $region51
      $region50: #{dis_forward.7} parent=5 // pred_region
        %s230 = ssub.s32 %s9, 1
        %s231 = sand.u32 %s43, 1
        %s232 = sand.u32 %s43, 1
        %s233 = smul.addr %s232, 64
        %s234 = scalar_lea.vmem [#allocation3], %s233
        // Predicated region
        $region52: #{dis_forward.7} parent=50 // pred_check
          %p235 = pneg %p56
        $region53: #{dis_forward.7} parent=50 // pred_check_branch
          %237 = sbr.rel (%p235) target = $region55
        $region54: #{dis_forward.7} parent=50 // pred_region
          _
        $region55: #{dis_forward.7} parent=50 // pred_fallthru
          _
        %s238 = sand.u32 %s43, 1
        %s239 = sand.u32 %s43, 1
        %s240 = smul.addr %s239, 64
        %s241 = scalar_lea.vmem [#allocation3], %s240
        %p242 = pneg %p56
        %p243 = pneg %p53
        %s244 = smul.u32 64, %s21
        %s245 = smul.u32 2, %s20
        %p246 = scmp.lt.s32.totalorder %s244, 255
        %s247 = scalar_select %p246, %s244, 255
        %p248 = scmp.lt.s32.totalorder %s245, 1
        %s249 = scalar_select %p248, %s245, 1
        %s250 = smul.addr %s247, 2
        %s251 = sadd.s32 %s249, %s250
        %s252 = smul.addr %s251, 4
        %s253 = scalar_lea.vmem %s1, %s252
        %p254 = pneg %p84
        %p255 = pneg %p81
        %s256 = smul.u32 2, %s20
        %p257 = scmp.lt.s32.totalorder %s256, 1
        %s258 = scalar_select %p257, %s256, 1
        %s259 = scalar_lea.vmem %s2, %s258
        %p260 = pneg %p110
        %p261 = pneg %p107
        %p262 = pneg %p138
        %p263 = pneg %p135
        %s264 = smul.u32 4, %s19
        %s265 = smul.u32 2, %s20
        %p266 = scmp.lt.s32.totalorder %s264, 3
        %s267 = scalar_select %p266, %s264, 3
        %p268 = scmp.lt.s32.totalorder %s265, 1
        %s269 = scalar_select %p268, %s265, 1
        %s270 = smul.addr %s267, 2
        %s271 = sadd.s32 %s269, %s270
        %s272 = smul.addr %s271, 8
        %s273 = scalar_lea.vmem %s3, %s272
        %s274 = smul.u32 4, %s19
        %s275 = smul.u32 4, %s21
        %s276 = smul.u32 64, %s21
        %s277 = smul.u32 2, %s20
        %p278 = scmp.lt.s32.totalorder %s276, 255
        %s279 = scalar_select %p278, %s276, 255
        %p280 = scmp.lt.s32.totalorder %s277, 1
        %s281 = scalar_select %p280, %s277, 1
        %s282 = smul.addr %s279, 2
        %s283 = sadd.s32 %s281, %s282
        %s284 = smul.addr %s283, 4
        %s285 = scalar_lea.vmem %s1, %s284
        %s286 = smul.u32 64, %s21
        %s287 = smul.u32 2, %s20
        %s288 = smul.u32 2, %s20
        %p289 = scmp.lt.s32.totalorder %s288, 1
        %s290 = scalar_select %p289, %s288, 1
        %s291 = scalar_lea.vmem %s2, %s290
        %s292 = smul.u32 2, %s20
        %s293 = smul.u32 4, %s19
        %s294 = smul.u32 2, %s20
        %p295 = scmp.lt.s32.totalorder %s293, 3
        %s296 = scalar_select %p295, %s293, 3
        %p297 = scmp.lt.s32.totalorder %s294, 1
        %s298 = scalar_select %p297, %s294, 1
        %s299 = smul.addr %s296, 2
        %s300 = sadd.s32 %s298, %s299
        %s301 = smul.addr %s300, 8
        %s302 = scalar_lea.vmem %s3, %s301
        %s303 = smul.u32 4, %s19
        %s304 = smul.u32 2, %s20
        %p305 = scmp.eq.s32.totalorder %s21, 0
        // Predicated region
        $region56: #{dis_forward.7} parent=50 // pred_check
          %p306 = pneg %p305
        $region57: #{dis_forward.7} parent=50 // pred_check_branch
          %308 = sbr.rel (%p306) target = $region59
        $region58: #{dis_forward.7} parent=50 // pred_region
          %309 = vst [vmem:[#allocation2] sm:$0xff] 0.0
          %310 = vst [vmem:[#allocation2 + $0x8] sm:$0xff] 0.0
          %311 = vst [vmem:[#allocation2 + $0x10] sm:$0xff] 0.0
          %312 = vst [vmem:[#allocation2 + $0x18] sm:$0xff] 0.0
          %313 = vst [vmem:[#allocation2 + $0x20] sm:$0xff] 0.0
          %314 = vst [vmem:[#allocation2 + $0x28] sm:$0xff] 0.0
          %315 = vst [vmem:[#allocation2 + $0x30] sm:$0xff] 0.0
          %316 = vst [vmem:[#allocation2 + $0x38] sm:$0xff] 0.0
        $region59: #{dis_forward.7} parent=50 // pred_fallthru
          _
        %v317 = vld [vmem:[#allocation2] sm:$0xff]
        %v318 = vld [vmem:[#allocation2 + $0x8] sm:$0xff]
        %v319 = vld [vmem:[#allocation2 + $0x10] sm:$0xff]
        %v320 = vld [vmem:[#allocation2 + $0x18] sm:$0xff]
        %v321 = vld [vmem:[#allocation2 + $0x20] sm:$0xff]
        %v322 = vld [vmem:[#allocation2 + $0x28] sm:$0xff]
        %v323 = vld [vmem:[#allocation2 + $0x30] sm:$0xff]
        %v324 = vld [vmem:[#allocation2 + $0x38] sm:$0xff]
        %v325 = vld [vmem:[%s234] sm:$0xff]
        %v326 = vld [vmem:[%s234 + $0x8] sm:$0xff]
        %v327 = vld [vmem:[%s234 + $0x10] sm:$0xff]
        %v328 = vld [vmem:[%s234 + $0x18] sm:$0xff]
        %v329 = vld [vmem:[%s234 + $0x20] sm:$0xff]
        %v330 = vld [vmem:[%s234 + $0x28] sm:$0xff]
        %v331 = vld [vmem:[%s234 + $0x30] sm:$0xff]
        %v332 = vld [vmem:[%s234 + $0x38] sm:$0xff]
        %v333 = vld [vmem:[%s285] sm:$0xff]
        %v334 = vld [vmem:[%s285 + $0x8] sm:$0xff]
        %v335 = vld [vmem:[%s285 + $0x10] sm:$0xff]
        %v336 = vld [vmem:[%s285 + $0x18] sm:$0xff]
        %v337 = vld [vmem:[%s285 + $0x20] sm:$0xff]
        %v338 = vld [vmem:[%s285 + $0x28] sm:$0xff]
        %v339 = vld [vmem:[%s285 + $0x30] sm:$0xff]
        %v340 = vld [vmem:[%s285 + $0x38] sm:$0xff]
        %v341 = vld [vmem:[%s285 + $0x40] sm:$0xff]
        %v342 = vld [vmem:[%s285 + $0x48] sm:$0xff]
        %v343 = vld [vmem:[%s285 + $0x50] sm:$0xff]
        %v344 = vld [vmem:[%s285 + $0x58] sm:$0xff]
        %v345 = vld [vmem:[%s285 + $0x60] sm:$0xff]
        %v346 = vld [vmem:[%s285 + $0x68] sm:$0xff]
        %v347 = vld [vmem:[%s285 + $0x70] sm:$0xff]
        %v348 = vld [vmem:[%s285 + $0x78] sm:$0xff]
        %v349 = vld [vmem:[%s285 + $0x80] sm:$0xff]
        %v350 = vld [vmem:[%s285 + $0x88] sm:$0xff]
        %v351 = vld [vmem:[%s285 + $0x90] sm:$0xff]
        %v352 = vld [vmem:[%s285 + $0x98] sm:$0xff]
        %v353 = vld [vmem:[%s285 + $0xa0] sm:$0xff]
        %v354 = vld [vmem:[%s285 + $0xa8] sm:$0xff]
        %v355 = vld [vmem:[%s285 + $0xb0] sm:$0xff]
        %v356 = vld [vmem:[%s285 + $0xb8] sm:$0xff]
        %v357 = vld [vmem:[%s285 + $0xc0] sm:$0xff]
        %v358 = vld [vmem:[%s285 + $0xc8] sm:$0xff]
        %v359 = vld [vmem:[%s285 + $0xd0] sm:$0xff]
        %v360 = vld [vmem:[%s285 + $0xd8] sm:$0xff]
        %v361 = vld [vmem:[%s285 + $0xe0] sm:$0xff]
        %v362 = vld [vmem:[%s285 + $0xe8] sm:$0xff]
        %v363 = vld [vmem:[%s285 + $0xf0] sm:$0xff]
        %v364 = vld [vmem:[%s285 + $0xf8] sm:$0xff]
        %v365 = vld [vmem:[%s285 + $0x100] sm:$0xff]
        %v366 = vld [vmem:[%s285 + $0x108] sm:$0xff]
        %v367 = vld [vmem:[%s285 + $0x110] sm:$0xff]
        %v368 = vld [vmem:[%s285 + $0x118] sm:$0xff]
        %v369 = vld [vmem:[%s285 + $0x120] sm:$0xff]
        %v370 = vld [vmem:[%s285 + $0x128] sm:$0xff]
        %v371 = vld [vmem:[%s285 + $0x130] sm:$0xff]
        %v372 = vld [vmem:[%s285 + $0x138] sm:$0xff]
        %v373 = vld [vmem:[%s285 + $0x140] sm:$0xff]
        %v374 = vld [vmem:[%s285 + $0x148] sm:$0xff]
        %v375 = vld [vmem:[%s285 + $0x150] sm:$0xff]
        %v376 = vld [vmem:[%s285 + $0x158] sm:$0xff]
        %v377 = vld [vmem:[%s285 + $0x160] sm:$0xff]
        %v378 = vld [vmem:[%s285 + $0x168] sm:$0xff]
        %v379 = vld [vmem:[%s285 + $0x170] sm:$0xff]
        %v380 = vld [vmem:[%s285 + $0x178] sm:$0xff]
        %v381 = vld [vmem:[%s285 + $0x180] sm:$0xff]
        %v382 = vld [vmem:[%s285 + $0x188] sm:$0xff]
        %v383 = vld [vmem:[%s285 + $0x190] sm:$0xff]
        %v384 = vld [vmem:[%s285 + $0x198] sm:$0xff]
        %v385 = vld [vmem:[%s285 + $0x1a0] sm:$0xff]
        %v386 = vld [vmem:[%s285 + $0x1a8] sm:$0xff]
        %v387 = vld [vmem:[%s285 + $0x1b0] sm:$0xff]
        %v388 = vld [vmem:[%s285 + $0x1b8] sm:$0xff]
        %v389 = vld [vmem:[%s285 + $0x1c0] sm:$0xff]
        %v390 = vld [vmem:[%s285 + $0x1c8] sm:$0xff]
        %v391 = vld [vmem:[%s285 + $0x1d0] sm:$0xff]
        %v392 = vld [vmem:[%s285 + $0x1d8] sm:$0xff]
        %v393 = vld [vmem:[%s285 + $0x1e0] sm:$0xff]
        %v394 = vld [vmem:[%s285 + $0x1e8] sm:$0xff]
        %v395 = vld [vmem:[%s285 + $0x1f0] sm:$0xff]
        %v396 = vld [vmem:[%s285 + $0x1f8] sm:$0xff]
        %v405 = vunpack.c.l.b16 %v325
        %v406 = vunpack.c.h.b16 %v325
        %v407 = vunpack.c.l.b16 %v326
        %v408 = vunpack.c.h.b16 %v326
        %v409 = vunpack.c.l.b16 %v327
        %v410 = vunpack.c.h.b16 %v327
        %v411 = vunpack.c.l.b16 %v328
        %v412 = vunpack.c.h.b16 %v328
        %v413 = vunpack.c.l.b16 %v329
        %v414 = vunpack.c.h.b16 %v329
        %v415 = vunpack.c.l.b16 %v330
        %v416 = vunpack.c.h.b16 %v330
        %v417 = vunpack.c.l.b16 %v331
        %v418 = vunpack.c.h.b16 %v331
        %v419 = vunpack.c.l.b16 %v332
        %v420 = vunpack.c.h.b16 %v332
        %v421 = vpack.c.b16 %v409, %v405
        %v422 = vpack.c.b16 %v410, %v406
        %v423 = vpack.c.b16 %v411, %v407
        %v424 = vpack.c.b16 %v412, %v408
        %v425 = vpack.c.b16 %v417, %v413
        %v426 = vpack.c.b16 %v418, %v414
        %v427 = vpack.c.b16 %v419, %v415
        %v428 = vpack.c.b16 %v420, %v416
        %v501 = vunpack.c.l.b16 %v333
        %v502 = vunpack.c.h.b16 %v333
        %v503 = vunpack.c.l.b16 %v334
        %v504 = vunpack.c.h.b16 %v334
        %v505 = vunpack.c.l.b16 %v335
        %v506 = vunpack.c.h.b16 %v335
        %v507 = vunpack.c.l.b16 %v336
        %v508 = vunpack.c.h.b16 %v336
        %v509 = vunpack.c.l.b16 %v337
        %v510 = vunpack.c.h.b16 %v337
        %v511 = vunpack.c.l.b16 %v338
        %v512 = vunpack.c.h.b16 %v338
        %v513 = vunpack.c.l.b16 %v339
        %v514 = vunpack.c.h.b16 %v339
        %v515 = vunpack.c.l.b16 %v340
        %v516 = vunpack.c.h.b16 %v340
        %v517 = vunpack.c.l.b16 %v341
        %v518 = vunpack.c.h.b16 %v341
        %v519 = vunpack.c.l.b16 %v342
        %v520 = vunpack.c.h.b16 %v342
        %v521 = vunpack.c.l.b16 %v343
        %v522 = vunpack.c.h.b16 %v343
        %v523 = vunpack.c.l.b16 %v344
        %v524 = vunpack.c.h.b16 %v344
        %v525 = vunpack.c.l.b16 %v345
        %v526 = vunpack.c.h.b16 %v345
        %v527 = vunpack.c.l.b16 %v346
        %v528 = vunpack.c.h.b16 %v346
        %v529 = vunpack.c.l.b16 %v347
        %v530 = vunpack.c.h.b16 %v347
        %v531 = vunpack.c.l.b16 %v348
        %v532 = vunpack.c.h.b16 %v348
        %v533 = vunpack.c.l.b16 %v349
        %v534 = vunpack.c.h.b16 %v349
        %v535 = vunpack.c.l.b16 %v350
        %v536 = vunpack.c.h.b16 %v350
        %v537 = vunpack.c.l.b16 %v351
        %v538 = vunpack.c.h.b16 %v351
        %v539 = vunpack.c.l.b16 %v352
        %v540 = vunpack.c.h.b16 %v352
        %v541 = vunpack.c.l.b16 %v353
        %v542 = vunpack.c.h.b16 %v353
        %v543 = vunpack.c.l.b16 %v354
        %v544 = vunpack.c.h.b16 %v354
        %v545 = vunpack.c.l.b16 %v355
        %v546 = vunpack.c.h.b16 %v355
        %v547 = vunpack.c.l.b16 %v356
        %v548 = vunpack.c.h.b16 %v356
        %v549 = vunpack.c.l.b16 %v357
        %v550 = vunpack.c.h.b16 %v357
        %v551 = vunpack.c.l.b16 %v358
        %v552 = vunpack.c.h.b16 %v358
        %v553 = vunpack.c.l.b16 %v359
        %v554 = vunpack.c.h.b16 %v359
        %v555 = vunpack.c.l.b16 %v360
        %v556 = vunpack.c.h.b16 %v360
        %v557 = vunpack.c.l.b16 %v361
        %v558 = vunpack.c.h.b16 %v361
        %v559 = vunpack.c.l.b16 %v362
        %v560 = vunpack.c.h.b16 %v362
        %v561 = vunpack.c.l.b16 %v363
        %v562 = vunpack.c.h.b16 %v363
        %v563 = vunpack.c.l.b16 %v364
        %v564 = vunpack.c.h.b16 %v364
        %v565 = vunpack.c.l.b16 %v365
        %v566 = vunpack.c.h.b16 %v365
        %v567 = vunpack.c.l.b16 %v366
        %v568 = vunpack.c.h.b16 %v366
        %v569 = vunpack.c.l.b16 %v367
        %v570 = vunpack.c.h.b16 %v367
        %v571 = vunpack.c.l.b16 %v368
        %v572 = vunpack.c.h.b16 %v368
        %v573 = vunpack.c.l.b16 %v369
        %v574 = vunpack.c.h.b16 %v369
        %v575 = vunpack.c.l.b16 %v370
        %v576 = vunpack.c.h.b16 %v370
        %v577 = vunpack.c.l.b16 %v371
        %v578 = vunpack.c.h.b16 %v371
        %v579 = vunpack.c.l.b16 %v372
        %v580 = vunpack.c.h.b16 %v372
        %v581 = vunpack.c.l.b16 %v373
        %v582 = vunpack.c.h.b16 %v373
        %v583 = vunpack.c.l.b16 %v374
        %v584 = vunpack.c.h.b16 %v374
        %v585 = vunpack.c.l.b16 %v375
        %v586 = vunpack.c.h.b16 %v375
        %v587 = vunpack.c.l.b16 %v376
        %v588 = vunpack.c.h.b16 %v376
        %v589 = vunpack.c.l.b16 %v377
        %v590 = vunpack.c.h.b16 %v377
        %v591 = vunpack.c.l.b16 %v378
        %v592 = vunpack.c.h.b16 %v378
        %v593 = vunpack.c.l.b16 %v379
        %v594 = vunpack.c.h.b16 %v379
        %v595 = vunpack.c.l.b16 %v380
        %v596 = vunpack.c.h.b16 %v380
        %v597 = vunpack.c.l.b16 %v381
        %v598 = vunpack.c.h.b16 %v381
        %v599 = vunpack.c.l.b16 %v382
        %v600 = vunpack.c.h.b16 %v382
        %v601 = vunpack.c.l.b16 %v383
        %v602 = vunpack.c.h.b16 %v383
        %v603 = vunpack.c.l.b16 %v384
        %v604 = vunpack.c.h.b16 %v384
        %v605 = vunpack.c.l.b16 %v385
        %v606 = vunpack.c.h.b16 %v385
        %v607 = vunpack.c.l.b16 %v386
        %v608 = vunpack.c.h.b16 %v386
        %v609 = vunpack.c.l.b16 %v387
        %v610 = vunpack.c.h.b16 %v387
        %v611 = vunpack.c.l.b16 %v388
        %v612 = vunpack.c.h.b16 %v388
        %v613 = vunpack.c.l.b16 %v389
        %v614 = vunpack.c.h.b16 %v389
        %v615 = vunpack.c.l.b16 %v390
        %v616 = vunpack.c.h.b16 %v390
        %v617 = vunpack.c.l.b16 %v391
        %v618 = vunpack.c.h.b16 %v391
        %v619 = vunpack.c.l.b16 %v392
        %v620 = vunpack.c.h.b16 %v392
        %v621 = vunpack.c.l.b16 %v393
        %v622 = vunpack.c.h.b16 %v393
        %v623 = vunpack.c.l.b16 %v394
        %v624 = vunpack.c.h.b16 %v394
        %v625 = vunpack.c.l.b16 %v395
        %v626 = vunpack.c.h.b16 %v395
        %v627 = vunpack.c.l.b16 %v396
        %v628 = vunpack.c.h.b16 %v396
        %v629 = vpack.c.b16 %v503, %v501
        %v630 = vpack.c.b16 %v504, %v502
        %v631 = vpack.c.b16 %v507, %v505
        %v632 = vpack.c.b16 %v508, %v506
        %v633 = vpack.c.b16 %v511, %v509
        %v634 = vpack.c.b16 %v512, %v510
        %v635 = vpack.c.b16 %v515, %v513
        %v636 = vpack.c.b16 %v516, %v514
        %v637 = vpack.c.b16 %v519, %v517
        %v638 = vpack.c.b16 %v520, %v518
        %v639 = vpack.c.b16 %v523, %v521
        %v640 = vpack.c.b16 %v524, %v522
        %v641 = vpack.c.b16 %v527, %v525
        %v642 = vpack.c.b16 %v528, %v526
        %v643 = vpack.c.b16 %v531, %v529
        %v644 = vpack.c.b16 %v532, %v530
        %v645 = vpack.c.b16 %v535, %v533
        %v646 = vpack.c.b16 %v536, %v534
        %v647 = vpack.c.b16 %v539, %v537
        %v648 = vpack.c.b16 %v540, %v538
        %v649 = vpack.c.b16 %v543, %v541
        %v650 = vpack.c.b16 %v544, %v542
        %v651 = vpack.c.b16 %v547, %v545
        %v652 = vpack.c.b16 %v548, %v546
        %v653 = vpack.c.b16 %v551, %v549
        %v654 = vpack.c.b16 %v552, %v550
        %v655 = vpack.c.b16 %v555, %v553
        %v656 = vpack.c.b16 %v556, %v554
        %v657 = vpack.c.b16 %v559, %v557
        %v658 = vpack.c.b16 %v560, %v558
        %v659 = vpack.c.b16 %v563, %v561
        %v660 = vpack.c.b16 %v564, %v562
        %v661 = vpack.c.b16 %v567, %v565
        %v662 = vpack.c.b16 %v568, %v566
        %v663 = vpack.c.b16 %v571, %v569
        %v664 = vpack.c.b16 %v572, %v570
        %v665 = vpack.c.b16 %v575, %v573
        %v666 = vpack.c.b16 %v576, %v574
        %v667 = vpack.c.b16 %v579, %v577
        %v668 = vpack.c.b16 %v580, %v578
        %v669 = vpack.c.b16 %v583, %v581
        %v670 = vpack.c.b16 %v584, %v582
        %v671 = vpack.c.b16 %v587, %v585
        %v672 = vpack.c.b16 %v588, %v586
        %v673 = vpack.c.b16 %v591, %v589
        %v674 = vpack.c.b16 %v592, %v590
        %v675 = vpack.c.b16 %v595, %v593
        %v676 = vpack.c.b16 %v596, %v594
        %v677 = vpack.c.b16 %v599, %v597
        %v678 = vpack.c.b16 %v600, %v598
        %v679 = vpack.c.b16 %v603, %v601
        %v680 = vpack.c.b16 %v604, %v602
        %v681 = vpack.c.b16 %v607, %v605
        %v682 = vpack.c.b16 %v608, %v606
        %v683 = vpack.c.b16 %v611, %v609
        %v684 = vpack.c.b16 %v612, %v610
        %v685 = vpack.c.b16 %v615, %v613
        %v686 = vpack.c.b16 %v616, %v614
        %v687 = vpack.c.b16 %v619, %v617
        %v688 = vpack.c.b16 %v620, %v618
        %v689 = vpack.c.b16 %v623, %v621
        %v690 = vpack.c.b16 %v624, %v622
        %v691 = vpack.c.b16 %v627, %v625
        %v692 = vpack.c.b16 %v628, %v626
        %757 = vmatprep.subr.bf16.mxu0 %v630
        %758 = vmatpush1.bf16.msra.mxu0 %v629
        %759 = vmatprep.subr.bf16.mxu0 %v632
        %760 = vmatpush1.bf16.msra.mxu0 %v631
        %761 = vmatprep.subr.bf16.mxu0 %v634
        %762 = vmatpush1.bf16.msra.mxu0 %v633
        %763 = vmatprep.subr.bf16.mxu0 %v636
        %764 = vmatpush1.bf16.msra.mxu0 %v635
        %765 = vmatprep.subr.bf16.mxu0 %v638
        %766 = vmatpush1.bf16.msra.mxu0 %v637
        %767 = vmatprep.subr.bf16.mxu0 %v640
        %768 = vmatpush1.bf16.msra.mxu0 %v639
        %769 = vmatprep.subr.bf16.mxu0 %v642
        %770 = vmatpush1.bf16.msra.mxu0 %v641
        %771 = vmatprep.subr.bf16.mxu0 %v644
        %772 = vmatpush1.bf16.msra.mxu0 %v643
        %773 = vmatprep.subr.bf16.mxu0 %v646
        %774 = vmatpush1.bf16.msra.mxu0 %v645
        %775 = vmatprep.subr.bf16.mxu0 %v648
        %776 = vmatpush1.bf16.msra.mxu0 %v647
        %777 = vmatprep.subr.bf16.mxu0 %v650
        %778 = vmatpush1.bf16.msra.mxu0 %v649
        %779 = vmatprep.subr.bf16.mxu0 %v652
        %780 = vmatpush1.bf16.msra.mxu0 %v651
        %781 = vmatprep.subr.bf16.mxu0 %v654
        %782 = vmatpush1.bf16.msra.mxu0 %v653
        %783 = vmatprep.subr.bf16.mxu0 %v656
        %784 = vmatpush1.bf16.msra.mxu0 %v655
        %785 = vmatprep.subr.bf16.mxu0 %v658
        %786 = vmatpush1.bf16.msra.mxu0 %v657
        %787 = vmatprep.subr.bf16.mxu0 %v660
        %788 = vmatpush1.bf16.msra.mxu0 %v659
        %789 = vmatprep.mubr.bf16.mxu0 %v422
        %790 = vmatmul.mubr.bf16.gmra.mrb[0].mxu0 %v421
        %v791 = vpop.f32.mrb[0].mxu0
        %v792 = vadd.f32 0.0, %v791
        %v793 = vpop.f32.mrb[0].mxu0
        %v794 = vadd.f32 0.0, %v793
        %v795 = vpop.f32.mrb[0].mxu0
        %v796 = vadd.f32 0.0, %v795
        %v797 = vpop.f32.mrb[0].mxu0
        %v798 = vadd.f32 0.0, %v797
        %799 = vmatprep.mubr.bf16.mxu0 %v426
        %800 = vmatmul.mubr.bf16.gmra.mrb[0].mxu0 %v425
        %v801 = vpop.f32.mrb[0].mxu0
        %v802 = vadd.f32 0.0, %v801
        %v803 = vpop.f32.mrb[0].mxu0
        %v804 = vadd.f32 0.0, %v803
        %v805 = vpop.f32.mrb[0].mxu0
        %v806 = vadd.f32 0.0, %v805
        %v807 = vpop.f32.mrb[0].mxu0
        %v808 = vadd.f32 0.0, %v807
        %809 = vdwg.mxu0
        %810 = vmatprep.subr.bf16.mxu0 %v662
        %811 = vmatpush1.bf16.msra.mxu0 %v661
        %812 = vmatprep.subr.bf16.mxu0 %v664
        %813 = vmatpush1.bf16.msra.mxu0 %v663
        %814 = vmatprep.subr.bf16.mxu0 %v666
        %815 = vmatpush1.bf16.msra.mxu0 %v665
        %816 = vmatprep.subr.bf16.mxu0 %v668
        %817 = vmatpush1.bf16.msra.mxu0 %v667
        %818 = vmatprep.subr.bf16.mxu0 %v670
        %819 = vmatpush1.bf16.msra.mxu0 %v669
        %820 = vmatprep.subr.bf16.mxu0 %v672
        %821 = vmatpush1.bf16.msra.mxu0 %v671
        %822 = vmatprep.subr.bf16.mxu0 %v674
        %823 = vmatpush1.bf16.msra.mxu0 %v673
        %824 = vmatprep.subr.bf16.mxu0 %v676
        %825 = vmatpush1.bf16.msra.mxu0 %v675
        %826 = vmatprep.subr.bf16.mxu0 %v678
        %827 = vmatpush1.bf16.msra.mxu0 %v677
        %828 = vmatprep.subr.bf16.mxu0 %v680
        %829 = vmatpush1.bf16.msra.mxu0 %v679
        %830 = vmatprep.subr.bf16.mxu0 %v682
        %831 = vmatpush1.bf16.msra.mxu0 %v681
        %832 = vmatprep.subr.bf16.mxu0 %v684
        %833 = vmatpush1.bf16.msra.mxu0 %v683
        %834 = vmatprep.subr.bf16.mxu0 %v686
        %835 = vmatpush1.bf16.msra.mxu0 %v685
        %836 = vmatprep.subr.bf16.mxu0 %v688
        %837 = vmatpush1.bf16.msra.mxu0 %v687
        %838 = vmatprep.subr.bf16.mxu0 %v690
        %839 = vmatpush1.bf16.msra.mxu0 %v689
        %840 = vmatprep.subr.bf16.mxu0 %v692
        %841 = vmatpush1.bf16.msra.mxu0 %v691
        %842 = vmatprep.mubr.bf16.mxu0 %v424
        %843 = vmatmul.mubr.bf16.gmra.mrb[0].mxu0 %v423
        %v844 = vpop.f32.mrb[0].mxu0
        %v845 = vadd.f32 %v792, %v844
        %v846 = vpop.f32.mrb[0].mxu0
        %v847 = vadd.f32 %v794, %v846
        %v848 = vpop.f32.mrb[0].mxu0
        %v849 = vadd.f32 %v796, %v848
        %v850 = vpop.f32.mrb[0].mxu0
        %v851 = vadd.f32 %v798, %v850
        %852 = vmatprep.mubr.bf16.mxu0 %v428
        %853 = vmatmul.mubr.bf16.gmra.mrb[0].mxu0 %v427
        %v854 = vpop.f32.mrb[0].mxu0
        %v855 = vadd.f32 %v802, %v854
        %v856 = vpop.f32.mrb[0].mxu0
        %v857 = vadd.f32 %v804, %v856
        %v858 = vpop.f32.mrb[0].mxu0
        %v859 = vadd.f32 %v806, %v858
        %v860 = vpop.f32.mrb[0].mxu0
        %v861 = vadd.f32 %v808, %v860
        %862 = vdwg.mxu0
        %v863 = vadd.f32 %v317, %v845
        %v864 = vadd.f32 %v318, %v847
        %v865 = vadd.f32 %v319, %v849
        %v866 = vadd.f32 %v320, %v851
        %v867 = vadd.f32 %v321, %v855
        %v868 = vadd.f32 %v322, %v857
        %v869 = vadd.f32 %v323, %v859
        %v870 = vadd.f32 %v324, %v861
        %871 = vst [vmem:[#allocation2] sm:$0xff] %v863
        %872 = vst [vmem:[#allocation2 + $0x8] sm:$0xff] %v864
        %873 = vst [vmem:[#allocation2 + $0x10] sm:$0xff] %v865
        %874 = vst [vmem:[#allocation2 + $0x18] sm:$0xff] %v866
        %875 = vst [vmem:[#allocation2 + $0x20] sm:$0xff] %v867
        %876 = vst [vmem:[#allocation2 + $0x28] sm:$0xff] %v868
        %877 = vst [vmem:[#allocation2 + $0x30] sm:$0xff] %v869
        %878 = vst [vmem:[#allocation2 + $0x38] sm:$0xff] %v870
        %p879 = scmp.eq.s32.totalorder %s21, 3
        // Predicated region
        $region60: #{dis_forward.7} parent=50 // pred_check
          %p880 = pneg %p879
        $region61: #{dis_forward.7} parent=50 // pred_check_branch
          %882 = sbr.rel (%p880) target = $region63
        $region62: #{dis_forward.7} parent=50 // pred_region
          %v883 = vld [vmem:[#allocation2] sm:$0xff]
          %v884 = vld [vmem:[#allocation2 + $0x8] sm:$0xff]
          %v885 = vld [vmem:[#allocation2 + $0x10] sm:$0xff]
          %v886 = vld [vmem:[#allocation2 + $0x18] sm:$0xff]
          %v887 = vld [vmem:[#allocation2 + $0x20] sm:$0xff]
          %v888 = vld [vmem:[#allocation2 + $0x28] sm:$0xff]
          %v889 = vld [vmem:[#allocation2 + $0x30] sm:$0xff]
          %v890 = vld [vmem:[#allocation2 + $0x38] sm:$0xff]
          %v891 = vld [vmem:[%s291] sm:$0x3]
          %v893 = vlaneseq
          %v894 = vshrl.u32 %v893, 7
          %v895 = vsub.s32 0, %v894
          %v896 = vrot.slane %v891, %v895
          %v897 = vlaneseq
          %v898 = vshrl.u32 %v897, 7
          %v899 = vsub.s32 1, %v898
          %v900 = vrot.slane %v891, %v899
          %v903 = vadd.f32 %v883, %v896
          %v904 = vadd.f32 %v884, %v900
          %v905 = vadd.f32 %v885, %v896
          %v906 = vadd.f32 %v886, %v900
          %v907 = vadd.f32 %v887, %v896
          %v908 = vadd.f32 %v888, %v900
          %v909 = vadd.f32 %v889, %v896
          %v910 = vadd.f32 %v890, %v900
          %vm911 = vcmp.ge.f32.partialorder %v903, 0.0
          %vm912 = vcmp.ge.f32.partialorder %v904, 0.0
          %vm913 = vcmp.ge.f32.partialorder %v905, 0.0
          %vm914 = vcmp.ge.f32.partialorder %v906, 0.0
          %vm915 = vcmp.ge.f32.partialorder %v907, 0.0
          %vm916 = vcmp.ge.f32.partialorder %v908, 0.0
          %vm917 = vcmp.ge.f32.partialorder %v909, 0.0
          %vm918 = vcmp.ge.f32.partialorder %v910, 0.0
          %v919 = vmul.f32 %v903, 0.2
          %v920 = vmul.f32 %v904, 0.2
          %v921 = vmul.f32 %v905, 0.2
          %v922 = vmul.f32 %v906, 0.2
          %v923 = vmul.f32 %v907, 0.2
          %v924 = vmul.f32 %v908, 0.2
          %v925 = vmul.f32 %v909, 0.2
          %v926 = vmul.f32 %v910, 0.2
          %v927 = vsel %vm911, %v903, %v919
          %v928 = vsel %vm912, %v904, %v920
          %v929 = vsel %vm913, %v905, %v921
          %v930 = vsel %vm914, %v906, %v922
          %v931 = vsel %vm915, %v907, %v923
          %v932 = vsel %vm916, %v908, %v924
          %v933 = vsel %vm917, %v909, %v925
          %v934 = vsel %vm918, %v910, %v926
          %935 = vst [vmem:[%s302] sm:$0xff] %v927
          %936 = vst [vmem:[%s302 + $0x8] sm:$0xff] %v928
          %937 = vst [vmem:[%s302 + $0x10] sm:$0xff] %v929
          %938 = vst [vmem:[%s302 + $0x18] sm:$0xff] %v930
          %939 = vst [vmem:[%s302 + $0x20] sm:$0xff] %v931
          %940 = vst [vmem:[%s302 + $0x28] sm:$0xff] %v932
          %941 = vst [vmem:[%s302 + $0x30] sm:$0xff] %v933
          %942 = vst [vmem:[%s302 + $0x38] sm:$0xff] %v934
        $region63: #{dis_forward.7} parent=50 // pred_fallthru
          _
        %s943 = smul.u32 4, %s19
        %s944 = smul.u32 2, %s20
        %p945 = scmp.lt.s32.totalorder %s943, 3
        %s946 = scalar_select %p945, %s943, 3
        %p947 = scmp.lt.s32.totalorder %s944, 1
        %s948 = scalar_select %p947, %s944, 1
        %s949 = smul.addr %s946, 2
        %s950 = sadd.s32 %s948, %s949
        %s951 = smul.addr %s950, 8
        %s952 = scalar_lea.vmem %s3, %s951
        // Predicated region
        $region64: #{dis_forward.7} parent=50 // pred_check
          %p953 = pneg %p135
        $region65: #{dis_forward.7} parent=50 // pred_check_branch
          %955 = sbr.rel (%p953) target = $region67
        $region66: #{dis_forward.7} parent=50 // pred_region
          %s956 = smul.u32 4, %s19
          %s957 = smul.u32 2, %s20
        $region67: #{dis_forward.7} parent=50 // pred_fallthru
          _
        // Predicated region
        $region68: #{dis_forward.7} parent=50 // pred_check
          %p958 = pneg %p135
        $region69: #{dis_forward.7} parent=50 // pred_check_branch
          %960 = sbr.rel (%p958) target = $region71
        $region70: #{dis_forward.7} parent=50 // pred_region
          %s961 = smul.u32 4, %s19
          %s962 = smul.u32 2, %s20
          %p963 = scmp.lt.s32.totalorder %s961, 3
          %s964 = scalar_select %p963, %s961, 3
          %p965 = scmp.lt.s32.totalorder %s962, 1
          %s966 = scalar_select %p965, %s962, 1
          %s967 = smul.addr %s964, 2
          %s968 = sadd.s32 %s966, %s967
          %s969 = smul.addr %s968, 8
          %s970 = scalar_lea.vmem %s3, %s969
        $region71: #{dis_forward.7} parent=50 // pred_fallthru
          _
      $region51: #{dis_forward.7} parent=5 // pred_fallthru
        _
      %p971 = scmp.le.s32.totalorder 2, %s9
      // Predicated region
      $region72: #{dis_forward.7} parent=5 // pred_check
        %p972 = pneg %p971
      $region73: #{dis_forward.7} parent=5 // pred_check_branch
        %974 = sbr.rel (%p972) target = $region75
      $region74: #{dis_forward.7} parent=5 // pred_region
        %s975 = ssub.s32 %s9, 2
      $region75: #{dis_forward.7} parent=5 // pred_fallthru
        _
    $region6: #{dis_forward.7} parent=1 // loop_footer
      %s13 = sadd.s32 1, %s9
    $region7: #{dis_forward.7} parent=1 // loop_footer_branch
      %8 = sbr.rel target = $region3
    $region8: #{dis_forward.7} parent=1 // loop_exit
      _

// kernel: dis_forward.8
$region0: #{dis_forward.8}
  #allocation0 [shape = 'u32[]', space=smem, size = 0x4, offset = 0x4, fixed_abs, tag = 'smem constant byte address 0x4 - core index']
  #allocation1 [shape = 'u32[144,128]{1,0:T(1,128)}', space=vmem, size = 0x12000, scoped, tag = 'internal scratch']
  #allocation2 [shape = 'f32[16,256]{1,0:T(8,128)}', space=vmem, size = 0x4000, scoped, tag = 'scratch operand']
  %s0 = inlined_call_operand.vmem [shape: bf16[16,4096], index: 0, kind: input, shape index: {}]
  %s1 = inlined_call_operand.vmem [shape: bf16[4096,512], index: 1, kind: input, shape index: {}]
  %s2 = inlined_call_operand.vmem [shape: f32[1,512], index: 2, kind: input, shape index: {}]
  %s3 = inlined_call_operand.vmem [shape: f32[16,512], index: 3, kind: output, shape index: {}]
  %s4 = sld [smem:[#allocation0]]
  $region133: #{dis_forward.8} parent=0
    _
  %s6 = ssub.s32 1, %s4
  %s7 = scalar_select 0, %s6, %s4
  $region1: #{dis_forward.8} parent=0
    #allocation3 [shape = 'u8[32768]{0}', space=vmem, size = 0x8000, scoped, tag = 'input window, operand 0']
    #allocation4 [shape = 'u8[524288]{0}', space=vmem, size = 0x80000, scoped, tag = 'input window, operand 1']
    #allocation5 [shape = 'u8[32768]{0}', space=vmem, size = 0x8000, scoped, tag = 'output window, operand 0']
    loop: start=0, step=1, limit=18
    $region2: #{dis_forward.8} parent=1 // loop_pre_header
      _
    $region3: #{dis_forward.8} parent=1 // loop_header
      %s9 = sphi 0, %s13
      %p10 = scmp.ge.s32.totalorder %s9, 18
      %s16 = sphi 0, %s35
      %s17 = sphi 0, %s31
      %s18 = sphi 0, %s27
      %s19 = sphi 0, %s16
      %s20 = sphi 0, %s17
      %s21 = sphi 0, %s18
      %s22 = sphi 0, %s19
      %s23 = sphi 0, %s20
      %s24 = sphi 0, %s21
      %s40 = sphi 0, %s42
      %s43 = sphi 0, %s40
      %s44 = sphi 0, %s43
      %s60 = sphi 0, %s44
      %s68 = sphi 0, %s70
      %s71 = sphi 0, %s68
      %s72 = sphi 0, %s71
      %s88 = sphi 0, %s72
      %s94 = sphi 0, %s96
      %s97 = sphi 0, %s94
      %s98 = sphi 0, %s97
      %s114 = sphi 0, %s98
      %s122 = sphi 0, %s124
      %s125 = sphi 0, %s122
      %s126 = sphi 0, %s125
      %s142 = sphi 0, %s126
    $region4: #{dis_forward.8} parent=1 // loop_header_branch
      %12 = sbr.rel (%p10) target = $region8
    $region5: #{dis_forward.8} parent=1 // loop_body
      %s14 = ssub.s32 %s9, 1
      %s15 = ssub.s32 %s9, 2
      %s25 = sadd.s32 1, %s18
      %p26 = scmp.ge.s32.totalorder %s25, 8
      %s27 = scalar_select %p26, 0, %s25
      %s28 = sadd.s32 1, %s17
      %s29 = scalar_select %p26, %s28, %s17
      %p30 = scmp.ge.s32.totalorder %s29, 2
      %s31 = scalar_select %p30, 0, %s29
      %s32 = sadd.s32 1, %s16
      %s33 = scalar_select %p30, %s32, %s16
      %p34 = scmp.ge.s32.totalorder %s33, 1
      %s35 = scalar_select %p34, 0, %s33
      %s36 = ssub.s32 %s16, %s35
      %s37 = ssub.s32 %s18, %s27
      %s38 = sor.u32 %s36, %s37
      %p39 = scmp.eq.s32.totalorder %s38, 0
      %s41 = sadd.s32 %s40, 1
      %s42 = scalar_select %p39, %s40, %s41
      %p45 = pneg %p39
      %p46 = scmp.eq.s32.totalorder %s9, 15
      %p47 = por %p45, %p46
      %p48 = scmp.ne.s32.totalorder %s40, %s43
      %p49 = scmp.eq.s32.totalorder %s9, 0
      %p50 = por %p48, %p49
      %p51 = scmp.ne.s32.totalorder %s40, %s43
      %p52 = scmp.eq.s32.totalorder %s14, 15
      %p53 = por %p51, %p52
      %p54 = scmp.ne.s32.totalorder %s43, %s44
      %p55 = scmp.eq.s32.totalorder %s14, 0
      %p56 = por %p54, %p55
      %p57 = scmp.ne.s32.totalorder %s43, %s44
      %p58 = scmp.eq.s32.totalorder %s15, 15
      %p59 = por %p57, %p58
      %p61 = scmp.ne.s32.totalorder %s44, %s60
      %p62 = scmp.eq.s32.totalorder %s15, 0
      %p63 = por %p61, %p62
      %s64 = ssub.s32 %s18, %s27
      %s65 = ssub.s32 %s17, %s31
      %s66 = sor.u32 %s64, %s65
      %p67 = scmp.eq.s32.totalorder %s66, 0
      %s69 = sadd.s32 %s68, 1
      %s70 = scalar_select %p67, %s68, %s69
      %p73 = pneg %p67
      %p74 = scmp.eq.s32.totalorder %s9, 15
      %p75 = por %p73, %p74
      %p76 = scmp.ne.s32.totalorder %s68, %s71
      %p77 = scmp.eq.s32.totalorder %s9, 0
      %p78 = por %p76, %p77
      %p79 = scmp.ne.s32.totalorder %s68, %s71
      %p80 = scmp.eq.s32.totalorder %s14, 15
      %p81 = por %p79, %p80
      %p82 = scmp.ne.s32.totalorder %s71, %s72
      %p83 = scmp.eq.s32.totalorder %s14, 0
      %p84 = por %p82, %p83
      %p85 = scmp.ne.s32.totalorder %s71, %s72
      %p86 = scmp.eq.s32.totalorder %s15, 15
      %p87 = por %p85, %p86
      %p89 = scmp.ne.s32.totalorder %s72, %s88
      %p90 = scmp.eq.s32.totalorder %s15, 0
      %p91 = por %p89, %p90
      %s92 = ssub.s32 %s17, %s31
      %p93 = scmp.eq.s32.totalorder %s92, 0
      %s95 = sadd.s32 %s94, 1
      %s96 = scalar_select %p93, %s94, %s95
      %p99 = pneg %p93
      %p100 = scmp.eq.s32.totalorder %s9, 15
      %p101 = por %p99, %p100
      %p102 = scmp.ne.s32.totalorder %s94, %s97
      %p103 = scmp.eq.s32.totalorder %s9, 0
      %p104 = por %p102, %p103
      %p105 = scmp.ne.s32.totalorder %s94, %s97
      %p106 = scmp.eq.s32.totalorder %s14, 15
      %p107 = por %p105, %p106
      %p108 = scmp.ne.s32.totalorder %s97, %s98
      %p109 = scmp.eq.s32.totalorder %s14, 0
      %p110 = por %p108, %p109
      %p111 = scmp.ne.s32.totalorder %s97, %s98
      %p112 = scmp.eq.s32.totalorder %s15, 15
      %p113 = por %p111, %p112
      %p115 = scmp.ne.s32.totalorder %s98, %s114
      %p116 = scmp.eq.s32.totalorder %s15, 0
      %p117 = por %p115, %p116
      %s118 = ssub.s32 %s16, %s35
      %s119 = ssub.s32 %s17, %s31
      %s120 = sor.u32 %s118, %s119
      %p121 = scmp.eq.s32.totalorder %s120, 0
      %s123 = sadd.s32 %s122, 1
      %s124 = scalar_select %p121, %s122, %s123
      %p127 = pneg %p121
      %p128 = scmp.eq.s32.totalorder %s9, 15
      %p129 = por %p127, %p128
      %p130 = scmp.ne.s32.totalorder %s122, %s125
      %p131 = scmp.eq.s32.totalorder %s9, 0
      %p132 = por %p130, %p131
      %p133 = scmp.ne.s32.totalorder %s122, %s125
      %p134 = scmp.eq.s32.totalorder %s14, 15
      %p135 = por %p133, %p134
      %p136 = scmp.ne.s32.totalorder %s125, %s126
      %p137 = scmp.eq.s32.totalorder %s14, 0
      %p138 = por %p136, %p137
      %p139 = scmp.ne.s32.totalorder %s125, %s126
      %p140 = scmp.eq.s32.totalorder %s15, 15
      %p141 = por %p139, %p140
      %p143 = scmp.ne.s32.totalorder %s126, %s142
      %p144 = scmp.eq.s32.totalorder %s15, 0
      %p145 = por %p143, %p144
      %p146 = scmp.le.s32.totalorder 1, %s9
      %p147 = scmp.lt.s32.totalorder %s9, 17
      %p148 = pnand %p146, %p147
      %p149 = pneg %p148
      // Predicated region
      $region9: #{dis_forward.8} parent=5 // pred_check
        _
      $region10: #{dis_forward.8} parent=5 // pred_check_branch
        %151 = sbr.rel (%p148) target = $region12
      $region11: #{dis_forward.8} parent=5 // pred_region
        %s152 = ssub.s32 %s9, 1
      $region12: #{dis_forward.8} parent=5 // pred_fallthru
        _
      %p153 = scmp.lt.s32.totalorder %s9, 16
      // Predicated region
      $region13: #{dis_forward.8} parent=5 // pred_check
        %p154 = pneg %p153
      $region14: #{dis_forward.8} parent=5 // pred_check_branch
        %156 = sbr.rel (%p154) target = $region16
      $region15: #{dis_forward.8} parent=5 // pred_region
        // Predicated region
        $region17: #{dis_forward.8} parent=15 // pred_check
          %p157 = pneg %p50
        $region18: #{dis_forward.8} parent=15 // pred_check_branch
          %159 = sbr.rel (%p157) target = $region20
        $region19: #{dis_forward.8} parent=15 // pred_region
          %s160 = sand.u32 %s40, 1
          %s161 = sand.u32 %s40, 1
          %s162 = smul.addr %s161, 32
          %s163 = scalar_lea.vmem [#allocation3], %s162
          %s164 = smul.u32 2, %s16
          %s165 = smul.u32 4, %s18
          %s166 = smul.addr %s164, 32
          %s167 = sadd.s32 %s165, %s166
          %s168 = smul.addr %s167, 4
          %s169 = scalar_lea.vmem %s0, %s168
          // Predicated region
          $region21: #{dis_forward.8} parent=19 // pred_check
            _
          $region22: #{dis_forward.8} parent=19 // pred_check_branch
            %171 = sbr.rel (0) target = $region24
          $region23: #{dis_forward.8} parent=19 // pred_region
            // Predicated region
            $region25: #{dis_forward.8} parent=23 // pred_check
              _
            $region26: #{dis_forward.8} parent=23 // pred_check_branch
              %173 = sbr.rel (0) target = $region28
            $region27: #{dis_forward.8} parent=23 // pred_region
              loop: start=0, step=1, limit=1
              $region29: #{dis_forward.8} parent=27 // loop_pre_header
                _
              $region30: #{dis_forward.8} parent=27 // loop_header
                %s175 = sphi 0, %s179
                %p176 = scmp.ge.s32.totalorder %s175, 1
                %s180 = sphi %s169, %s169
                %s181 = sphi %s163, %s163
              $region31: #{dis_forward.8} parent=27 // loop_header_branch
                %178 = sbr.rel (%p176) target = $region35
              $region32: #{dis_forward.8} parent=27 // loop_body
                %v182 = vld [vmem:[%s180] sm:$0xff]
                %183 = vst [vmem:[%s181] sm:$0xff] %v182
                %v184 = vld [vmem:[%s180 + $0x8] sm:$0xff]
                %185 = vst [vmem:[%s181 + $0x8] sm:$0xff] %v184
                %v186 = vld [vmem:[%s180 + $0x80] sm:$0xff]
                %187 = vst [vmem:[%s181 + $0x10] sm:$0xff] %v186
                %v188 = vld [vmem:[%s180 + $0x88] sm:$0xff]
                %189 = vst [vmem:[%s181 + $0x18] sm:$0xff] %v188
              $region33: #{dis_forward.8} parent=27 // loop_footer
                %s179 = sadd.s32 1, %s175
              $region34: #{dis_forward.8} parent=27 // loop_footer_branch
                %174 = sbr.rel target = $region30
              $region35: #{dis_forward.8} parent=27 // loop_exit
                _
            $region28: #{dis_forward.8} parent=23 // pred_fallthru
              _
            // Predicated region
            $region36: #{dis_forward.8} parent=23 // pred_check
              _
            $region37: #{dis_forward.8} parent=23 // pred_check_branch
              %191 = sbr.rel target = $region39
            $region38: #{dis_forward.8} parent=23 // pred_region
              _
            $region39: #{dis_forward.8} parent=23 // pred_fallthru
              _
          $region24: #{dis_forward.8} parent=19 // pred_fallthru
            _
          %192 = vnop
        $region20: #{dis_forward.8} parent=15 // pred_fallthru
          _
        // Predicated region
        $region40: #{dis_forward.8} parent=15 // pred_check
          %p193 = pneg %p78
        $region41: #{dis_forward.8} parent=15 // pred_check_branch
          %195 = sbr.rel (%p193) target = $region43
        $region42: #{dis_forward.8} parent=15 // pred_region
          %s196 = sand.u32 %s68, 1
          %s197 = sand.u32 %s68, 1
          %s198 = smul.addr %s197, 512
          %s199 = scalar_lea.vmem [#allocation4], %s198
          %s200 = smul.u32 64, %s18
          %s201 = smul.u32 2, %s17
          %s202 = smul.addr %s200, 4
          %s203 = sadd.s32 %s201, %s202
          %s204 = smul.addr %s203, 4
          %s205 = scalar_lea.vmem %s1, %s204
          // Predicated region
          $region44: #{dis_forward.8} parent=42 // pred_check
            _
          $region45: #{dis_forward.8} parent=42 // pred_check_branch
            %207 = sbr.rel (0) target = $region47
          $region46: #{dis_forward.8} parent=42 // pred_region
            // Predicated region
            $region48: #{dis_forward.8} parent=46 // pred_check
              _
            $region49: #{dis_forward.8} parent=46 // pred_check_branch
              %209 = sbr.rel (0) target = $region51
            $region50: #{dis_forward.8} parent=46 // pred_region
              // Predicated region
              $region63: #{dis_forward.8} parent=50 // pred_check
                _
              $region64: #{dis_forward.8} parent=50 // pred_check_branch
                %350 = sbr.rel (0) target = $region66
              $region65: #{dis_forward.8} parent=50 // pred_region
                loop: start=0, step=1, limit=1
                $region67: #{dis_forward.8} parent=65 // loop_pre_header
                  _
                $region68: #{dis_forward.8} parent=65 // loop_header
                  %s352 = sphi 0, %s356
                  %p353 = scmp.ge.s32.totalorder %s352, 1
                  %s357 = sphi %s205, %s205
                  %s358 = sphi %s199, %s199
                $region69: #{dis_forward.8} parent=65 // loop_header_branch
                  %355 = sbr.rel (%p353) target = $region73
                $region70: #{dis_forward.8} parent=65 // loop_body
                  %v359 = vld [vmem:[%s357] sm:$0xff]
                  %360 = vst [vmem:[%s358] sm:$0xff] %v359
                  %v361 = vld [vmem:[%s357 + $0x10] sm:$0xff]
                  %362 = vst [vmem:[%s358 + $0x8] sm:$0xff] %v361
                  %v363 = vld [vmem:[%s357 + $0x20] sm:$0xff]
                  %364 = vst [vmem:[%s358 + $0x10] sm:$0xff] %v363
                  %v365 = vld [vmem:[%s357 + $0x30] sm:$0xff]
                  %366 = vst [vmem:[%s358 + $0x18] sm:$0xff] %v365
                  %v367 = vld [vmem:[%s357 + $0x40] sm:$0xff]
                  %368 = vst [vmem:[%s358 + $0x20] sm:$0xff] %v367
                  %v369 = vld [vmem:[%s357 + $0x50] sm:$0xff]
                  %370 = vst [vmem:[%s358 + $0x28] sm:$0xff] %v369
                  %v371 = vld [vmem:[%s357 + $0x60] sm:$0xff]
                  %372 = vst [vmem:[%s358 + $0x30] sm:$0xff] %v371
                  %v373 = vld [vmem:[%s357 + $0x70] sm:$0xff]
                  %374 = vst [vmem:[%s358 + $0x38] sm:$0xff] %v373
                  %v375 = vld [vmem:[%s357 + $0x80] sm:$0xff]
                  %376 = vst [vmem:[%s358 + $0x40] sm:$0xff] %v375
                  %v377 = vld [vmem:[%s357 + $0x90] sm:$0xff]
                  %378 = vst [vmem:[%s358 + $0x48] sm:$0xff] %v377
                  %v379 = vld [vmem:[%s357 + $0xa0] sm:$0xff]
                  %380 = vst [vmem:[%s358 + $0x50] sm:$0xff] %v379
                  %v381 = vld [vmem:[%s357 + $0xb0] sm:$0xff]
                  %382 = vst [vmem:[%s358 + $0x58] sm:$0xff] %v381
                  %v383 = vld [vmem:[%s357 + $0xc0] sm:$0xff]
                  %384 = vst [vmem:[%s358 + $0x60] sm:$0xff] %v383
                  %v385 = vld [vmem:[%s357 + $0xd0] sm:$0xff]
                  %386 = vst [vmem:[%s358 + $0x68] sm:$0xff] %v385
                  %v387 = vld [vmem:[%s357 + $0xe0] sm:$0xff]
                  %388 = vst [vmem:[%s358 + $0x70] sm:$0xff] %v387
                  %v389 = vld [vmem:[%s357 + $0xf0] sm:$0xff]
                  %390 = vst [vmem:[%s358 + $0x78] sm:$0xff] %v389
                  %v391 = vld [vmem:[%s357 + $0x100] sm:$0xff]
                  %392 = vst [vmem:[%s358 + $0x80] sm:$0xff] %v391
                  %v393 = vld [vmem:[%s357 + $0x110] sm:$0xff]
                  %394 = vst [vmem:[%s358 + $0x88] sm:$0xff] %v393
                  %v395 = vld [vmem:[%s357 + $0x120] sm:$0xff]
                  %396 = vst [vmem:[%s358 + $0x90] sm:$0xff] %v395
                  %v397 = vld [vmem:[%s357 + $0x130] sm:$0xff]
                  %398 = vst [vmem:[%s358 + $0x98] sm:$0xff] %v397
                  %v399 = vld [vmem:[%s357 + $0x140] sm:$0xff]
                  %400 = vst [vmem:[%s358 + $0xa0] sm:$0xff] %v399
                  %v401 = vld [vmem:[%s357 + $0x150] sm:$0xff]
                  %402 = vst [vmem:[%s358 + $0xa8] sm:$0xff] %v401
                  %v403 = vld [vmem:[%s357 + $0x160] sm:$0xff]
                  %404 = vst [vmem:[%s358 + $0xb0] sm:$0xff] %v403
                  %v405 = vld [vmem:[%s357 + $0x170] sm:$0xff]
                  %406 = vst [vmem:[%s358 + $0xb8] sm:$0xff] %v405
                  %v407 = vld [vmem:[%s357 + $0x180] sm:$0xff]
                  %408 = vst [vmem:[%s358 + $0xc0] sm:$0xff] %v407
                  %v409 = vld [vmem:[%s357 + $0x190] sm:$0xff]
                  %410 = vst [vmem:[%s358 + $0xc8] sm:$0xff] %v409
                  %v411 = vld [vmem:[%s357 + $0x1a0] sm:$0xff]
                  %412 = vst [vmem:[%s358 + $0xd0] sm:$0xff] %v411
                  %v413 = vld [vmem:[%s357 + $0x1b0] sm:$0xff]
                  %414 = vst [vmem:[%s358 + $0xd8] sm:$0xff] %v413
                  %v415 = vld [vmem:[%s357 + $0x1c0] sm:$0xff]
                  %416 = vst [vmem:[%s358 + $0xe0] sm:$0xff] %v415
                  %v417 = vld [vmem:[%s357 + $0x1d0] sm:$0xff]
                  %418 = vst [vmem:[%s358 + $0xe8] sm:$0xff] %v417
                  %v419 = vld [vmem:[%s357 + $0x1e0] sm:$0xff]
                  %420 = vst [vmem:[%s358 + $0xf0] sm:$0xff] %v419
                  %v421 = vld [vmem:[%s357 + $0x1f0] sm:$0xff]
                  %422 = vst [vmem:[%s358 + $0xf8] sm:$0xff] %v421
                  %v423 = vld [vmem:[%s357 + $0x200] sm:$0xff]
                  %424 = vst [vmem:[%s358 + $0x100] sm:$0xff] %v423
                  %v425 = vld [vmem:[%s357 + $0x210] sm:$0xff]
                  %426 = vst [vmem:[%s358 + $0x108] sm:$0xff] %v425
                  %v427 = vld [vmem:[%s357 + $0x220] sm:$0xff]
                  %428 = vst [vmem:[%s358 + $0x110] sm:$0xff] %v427
                  %v429 = vld [vmem:[%s357 + $0x230] sm:$0xff]
                  %430 = vst [vmem:[%s358 + $0x118] sm:$0xff] %v429
                  %v431 = vld [vmem:[%s357 + $0x240] sm:$0xff]
                  %432 = vst [vmem:[%s358 + $0x120] sm:$0xff] %v431
                  %v433 = vld [vmem:[%s357 + $0x250] sm:$0xff]
                  %434 = vst [vmem:[%s358 + $0x128] sm:$0xff] %v433
                  %v435 = vld [vmem:[%s357 + $0x260] sm:$0xff]
                  %436 = vst [vmem:[%s358 + $0x130] sm:$0xff] %v435
                  %v437 = vld [vmem:[%s357 + $0x270] sm:$0xff]
                  %438 = vst [vmem:[%s358 + $0x138] sm:$0xff] %v437
                  %v439 = vld [vmem:[%s357 + $0x280] sm:$0xff]
                  %440 = vst [vmem:[%s358 + $0x140] sm:$0xff] %v439
                  %v441 = vld [vmem:[%s357 + $0x290] sm:$0xff]
                  %442 = vst [vmem:[%s358 + $0x148] sm:$0xff] %v441
                  %v443 = vld [vmem:[%s357 + $0x2a0] sm:$0xff]
                  %444 = vst [vmem:[%s358 + $0x150] sm:$0xff] %v443
                  %v445 = vld [vmem:[%s357 + $0x2b0] sm:$0xff]
                  %446 = vst [vmem:[%s358 + $0x158] sm:$0xff] %v445
                  %v447 = vld [vmem:[%s357 + $0x2c0] sm:$0xff]
                  %448 = vst [vmem:[%s358 + $0x160] sm:$0xff] %v447
                  %v449 = vld [vmem:[%s357 + $0x2d0] sm:$0xff]
                  %450 = vst [vmem:[%s358 + $0x168] sm:$0xff] %v449
                  %v451 = vld [vmem:[%s357 + $0x2e0] sm:$0xff]
                  %452 = vst [vmem:[%s358 + $0x170] sm:$0xff] %v451
                  %v453 = vld [vmem:[%s357 + $0x2f0] sm:$0xff]
                  %454 = vst [vmem:[%s358 + $0x178] sm:$0xff] %v453
                  %v455 = vld [vmem:[%s357 + $0x300] sm:$0xff]
                  %456 = vst [vmem:[%s358 + $0x180] sm:$0xff] %v455
                  %v457 = vld [vmem:[%s357 + $0x310] sm:$0xff]
                  %458 = vst [vmem:[%s358 + $0x188] sm:$0xff] %v457
                  %v459 = vld [vmem:[%s357 + $0x320] sm:$0xff]
                  %460 = vst [vmem:[%s358 + $0x190] sm:$0xff] %v459
                  %v461 = vld [vmem:[%s357 + $0x330] sm:$0xff]
                  %462 = vst [vmem:[%s358 + $0x198] sm:$0xff] %v461
                  %v463 = vld [vmem:[%s357 + $0x340] sm:$0xff]
                  %464 = vst [vmem:[%s358 + $0x1a0] sm:$0xff] %v463
                  %v465 = vld [vmem:[%s357 + $0x350] sm:$0xff]
                  %466 = vst [vmem:[%s358 + $0x1a8] sm:$0xff] %v465
                  %v467 = vld [vmem:[%s357 + $0x360] sm:$0xff]
                  %468 = vst [vmem:[%s358 + $0x1b0] sm:$0xff] %v467
                  %v469 = vld [vmem:[%s357 + $0x370] sm:$0xff]
                  %470 = vst [vmem:[%s358 + $0x1b8] sm:$0xff] %v469
                  %v471 = vld [vmem:[%s357 + $0x380] sm:$0xff]
                  %472 = vst [vmem:[%s358 + $0x1c0] sm:$0xff] %v471
                  %v473 = vld [vmem:[%s357 + $0x390] sm:$0xff]
                  %474 = vst [vmem:[%s358 + $0x1c8] sm:$0xff] %v473
                  %v475 = vld [vmem:[%s357 + $0x3a0] sm:$0xff]
                  %476 = vst [vmem:[%s358 + $0x1d0] sm:$0xff] %v475
                  %v477 = vld [vmem:[%s357 + $0x3b0] sm:$0xff]
                  %478 = vst [vmem:[%s358 + $0x1d8] sm:$0xff] %v477
                  %v479 = vld [vmem:[%s357 + $0x3c0] sm:$0xff]
                  %480 = vst [vmem:[%s358 + $0x1e0] sm:$0xff] %v479
                  %v481 = vld [vmem:[%s357 + $0x3d0] sm:$0xff]
                  %482 = vst [vmem:[%s358 + $0x1e8] sm:$0xff] %v481
                  %v483 = vld [vmem:[%s357 + $0x3e0] sm:$0xff]
                  %484 = vst [vmem:[%s358 + $0x1f0] sm:$0xff] %v483
                  %v485 = vld [vmem:[%s357 + $0x3f0] sm:$0xff]
                  %486 = vst [vmem:[%s358 + $0x1f8] sm:$0xff] %v485
                $region71: #{dis_forward.8} parent=65 // loop_footer
                  %s356 = sadd.s32 1, %s352
                $region72: #{dis_forward.8} parent=65 // loop_footer_branch
                  %351 = sbr.rel target = $region68
                $region73: #{dis_forward.8} parent=65 // loop_exit
                  _
              $region66: #{dis_forward.8} parent=50 // pred_fallthru
                _
              // Predicated region
              $region74: #{dis_forward.8} parent=50 // pred_check
                _
              $region75: #{dis_forward.8} parent=50 // pred_check_branch
                %488 = sbr.rel target = $region77
              $region76: #{dis_forward.8} parent=50 // pred_region
                _
              $region77: #{dis_forward.8} parent=50 // pred_fallthru
                _
            $region51: #{dis_forward.8} parent=46 // pred_fallthru
              _
            // Predicated region
            $region52: #{dis_forward.8} parent=46 // pred_check
              _
            $region53: #{dis_forward.8} parent=46 // pred_check_branch
              %211 = sbr.rel target = $region55
            $region54: #{dis_forward.8} parent=46 // pred_region
              loop: start=0, step=1, limit=1
              $region56: #{dis_forward.8} parent=54 // loop_pre_header
                _
              $region57: #{dis_forward.8} parent=54 // loop_header
                %s214 = sphi 0, %s218
                %p215 = scmp.ge.s32.totalorder %s214, 1
                %s219 = sphi %s205, %s205
                %s220 = sphi %s199, %s199
              $region58: #{dis_forward.8} parent=54 // loop_header_branch
                %217 = sbr.rel (%p215) target = $region62
              $region59: #{dis_forward.8} parent=54 // loop_body
                %v221 = vld [vmem:[%s219] sm:$0xff]
                %222 = vst [vmem:[%s220] sm:$0xff] %v221
                %v223 = vld [vmem:[%s219 + $0x10] sm:$0xff]
                %224 = vst [vmem:[%s220 + $0x8] sm:$0xff] %v223
                %v225 = vld [vmem:[%s219 + $0x20] sm:$0xff]
                %226 = vst [vmem:[%s220 + $0x10] sm:$0xff] %v225
                %v227 = vld [vmem:[%s219 + $0x30] sm:$0xff]
                %228 = vst [vmem:[%s220 + $0x18] sm:$0xff] %v227
                %v229 = vld [vmem:[%s219 + $0x40] sm:$0xff]
                %230 = vst [vmem:[%s220 + $0x20] sm:$0xff] %v229
                %v231 = vld [vmem:[%s219 + $0x50] sm:$0xff]
                %232 = vst [vmem:[%s220 + $0x28] sm:$0xff] %v231
                %v233 = vld [vmem:[%s219 + $0x60] sm:$0xff]
                %234 = vst [vmem:[%s220 + $0x30] sm:$0xff] %v233
                %v235 = vld [vmem:[%s219 + $0x70] sm:$0xff]
                %236 = vst [vmem:[%s220 + $0x38] sm:$0xff] %v235
                %v237 = vld [vmem:[%s219 + $0x80] sm:$0xff]
                %238 = vst [vmem:[%s220 + $0x40] sm:$0xff] %v237
                %v239 = vld [vmem:[%s219 + $0x90] sm:$0xff]
                %240 = vst [vmem:[%s220 + $0x48] sm:$0xff] %v239
                %v241 = vld [vmem:[%s219 + $0xa0] sm:$0xff]
                %242 = vst [vmem:[%s220 + $0x50] sm:$0xff] %v241
                %v243 = vld [vmem:[%s219 + $0xb0] sm:$0xff]
                %244 = vst [vmem:[%s220 + $0x58] sm:$0xff] %v243
                %v245 = vld [vmem:[%s219 + $0xc0] sm:$0xff]
                %246 = vst [vmem:[%s220 + $0x60] sm:$0xff] %v245
                %v247 = vld [vmem:[%s219 + $0xd0] sm:$0xff]
                %248 = vst [vmem:[%s220 + $0x68] sm:$0xff] %v247
                %v249 = vld [vmem:[%s219 + $0xe0] sm:$0xff]
                %250 = vst [vmem:[%s220 + $0x70] sm:$0xff] %v249
                %v251 = vld [vmem:[%s219 + $0xf0] sm:$0xff]
                %252 = vst [vmem:[%s220 + $0x78] sm:$0xff] %v251
                %v253 = vld [vmem:[%s219 + $0x100] sm:$0xff]
                %254 = vst [vmem:[%s220 + $0x80] sm:$0xff] %v253
                %v255 = vld [vmem:[%s219 + $0x110] sm:$0xff]
                %256 = vst [vmem:[%s220 + $0x88] sm:$0xff] %v255
                %v257 = vld [vmem:[%s219 + $0x120] sm:$0xff]
                %258 = vst [vmem:[%s220 + $0x90] sm:$0xff] %v257
                %v259 = vld [vmem:[%s219 + $0x130] sm:$0xff]
                %260 = vst [vmem:[%s220 + $0x98] sm:$0xff] %v259
                %v261 = vld [vmem:[%s219 + $0x140] sm:$0xff]
                %262 = vst [vmem:[%s220 + $0xa0] sm:$0xff] %v261
                %v263 = vld [vmem:[%s219 + $0x150] sm:$0xff]
                %264 = vst [vmem:[%s220 + $0xa8] sm:$0xff] %v263
                %v265 = vld [vmem:[%s219 + $0x160] sm:$0xff]
                %266 = vst [vmem:[%s220 + $0xb0] sm:$0xff] %v265
                %v267 = vld [vmem:[%s219 + $0x170] sm:$0xff]
                %268 = vst [vmem:[%s220 + $0xb8] sm:$0xff] %v267
                %v269 = vld [vmem:[%s219 + $0x180] sm:$0xff]
                %270 = vst [vmem:[%s220 + $0xc0] sm:$0xff] %v269
                %v271 = vld [vmem:[%s219 + $0x190] sm:$0xff]
                %272 = vst [vmem:[%s220 + $0xc8] sm:$0xff] %v271
                %v273 = vld [vmem:[%s219 + $0x1a0] sm:$0xff]
                %274 = vst [vmem:[%s220 + $0xd0] sm:$0xff] %v273
                %v275 = vld [vmem:[%s219 + $0x1b0] sm:$0xff]
                %276 = vst [vmem:[%s220 + $0xd8] sm:$0xff] %v275
                %v277 = vld [vmem:[%s219 + $0x1c0] sm:$0xff]
                %278 = vst [vmem:[%s220 + $0xe0] sm:$0xff] %v277
                %v279 = vld [vmem:[%s219 + $0x1d0] sm:$0xff]
                %280 = vst [vmem:[%s220 + $0xe8] sm:$0xff] %v279
                %v281 = vld [vmem:[%s219 + $0x1e0] sm:$0xff]
                %282 = vst [vmem:[%s220 + $0xf0] sm:$0xff] %v281
                %v283 = vld [vmem:[%s219 + $0x1f0] sm:$0xff]
                %284 = vst [vmem:[%s220 + $0xf8] sm:$0xff] %v283
                %v285 = vld [vmem:[%s219 + $0x200] sm:$0xff]
                %286 = vst [vmem:[%s220 + $0x100] sm:$0xff] %v285
                %v287 = vld [vmem:[%s219 + $0x210] sm:$0xff]
                %288 = vst [vmem:[%s220 + $0x108] sm:$0xff] %v287
                %v289 = vld [vmem:[%s219 + $0x220] sm:$0xff]
                %290 = vst [vmem:[%s220 + $0x110] sm:$0xff] %v289
                %v291 = vld [vmem:[%s219 + $0x230] sm:$0xff]
                %292 = vst [vmem:[%s220 + $0x118] sm:$0xff] %v291
                %v293 = vld [vmem:[%s219 + $0x240] sm:$0xff]
                %294 = vst [vmem:[%s220 + $0x120] sm:$0xff] %v293
                %v295 = vld [vmem:[%s219 + $0x250] sm:$0xff]
                %296 = vst [vmem:[%s220 + $0x128] sm:$0xff] %v295
                %v297 = vld [vmem:[%s219 + $0x260] sm:$0xff]
                %298 = vst [vmem:[%s220 + $0x130] sm:$0xff] %v297
                %v299 = vld [vmem:[%s219 + $0x270] sm:$0xff]
                %300 = vst [vmem:[%s220 + $0x138] sm:$0xff] %v299
                %v301 = vld [vmem:[%s219 + $0x280] sm:$0xff]
                %302 = vst [vmem:[%s220 + $0x140] sm:$0xff] %v301
                %v303 = vld [vmem:[%s219 + $0x290] sm:$0xff]
                %304 = vst [vmem:[%s220 + $0x148] sm:$0xff] %v303
                %v305 = vld [vmem:[%s219 + $0x2a0] sm:$0xff]
                %306 = vst [vmem:[%s220 + $0x150] sm:$0xff] %v305
                %v307 = vld [vmem:[%s219 + $0x2b0] sm:$0xff]
                %308 = vst [vmem:[%s220 + $0x158] sm:$0xff] %v307
                %v309 = vld [vmem:[%s219 + $0x2c0] sm:$0xff]
                %310 = vst [vmem:[%s220 + $0x160] sm:$0xff] %v309
                %v311 = vld [vmem:[%s219 + $0x2d0] sm:$0xff]
                %312 = vst [vmem:[%s220 + $0x168] sm:$0xff] %v311
                %v313 = vld [vmem:[%s219 + $0x2e0] sm:$0xff]
                %314 = vst [vmem:[%s220 + $0x170] sm:$0xff] %v313
                %v315 = vld [vmem:[%s219 + $0x2f0] sm:$0xff]
                %316 = vst [vmem:[%s220 + $0x178] sm:$0xff] %v315
                %v317 = vld [vmem:[%s219 + $0x300] sm:$0xff]
                %318 = vst [vmem:[%s220 + $0x180] sm:$0xff] %v317
                %v319 = vld [vmem:[%s219 + $0x310] sm:$0xff]
                %320 = vst [vmem:[%s220 + $0x188] sm:$0xff] %v319
                %v321 = vld [vmem:[%s219 + $0x320] sm:$0xff]
                %322 = vst [vmem:[%s220 + $0x190] sm:$0xff] %v321
                %v323 = vld [vmem:[%s219 + $0x330] sm:$0xff]
                %324 = vst [vmem:[%s220 + $0x198] sm:$0xff] %v323
                %v325 = vld [vmem:[%s219 + $0x340] sm:$0xff]
                %326 = vst [vmem:[%s220 + $0x1a0] sm:$0xff] %v325
                %v327 = vld [vmem:[%s219 + $0x350] sm:$0xff]
                %328 = vst [vmem:[%s220 + $0x1a8] sm:$0xff] %v327
                %v329 = vld [vmem:[%s219 + $0x360] sm:$0xff]
                %330 = vst [vmem:[%s220 + $0x1b0] sm:$0xff] %v329
                %v331 = vld [vmem:[%s219 + $0x370] sm:$0xff]
                %332 = vst [vmem:[%s220 + $0x1b8] sm:$0xff] %v331
                %v333 = vld [vmem:[%s219 + $0x380] sm:$0xff]
                %334 = vst [vmem:[%s220 + $0x1c0] sm:$0xff] %v333
                %v335 = vld [vmem:[%s219 + $0x390] sm:$0xff]
                %336 = vst [vmem:[%s220 + $0x1c8] sm:$0xff] %v335
                %v337 = vld [vmem:[%s219 + $0x3a0] sm:$0xff]
                %338 = vst [vmem:[%s220 + $0x1d0] sm:$0xff] %v337
                %v339 = vld [vmem:[%s219 + $0x3b0] sm:$0xff]
                %340 = vst [vmem:[%s220 + $0x1d8] sm:$0xff] %v339
                %v341 = vld [vmem:[%s219 + $0x3c0] sm:$0xff]
                %342 = vst [vmem:[%s220 + $0x1e0] sm:$0xff] %v341
                %v343 = vld [vmem:[%s219 + $0x3d0] sm:$0xff]
                %344 = vst [vmem:[%s220 + $0x1e8] sm:$0xff] %v343
                %v345 = vld [vmem:[%s219 + $0x3e0] sm:$0xff]
                %346 = vst [vmem:[%s220 + $0x1f0] sm:$0xff] %v345
                %v347 = vld [vmem:[%s219 + $0x3f0] sm:$0xff]
                %348 = vst [vmem:[%s220 + $0x1f8] sm:$0xff] %v347
              $region60: #{dis_forward.8} parent=54 // loop_footer
                %s218 = sadd.s32 1, %s214
              $region61: #{dis_forward.8} parent=54 // loop_footer_branch
                %213 = sbr.rel target = $region57
              $region62: #{dis_forward.8} parent=54 // loop_exit
                _
            $region55: #{dis_forward.8} parent=46 // pred_fallthru
              _
          $region47: #{dis_forward.8} parent=42 // pred_fallthru
            _
          %489 = vnop
        $region43: #{dis_forward.8} parent=15 // pred_fallthru
          _
        // Predicated region
        $region78: #{dis_forward.8} parent=15 // pred_check
          %p490 = pneg %p104
        $region79: #{dis_forward.8} parent=15 // pred_check_branch
          %492 = sbr.rel (%p490) target = $region81
        $region80: #{dis_forward.8} parent=15 // pred_region
          %s493 = smul.u32 2, %s17
          %p494 = scmp.lt.s32.totalorder %s493, 3
          %s495 = scalar_select %p494, %s493, 3
          %s496 = scalar_lea.vmem %s2, %s495
          %s497 = smul.u32 2, %s17
        $region81: #{dis_forward.8} parent=15 // pred_fallthru
          _
      $region16: #{dis_forward.8} parent=5 // pred_fallthru
        _
      %p498 = scmp.le.s32.totalorder 1, %s9
      %p499 = scmp.lt.s32.totalorder %s9, 17
      %p500 = pnand %p498, %p499
      %p501 = pneg %p500
      // Predicated region
      $region82: #{dis_forward.8} parent=5 // pred_check
        _
      $region83: #{dis_forward.8} parent=5 // pred_check_branch
        %503 = sbr.rel (%p500) target = $region85
      $region84: #{dis_forward.8} parent=5 // pred_region
        %s504 = ssub.s32 %s9, 1
        %s505 = sand.u32 %s43, 1
        %s506 = sand.u32 %s43, 1
        %s507 = smul.addr %s506, 32
        %s508 = scalar_lea.vmem [#allocation3], %s507
        // Predicated region
        $region86: #{dis_forward.8} parent=84 // pred_check
          %p509 = pneg %p56
        $region87: #{dis_forward.8} parent=84 // pred_check_branch
          %511 = sbr.rel (%p509) target = $region89
        $region88: #{dis_forward.8} parent=84 // pred_region
          _
        $region89: #{dis_forward.8} parent=84 // pred_fallthru
          _
        %s512 = sand.u32 %s71, 1
        %s513 = sand.u32 %s71, 1
        %s514 = smul.addr %s513, 512
        %s515 = scalar_lea.vmem [#allocation4], %s514
        // Predicated region
        $region90: #{dis_forward.8} parent=84 // pred_check
          %p516 = pneg %p84
        $region91: #{dis_forward.8} parent=84 // pred_check_branch
          %518 = sbr.rel (%p516) target = $region93
        $region92: #{dis_forward.8} parent=84 // pred_region
          _
        $region93: #{dis_forward.8} parent=84 // pred_fallthru
          _
        %s519 = sand.u32 %s43, 1
        %s520 = sand.u32 %s43, 1
        %s521 = smul.addr %s520, 32
        %s522 = scalar_lea.vmem [#allocation3], %s521
        %p523 = pneg %p56
        %p524 = pneg %p53
        %s525 = sand.u32 %s71, 1
        %s526 = sand.u32 %s71, 1
        %s527 = smul.addr %s526, 512
        %s528 = scalar_lea.vmem [#allocation4], %s527
        %p529 = pneg %p84
        %p530 = pneg %p81
        %s531 = smul.u32 2, %s20
        %p532 = scmp.lt.s32.totalorder %s531, 3
        %s533 = scalar_select %p532, %s531, 3
        %s534 = scalar_lea.vmem %s2, %s533
        %p535 = pneg %p110
        %p536 = pneg %p107
        %p537 = pneg %p138
        %p538 = pneg %p135
        %s539 = sand.u32 %s125, 1
        %s540 = sand.u32 %s125, 1
        %s541 = smul.addr %s540, 32
        %s542 = scalar_lea.vmem [#allocation5], %s541
        %s543 = smul.u32 2, %s19
        %s544 = smul.u32 4, %s21
        %s545 = smul.u32 64, %s21
        %s546 = smul.u32 2, %s20
        %s547 = smul.u32 2, %s20
        %p548 = scmp.lt.s32.totalorder %s547, 3
        %s549 = scalar_select %p548, %s547, 3
        %s550 = scalar_lea.vmem %s2, %s549
        %s551 = smul.u32 2, %s20
        %s552 = smul.u32 2, %s19
        %s553 = smul.u32 2, %s20
        %p554 = scmp.eq.s32.totalorder %s21, 0
        // Predicated region
        $region94: #{dis_forward.8} parent=84 // pred_check
          %p555 = pneg %p554
        $region95: #{dis_forward.8} parent=84 // pred_check_branch
          %557 = sbr.rel (%p555) target = $region97
        $region96: #{dis_forward.8} parent=84 // pred_region
          %558 = vst [vmem:[#allocation2] sm:$0xff] 0.0
          %559 = vst [vmem:[#allocation2 + $0x8] sm:$0xff] 0.0
          %560 = vst [vmem:[#allocation2 + $0x10] sm:$0xff] 0.0
          %561 = vst [vmem:[#allocation2 + $0x18] sm:$0xff] 0.0
        $region97: #{dis_forward.8} parent=84 // pred_fallthru
          _
        %v562 = vld [vmem:[#allocation2] sm:$0xff]
        %v563 = vld [vmem:[#allocation2 + $0x8] sm:$0xff]
        %v564 = vld [vmem:[#allocation2 + $0x10] sm:$0xff]
        %v565 = vld [vmem:[#allocation2 + $0x18] sm:$0xff]
        %v566 = vld [vmem:[%s508] sm:$0xff]
        %v567 = vld [vmem:[%s508 + $0x8] sm:$0xff]
        %v568 = vld [vmem:[%s508 + $0x10] sm:$0xff]
        %v569 = vld [vmem:[%s508 + $0x18] sm:$0xff]
        %v570 = vld [vmem:[%s515] sm:$0xff]
        %v571 = vld [vmem:[%s515 + $0x8] sm:$0xff]
        %v572 = vld [vmem:[%s515 + $0x10] sm:$0xff]
        %v573 = vld [vmem:[%s515 + $0x18] sm:$0xff]
        %v574 = vld [vmem:[%s515 + $0x20] sm:$0xff]
        %v575 = vld [vmem:[%s515 + $0x28] sm:$0xff]
        %v576 = vld [vmem:[%s515 + $0x30] sm:$0xff]
        %v577 = vld [vmem:[%s515 + $0x38] sm:$0xff]
        %v578 = vld [vmem:[%s515 + $0x40] sm:$0xff]
        %v579 = vld [vmem:[%s515 + $0x48] sm:$0xff]
        %v580 = vld [vmem:[%s515 + $0x50] sm:$0xff]
        %v581 = vld [vmem:[%s515 + $0x58] sm:$0xff]
        %v582 = vld [vmem:[%s515 + $0x60] sm:$0xff]
        %v583 = vld [vmem:[%s515 + $0x68] sm:$0xff]
        %v584 = vld [vmem:[%s515 + $0x70] sm:$0xff]
        %v585 = vld [vmem:[%s515 + $0x78] sm:$0xff]
        %v586 = vld [vmem:[%s515 + $0x80] sm:$0xff]
        %v587 = vld [vmem:[%s515 + $0x88] sm:$0xff]
        %v588 = vld [vmem:[%s515 + $0x90] sm:$0xff]
        %v589 = vld [vmem:[%s515 + $0x98] sm:$0xff]
        %v590 = vld [vmem:[%s515 + $0xa0] sm:$0xff]
        %v591 = vld [vmem:[%s515 + $0xa8] sm:$0xff]
        %v592 = vld [vmem:[%s515 + $0xb0] sm:$0xff]
        %v593 = vld [vmem:[%s515 + $0xb8] sm:$0xff]
        %v594 = vld [vmem:[%s515 + $0xc0] sm:$0xff]
        %v595 = vld [vmem:[%s515 + $0xc8] sm:$0xff]
        %v596 = vld [vmem:[%s515 + $0xd0] sm:$0xff]
        %v597 = vld [vmem:[%s515 + $0xd8] sm:$0xff]
        %v598 = vld [vmem:[%s515 + $0xe0] sm:$0xff]
        %v599 = vld [vmem:[%s515 + $0xe8] sm:$0xff]
        %v600 = vld [vmem:[%s515 + $0xf0] sm:$0xff]
        %v601 = vld [vmem:[%s515 + $0xf8] sm:$0xff]
        %v602 = vld [vmem:[%s515 + $0x100] sm:$0xff]
        %v603 = vld [vmem:[%s515 + $0x108] sm:$0xff]
        %v604 = vld [vmem:[%s515 + $0x110] sm:$0xff]
        %v605 = vld [vmem:[%s515 + $0x118] sm:$0xff]
        %v606 = vld [vmem:[%s515 + $0x120] sm:$0xff]
        %v607 = vld [vmem:[%s515 + $0x128] sm:$0xff]
        %v608 = vld [vmem:[%s515 + $0x130] sm:$0xff]
        %v609 = vld [vmem:[%s515 + $0x138] sm:$0xff]
        %v610 = vld [vmem:[%s515 + $0x140] sm:$0xff]
        %v611 = vld [vmem:[%s515 + $0x148] sm:$0xff]
        %v612 = vld [vmem:[%s515 + $0x150] sm:$0xff]
        %v613 = vld [vmem:[%s515 + $0x158] sm:$0xff]
        %v614 = vld [vmem:[%s515 + $0x160] sm:$0xff]
        %v615 = vld [vmem:[%s515 + $0x168] sm:$0xff]
        %v616 = vld [vmem:[%s515 + $0x170] sm:$0xff]
        %v617 = vld [vmem:[%s515 + $0x178] sm:$0xff]
        %v618 = vld [vmem:[%s515 + $0x180] sm:$0xff]
        %v619 = vld [vmem:[%s515 + $0x188] sm:$0xff]
        %v620 = vld [vmem:[%s515 + $0x190] sm:$0xff]
        %v621 = vld [vmem:[%s515 + $0x198] sm:$0xff]
        %v622 = vld [vmem:[%s515 + $0x1a0] sm:$0xff]
        %v623 = vld [vmem:[%s515 + $0x1a8] sm:$0xff]
        %v624 = vld [vmem:[%s515 + $0x1b0] sm:$0xff]
        %v625 = vld [vmem:[%s515 + $0x1b8] sm:$0xff]
        %v626 = vld [vmem:[%s515 + $0x1c0] sm:$0xff]
        %v627 = vld [vmem:[%s515 + $0x1c8] sm:$0xff]
        %v628 = vld [vmem:[%s515 + $0x1d0] sm:$0xff]
        %v629 = vld [vmem:[%s515 + $0x1d8] sm:$0xff]
        %v630 = vld [vmem:[%s515 + $0x1e0] sm:$0xff]
        %v631 = vld [vmem:[%s515 + $0x1e8] sm:$0xff]
        %v632 = vld [vmem:[%s515 + $0x1f0] sm:$0xff]
        %v633 = vld [vmem:[%s515 + $0x1f8] sm:$0xff]
        %v638 = vunpack.c.l.b16 %v566
        %v639 = vunpack.c.h.b16 %v566
        %v640 = vunpack.c.l.b16 %v567
        %v641 = vunpack.c.h.b16 %v567
        %v642 = vunpack.c.l.b16 %v568
        %v643 = vunpack.c.h.b16 %v568
        %v644 = vunpack.c.l.b16 %v569
        %v645 = vunpack.c.h.b16 %v569
        %v646 = vpack.c.b16 %v642, %v638
        %v647 = vpack.c.b16 %v643, %v639
        %v648 = vpack.c.b16 %v644, %v640
        %v649 = vpack.c.b16 %v645, %v641
        %v718 = vunpack.c.l.b16 %v570
        %v719 = vunpack.c.h.b16 %v570
        %v720 = vunpack.c.l.b16 %v571
        %v721 = vunpack.c.h.b16 %v571
        %v722 = vunpack.c.l.b16 %v572
        %v723 = vunpack.c.h.b16 %v572
        %v724 = vunpack.c.l.b16 %v573
        %v725 = vunpack.c.h.b16 %v573
        %v726 = vunpack.c.l.b16 %v574
        %v727 = vunpack.c.h.b16 %v574
        %v728 = vunpack.c.l.b16 %v575
        %v729 = vunpack.c.h.b16 %v575
        %v730 = vunpack.c.l.b16 %v576
        %v731 = vunpack.c.h.b16 %v576
        %v732 = vunpack.c.l.b16 %v577
        %v733 = vunpack.c.h.b16 %v577
        %v734 = vunpack.c.l.b16 %v578
        %v735 = vunpack.c.h.b16 %v578
        %v736 = vunpack.c.l.b16 %v579
        %v737 = vunpack.c.h.b16 %v579
        %v738 = vunpack.c.l.b16 %v580
        %v739 = vunpack.c.h.b16 %v580
        %v740 = vunpack.c.l.b16 %v581
        %v741 = vunpack.c.h.b16 %v581
        %v742 = vunpack.c.l.b16 %v582
        %v743 = vunpack.c.h.b16 %v582
        %v744 = vunpack.c.l.b16 %v583
        %v745 = vunpack.c.h.b16 %v583
        %v746 = vunpack.c.l.b16 %v584
        %v747 = vunpack.c.h.b16 %v584
        %v748 = vunpack.c.l.b16 %v585
        %v749 = vunpack.c.h.b16 %v585
        %v750 = vunpack.c.l.b16 %v586
        %v751 = vunpack.c.h.b16 %v586
        %v752 = vunpack.c.l.b16 %v587
        %v753 = vunpack.c.h.b16 %v587
        %v754 = vunpack.c.l.b16 %v588
        %v755 = vunpack.c.h.b16 %v588
        %v756 = vunpack.c.l.b16 %v589
        %v757 = vunpack.c.h.b16 %v589
        %v758 = vunpack.c.l.b16 %v590
        %v759 = vunpack.c.h.b16 %v590
        %v760 = vunpack.c.l.b16 %v591
        %v761 = vunpack.c.h.b16 %v591
        %v762 = vunpack.c.l.b16 %v592
        %v763 = vunpack.c.h.b16 %v592
        %v764 = vunpack.c.l.b16 %v593
        %v765 = vunpack.c.h.b16 %v593
        %v766 = vunpack.c.l.b16 %v594
        %v767 = vunpack.c.h.b16 %v594
        %v768 = vunpack.c.l.b16 %v595
        %v769 = vunpack.c.h.b16 %v595
        %v770 = vunpack.c.l.b16 %v596
        %v771 = vunpack.c.h.b16 %v596
        %v772 = vunpack.c.l.b16 %v597
        %v773 = vunpack.c.h.b16 %v597
        %v774 = vunpack.c.l.b16 %v598
        %v775 = vunpack.c.h.b16 %v598
        %v776 = vunpack.c.l.b16 %v599
        %v777 = vunpack.c.h.b16 %v599
        %v778 = vunpack.c.l.b16 %v600
        %v779 = vunpack.c.h.b16 %v600
        %v780 = vunpack.c.l.b16 %v601
        %v781 = vunpack.c.h.b16 %v601
        %v782 = vunpack.c.l.b16 %v602
        %v783 = vunpack.c.h.b16 %v602
        %v784 = vunpack.c.l.b16 %v603
        %v785 = vunpack.c.h.b16 %v603
        %v786 = vunpack.c.l.b16 %v604
        %v787 = vunpack.c.h.b16 %v604
        %v788 = vunpack.c.l.b16 %v605
        %v789 = vunpack.c.h.b16 %v605
        %v790 = vunpack.c.l.b16 %v606
        %v791 = vunpack.c.h.b16 %v606
        %v792 = vunpack.c.l.b16 %v607
        %v793 = vunpack.c.h.b16 %v607
        %v794 = vunpack.c.l.b16 %v608
        %v795 = vunpack.c.h.b16 %v608
        %v796 = vunpack.c.l.b16 %v609
        %v797 = vunpack.c.h.b16 %v609
        %v798 = vunpack.c.l.b16 %v610
        %v799 = vunpack.c.h.b16 %v610
        %v800 = vunpack.c.l.b16 %v611
        %v801 = vunpack.c.h.b16 %v611
        %v802 = vunpack.c.l.b16 %v612
        %v803 = vunpack.c.h.b16 %v612
        %v804 = vunpack.c.l.b16 %v613
        %v805 = vunpack.c.h.b16 %v613
        %v806 = vunpack.c.l.b16 %v614
        %v807 = vunpack.c.h.b16 %v614
        %v808 = vunpack.c.l.b16 %v615
        %v809 = vunpack.c.h.b16 %v615
        %v810 = vunpack.c.l.b16 %v616
        %v811 = vunpack.c.h.b16 %v616
        %v812 = vunpack.c.l.b16 %v617
        %v813 = vunpack.c.h.b16 %v617
        %v814 = vunpack.c.l.b16 %v618
        %v815 = vunpack.c.h.b16 %v618
        %v816 = vunpack.c.l.b16 %v619
        %v817 = vunpack.c.h.b16 %v619
        %v818 = vunpack.c.l.b16 %v620
        %v819 = vunpack.c.h.b16 %v620
        %v820 = vunpack.c.l.b16 %v621
        %v821 = vunpack.c.h.b16 %v621
        %v822 = vunpack.c.l.b16 %v622
        %v823 = vunpack.c.h.b16 %v622
        %v824 = vunpack.c.l.b16 %v623
        %v825 = vunpack.c.h.b16 %v623
        %v826 = vunpack.c.l.b16 %v624
        %v827 = vunpack.c.h.b16 %v624
        %v828 = vunpack.c.l.b16 %v625
        %v829 = vunpack.c.h.b16 %v625
        %v830 = vunpack.c.l.b16 %v626
        %v831 = vunpack.c.h.b16 %v626
        %v832 = vunpack.c.l.b16 %v627
        %v833 = vunpack.c.h.b16 %v627
        %v834 = vunpack.c.l.b16 %v628
        %v835 = vunpack.c.h.b16 %v628
        %v836 = vunpack.c.l.b16 %v629
        %v837 = vunpack.c.h.b16 %v629
        %v838 = vunpack.c.l.b16 %v630
        %v839 = vunpack.c.h.b16 %v630
        %v840 = vunpack.c.l.b16 %v631
        %v841 = vunpack.c.h.b16 %v631
        %v842 = vunpack.c.l.b16 %v632
        %v843 = vunpack.c.h.b16 %v632
        %v844 = vunpack.c.l.b16 %v633
        %v845 = vunpack.c.h.b16 %v633
        %v846 = vpack.c.b16 %v720, %v718
        %v847 = vpack.c.b16 %v721, %v719
        %v848 = vpack.c.b16 %v724, %v722
        %v849 = vpack.c.b16 %v725, %v723
        %v850 = vpack.c.b16 %v728, %v726
        %v851 = vpack.c.b16 %v729, %v727
        %v852 = vpack.c.b16 %v732, %v730
        %v853 = vpack.c.b16 %v733, %v731
        %v854 = vpack.c.b16 %v736, %v734
        %v855 = vpack.c.b16 %v737, %v735
        %v856 = vpack.c.b16 %v740, %v738
        %v857 = vpack.c.b16 %v741, %v739
        %v858 = vpack.c.b16 %v744, %v742
        %v859 = vpack.c.b16 %v745, %v743
        %v860 = vpack.c.b16 %v748, %v746
        %v861 = vpack.c.b16 %v749, %v747
        %v862 = vpack.c.b16 %v752, %v750
        %v863 = vpack.c.b16 %v753, %v751
        %v864 = vpack.c.b16 %v756, %v754
        %v865 = vpack.c.b16 %v757, %v755
        %v866 = vpack.c.b16 %v760, %v758
        %v867 = vpack.c.b16 %v761, %v759
        %v868 = vpack.c.b16 %v764, %v762
        %v869 = vpack.c.b16 %v765, %v763
        %v870 = vpack.c.b16 %v768, %v766
        %v871 = vpack.c.b16 %v769, %v767
        %v872 = vpack.c.b16 %v772, %v770
        %v873 = vpack.c.b16 %v773, %v771
        %v874 = vpack.c.b16 %v776, %v774
        %v875 = vpack.c.b16 %v777, %v775
        %v876 = vpack.c.b16 %v780, %v778
        %v877 = vpack.c.b16 %v781, %v779
        %v878 = vpack.c.b16 %v784, %v782
        %v879 = vpack.c.b16 %v785, %v783
        %v880 = vpack.c.b16 %v788, %v786
        %v881 = vpack.c.b16 %v789, %v787
        %v882 = vpack.c.b16 %v792, %v790
        %v883 = vpack.c.b16 %v793, %v791
        %v884 = vpack.c.b16 %v796, %v794
        %v885 = vpack.c.b16 %v797, %v795
        %v886 = vpack.c.b16 %v800, %v798
        %v887 = vpack.c.b16 %v801, %v799
        %v888 = vpack.c.b16 %v804, %v802
        %v889 = vpack.c.b16 %v805, %v803
        %v890 = vpack.c.b16 %v808, %v806
        %v891 = vpack.c.b16 %v809, %v807
        %v892 = vpack.c.b16 %v812, %v810
        %v893 = vpack.c.b16 %v813, %v811
        %v894 = vpack.c.b16 %v816, %v814
        %v895 = vpack.c.b16 %v817, %v815
        %v896 = vpack.c.b16 %v820, %v818
        %v897 = vpack.c.b16 %v821, %v819
        %v898 = vpack.c.b16 %v824, %v822
        %v899 = vpack.c.b16 %v825, %v823
        %v900 = vpack.c.b16 %v828, %v826
        %v901 = vpack.c.b16 %v829, %v827
        %v902 = vpack.c.b16 %v832, %v830
        %v903 = vpack.c.b16 %v833, %v831
        %v904 = vpack.c.b16 %v836, %v834
        %v905 = vpack.c.b16 %v837, %v835
        %v906 = vpack.c.b16 %v840, %v838
        %v907 = vpack.c.b16 %v841, %v839
        %v908 = vpack.c.b16 %v844, %v842
        %v909 = vpack.c.b16 %v845, %v843
        %974 = vmatprep.subr.bf16.mxu0 %v847
        %975 = vmatpush1.bf16.msra.mxu0 %v846
        %976 = vmatprep.subr.bf16.mxu0 %v849
        %977 = vmatpush1.bf16.msra.mxu0 %v848
        %978 = vmatprep.subr.bf16.mxu0 %v851
        %979 = vmatpush1.bf16.msra.mxu0 %v850
        %980 = vmatprep.subr.bf16.mxu0 %v853
        %981 = vmatpush1.bf16.msra.mxu0 %v852
        %982 = vmatprep.subr.bf16.mxu0 %v855
        %983 = vmatpush1.bf16.msra.mxu0 %v854
        %984 = vmatprep.subr.bf16.mxu0 %v857
        %985 = vmatpush1.bf16.msra.mxu0 %v856
        %986 = vmatprep.subr.bf16.mxu0 %v859
        %987 = vmatpush1.bf16.msra.mxu0 %v858
        %988 = vmatprep.subr.bf16.mxu0 %v861
        %989 = vmatpush1.bf16.msra.mxu0 %v860
        %990 = vmatprep.subr.bf16.mxu0 %v863
        %991 = vmatpush1.bf16.msra.mxu0 %v862
        %992 = vmatprep.subr.bf16.mxu0 %v865
        %993 = vmatpush1.bf16.msra.mxu0 %v864
        %994 = vmatprep.subr.bf16.mxu0 %v867
        %995 = vmatpush1.bf16.msra.mxu0 %v866
        %996 = vmatprep.subr.bf16.mxu0 %v869
        %997 = vmatpush1.bf16.msra.mxu0 %v868
        %998 = vmatprep.subr.bf16.mxu0 %v871
        %999 = vmatpush1.bf16.msra.mxu0 %v870
        %1000 = vmatprep.subr.bf16.mxu0 %v873
        %1001 = vmatpush1.bf16.msra.mxu0 %v872
        %1002 = vmatprep.subr.bf16.mxu0 %v875
        %1003 = vmatpush1.bf16.msra.mxu0 %v874
        %1004 = vmatprep.subr.bf16.mxu0 %v877
        %1005 = vmatpush1.bf16.msra.mxu0 %v876
        %1006 = vmatprep.mubr.bf16.mxu0 %v647
        %1007 = vmatmul.mubr.bf16.gmra.mrb[0].mxu0 %v646
        %v1008 = vpop.f32.mrb[0].mxu0
        %v1009 = vadd.f32 0.0, %v1008
        %v1010 = vpop.f32.mrb[0].mxu0
        %v1011 = vadd.f32 0.0, %v1010
        %v1012 = vpop.f32.mrb[0].mxu0
        %v1013 = vadd.f32 0.0, %v1012
        %v1014 = vpop.f32.mrb[0].mxu0
        %v1015 = vadd.f32 0.0, %v1014
        %1016 = vdwg.mxu0
        %1017 = vmatprep.subr.bf16.mxu0 %v879
        %1018 = vmatpush1.bf16.msra.mxu0 %v878
        %1019 = vmatprep.subr.bf16.mxu0 %v881
        %1020 = vmatpush1.bf16.msra.mxu0 %v880
        %1021 = vmatprep.subr.bf16.mxu0 %v883
        %1022 = vmatpush1.bf16.msra.mxu0 %v882
        %1023 = vmatprep.subr.bf16.mxu0 %v885
        %1024 = vmatpush1.bf16.msra.mxu0 %v884
        %1025 = vmatprep.subr.bf16.mxu0 %v887
        %1026 = vmatpush1.bf16.msra.mxu0 %v886
        %1027 = vmatprep.subr.bf16.mxu0 %v889
        %1028 = vmatpush1.bf16.msra.mxu0 %v888
        %1029 = vmatprep.subr.bf16.mxu0 %v891
        %1030 = vmatpush1.bf16.msra.mxu0 %v890
        %1031 = vmatprep.subr.bf16.mxu0 %v893
        %1032 = vmatpush1.bf16.msra.mxu0 %v892
        %1033 = vmatprep.subr.bf16.mxu0 %v895
        %1034 = vmatpush1.bf16.msra.mxu0 %v894
        %1035 = vmatprep.subr.bf16.mxu0 %v897
        %1036 = vmatpush1.bf16.msra.mxu0 %v896
        %1037 = vmatprep.subr.bf16.mxu0 %v899
        %1038 = vmatpush1.bf16.msra.mxu0 %v898
        %1039 = vmatprep.subr.bf16.mxu0 %v901
        %1040 = vmatpush1.bf16.msra.mxu0 %v900
        %1041 = vmatprep.subr.bf16.mxu0 %v903
        %1042 = vmatpush1.bf16.msra.mxu0 %v902
        %1043 = vmatprep.subr.bf16.mxu0 %v905
        %1044 = vmatpush1.bf16.msra.mxu0 %v904
        %1045 = vmatprep.subr.bf16.mxu0 %v907
        %1046 = vmatpush1.bf16.msra.mxu0 %v906
        %1047 = vmatprep.subr.bf16.mxu0 %v909
        %1048 = vmatpush1.bf16.msra.mxu0 %v908
        %1049 = vmatprep.mubr.bf16.mxu0 %v649
        %1050 = vmatmul.mubr.bf16.gmra.mrb[0].mxu0 %v648
        %v1051 = vpop.f32.mrb[0].mxu0
        %v1052 = vadd.f32 %v1009, %v1051
        %v1053 = vpop.f32.mrb[0].mxu0
        %v1054 = vadd.f32 %v1011, %v1053
        %v1055 = vpop.f32.mrb[0].mxu0
        %v1056 = vadd.f32 %v1013, %v1055
        %v1057 = vpop.f32.mrb[0].mxu0
        %v1058 = vadd.f32 %v1015, %v1057
        %1059 = vdwg.mxu0
        %v1060 = vadd.f32 %v562, %v1052
        %v1061 = vadd.f32 %v563, %v1054
        %v1062 = vadd.f32 %v564, %v1056
        %v1063 = vadd.f32 %v565, %v1058
        %1064 = vst [vmem:[#allocation2] sm:$0xff] %v1060
        %1065 = vst [vmem:[#allocation2 + $0x8] sm:$0xff] %v1061
        %1066 = vst [vmem:[#allocation2 + $0x10] sm:$0xff] %v1062
        %1067 = vst [vmem:[#allocation2 + $0x18] sm:$0xff] %v1063
        %p1068 = scmp.eq.s32.totalorder %s21, 7
        // Predicated region
        $region98: #{dis_forward.8} parent=84 // pred_check
          %p1069 = pneg %p1068
        $region99: #{dis_forward.8} parent=84 // pred_check_branch
          %1071 = sbr.rel (%p1069) target = $region101
        $region100: #{dis_forward.8} parent=84 // pred_region
          %v1072 = vld [vmem:[#allocation2] sm:$0xff]
          %v1073 = vld [vmem:[#allocation2 + $0x8] sm:$0xff]
          %v1074 = vld [vmem:[#allocation2 + $0x10] sm:$0xff]
          %v1075 = vld [vmem:[#allocation2 + $0x18] sm:$0xff]
          %v1076 = vld [vmem:[%s550] sm:$0x3]
          %v1078 = vlaneseq
          %v1079 = vshrl.u32 %v1078, 7
          %v1080 = vsub.s32 0, %v1079
          %v1081 = vrot.slane %v1076, %v1080
          %v1082 = vlaneseq
          %v1083 = vshrl.u32 %v1082, 7
          %v1084 = vsub.s32 1, %v1083
          %v1085 = vrot.slane %v1076, %v1084
          %v1088 = vadd.f32 %v1072, %v1081
          %v1089 = vadd.f32 %v1073, %v1085
          %v1090 = vadd.f32 %v1074, %v1081
          %v1091 = vadd.f32 %v1075, %v1085
          %vm1092 = vcmp.ge.f32.partialorder %v1088, 0.0
          %vm1093 = vcmp.ge.f32.partialorder %v1089, 0.0
          %vm1094 = vcmp.ge.f32.partialorder %v1090, 0.0
          %vm1095 = vcmp.ge.f32.partialorder %v1091, 0.0
          %v1096 = vmul.f32 %v1088, 0.2
          %v1097 = vmul.f32 %v1089, 0.2
          %v1098 = vmul.f32 %v1090, 0.2
          %v1099 = vmul.f32 %v1091, 0.2
          %v1100 = vsel %vm1092, %v1088, %v1096
          %v1101 = vsel %vm1093, %v1089, %v1097
          %v1102 = vsel %vm1094, %v1090, %v1098
          %v1103 = vsel %vm1095, %v1091, %v1099
          %1104 = vst [vmem:[%s542] sm:$0xff] %v1100
          %1105 = vst [vmem:[%s542 + $0x8] sm:$0xff] %v1101
          %1106 = vst [vmem:[%s542 + $0x10] sm:$0xff] %v1102
          %1107 = vst [vmem:[%s542 + $0x18] sm:$0xff] %v1103
        $region101: #{dis_forward.8} parent=84 // pred_fallthru
          _
        %s1108 = sand.u32 %s125, 1
        %s1109 = sand.u32 %s125, 1
        %s1110 = smul.addr %s1109, 32
        %s1111 = scalar_lea.vmem [#allocation5], %s1110
        // Predicated region
        $region102: #{dis_forward.8} parent=84 // pred_check
          %p1112 = pneg %p135
        $region103: #{dis_forward.8} parent=84 // pred_check_branch
          %1114 = sbr.rel (%p1112) target = $region105
        $region104: #{dis_forward.8} parent=84 // pred_region
          %s1115 = smul.u32 2, %s19
          %s1116 = smul.u32 2, %s20
          %s1117 = smul.addr %s1115, 4
          %s1118 = sadd.s32 %s1116, %s1117
          %s1119 = smul.addr %s1118, 8
          %s1120 = scalar_lea.vmem %s3, %s1119
          // Predicated region
          $region106: #{dis_forward.8} parent=104 // pred_check
            _
          $region107: #{dis_forward.8} parent=104 // pred_check_branch
            %1122 = sbr.rel (0) target = $region109
          $region108: #{dis_forward.8} parent=104 // pred_region
            // Predicated region
            $region110: #{dis_forward.8} parent=108 // pred_check
              _
            $region111: #{dis_forward.8} parent=108 // pred_check_branch
              %1124 = sbr.rel (0) target = $region113
            $region112: #{dis_forward.8} parent=108 // pred_region
              loop: start=0, step=1, limit=1
              $region114: #{dis_forward.8} parent=112 // loop_pre_header
                _
              $region115: #{dis_forward.8} parent=112 // loop_header
                %s1126 = sphi 0, %s1130
                %p1127 = scmp.ge.s32.totalorder %s1126, 1
                %s1131 = sphi %s1111, %s1111
                %s1132 = sphi %s1120, %s1120
              $region116: #{dis_forward.8} parent=112 // loop_header_branch
                %1129 = sbr.rel (%p1127) target = $region120
              $region117: #{dis_forward.8} parent=112 // loop_body
                %v1133 = vld [vmem:[%s1131] sm:$0xff]
                %1134 = vst [vmem:[%s1132] sm:$0xff] %v1133
                %v1135 = vld [vmem:[%s1131 + $0x8] sm:$0xff]
                %1136 = vst [vmem:[%s1132 + $0x8] sm:$0xff] %v1135
                %v1137 = vld [vmem:[%s1131 + $0x10] sm:$0xff]
                %1138 = vst [vmem:[%s1132 + $0x20] sm:$0xff] %v1137
                %v1139 = vld [vmem:[%s1131 + $0x18] sm:$0xff]
                %1140 = vst [vmem:[%s1132 + $0x28] sm:$0xff] %v1139
              $region118: #{dis_forward.8} parent=112 // loop_footer
                %s1130 = sadd.s32 1, %s1126
              $region119: #{dis_forward.8} parent=112 // loop_footer_branch
                %1125 = sbr.rel target = $region115
              $region120: #{dis_forward.8} parent=112 // loop_exit
                _
            $region113: #{dis_forward.8} parent=108 // pred_fallthru
              _
            // Predicated region
            $region121: #{dis_forward.8} parent=108 // pred_check
              _
            $region122: #{dis_forward.8} parent=108 // pred_check_branch
              %1142 = sbr.rel target = $region124
            $region123: #{dis_forward.8} parent=108 // pred_region
              _
            $region124: #{dis_forward.8} parent=108 // pred_fallthru
              _
          $region109: #{dis_forward.8} parent=104 // pred_fallthru
            _
          %1143 = vnop
        $region105: #{dis_forward.8} parent=84 // pred_fallthru
          _
      $region85: #{dis_forward.8} parent=5 // pred_fallthru
        _
      %p1144 = scmp.le.s32.totalorder 2, %s9
      // Predicated region
      $region125: #{dis_forward.8} parent=5 // pred_check
        %p1145 = pneg %p1144
      $region126: #{dis_forward.8} parent=5 // pred_check_branch
        %1147 = sbr.rel (%p1145) target = $region128
      $region127: #{dis_forward.8} parent=5 // pred_region
        %s1148 = ssub.s32 %s9, 2
        // Predicated region
        $region129: #{dis_forward.8} parent=127 // pred_check
          %p1149 = pneg %p141
        $region130: #{dis_forward.8} parent=127 // pred_check_branch
          %1151 = sbr.rel (%p1149) target = $region132
        $region131: #{dis_forward.8} parent=127 // pred_region
          %s1152 = sand.u32 %s126, 1
          %s1153 = sand.u32 %s126, 1
          %s1154 = smul.addr %s1153, 32
          %s1155 = scalar_lea.vmem [#allocation5], %s1154
        $region132: #{dis_forward.8} parent=127 // pred_fallthru
          _
      $region128: #{dis_forward.8} parent=5 // pred_fallthru
        _
    $region6: #{dis_forward.8} parent=1 // loop_footer
      %s13 = sadd.s32 1, %s9
    $region7: #{dis_forward.8} parent=1 // loop_footer_branch
      %8 = sbr.rel target = $region3
    $region8: #{dis_forward.8} parent=1 // loop_exit
      _

// kernel: dis_forward.9
$region0: #{dis_forward.9}
  #allocation0 [shape = 'u32[]', space=smem, size = 0x4, offset = 0x4, fixed_abs, tag = 'smem constant byte address 0x4 - core index']
  #allocation1 [shape = 'u32[144,128]{1,0:T(1,128)}', space=vmem, size = 0x12000, scoped, tag = 'internal scratch']
  #allocation2 [shape = 'f32[16,128]{1,0:T(8,128)}', space=vmem, size = 0x2000, scoped, tag = 'scratch operand']
  %s0 = inlined_call_operand.vmem [shape: bf16[16,8192], index: 0, kind: input, shape index: {}]
  %s1 = inlined_call_operand.vmem [shape: bf16[8192,128], index: 1, kind: input, shape index: {}]
  %s2 = inlined_call_operand.vmem [shape: f32[1,128], index: 2, kind: input, shape index: {}]
  %s3 = inlined_call_operand.vmem [shape: f32[16,128], index: 3, kind: output, shape index: {}]
  %s4 = sld [smem:[#allocation0]]
  $region76: #{dis_forward.9} parent=0
    _
  %s6 = ssub.s32 1, %s4
  %s7 = scalar_select 0, %s6, %s4
  $region1: #{dis_forward.9} parent=0
    #allocation3 [shape = 'u8[32768]{0}', space=vmem, size = 0x8000, scoped, tag = 'input window, operand 0']
    loop: start=0, step=1, limit=18
    $region2: #{dis_forward.9} parent=1 // loop_pre_header
      _
    $region3: #{dis_forward.9} parent=1 // loop_header
      %s9 = sphi 0, %s13
      %p10 = scmp.ge.s32.totalorder %s9, 18
      %s16 = sphi 0, %s35
      %s17 = sphi 0, %s31
      %s18 = sphi 0, %s27
      %s19 = sphi 0, %s16
      %s20 = sphi 0, %s17
      %s21 = sphi 0, %s18
      %s22 = sphi 0, %s19
      %s23 = sphi 0, %s20
      %s24 = sphi 0, %s21
      %s40 = sphi 0, %s42
      %s43 = sphi 0, %s40
      %s44 = sphi 0, %s43
      %s60 = sphi 0, %s44
      %s68 = sphi 0, %s70
      %s71 = sphi 0, %s68
      %s72 = sphi 0, %s71
      %s88 = sphi 0, %s72
      %s94 = sphi 0, %s96
      %s97 = sphi 0, %s94
      %s98 = sphi 0, %s97
      %s114 = sphi 0, %s98
      %s122 = sphi 0, %s124
      %s125 = sphi 0, %s122
      %s126 = sphi 0, %s125
      %s142 = sphi 0, %s126
    $region4: #{dis_forward.9} parent=1 // loop_header_branch
      %12 = sbr.rel (%p10) target = $region8
    $region5: #{dis_forward.9} parent=1 // loop_body
      %s14 = ssub.s32 %s9, 1
      %s15 = ssub.s32 %s9, 2
      %s25 = sadd.s32 1, %s18
      %p26 = scmp.ge.s32.totalorder %s25, 16
      %s27 = scalar_select %p26, 0, %s25
      %s28 = sadd.s32 1, %s17
      %s29 = scalar_select %p26, %s28, %s17
      %p30 = scmp.ge.s32.totalorder %s29, 1
      %s31 = scalar_select %p30, 0, %s29
      %s32 = sadd.s32 1, %s16
      %s33 = scalar_select %p30, %s32, %s16
      %p34 = scmp.ge.s32.totalorder %s33, 1
      %s35 = scalar_select %p34, 0, %s33
      %s36 = ssub.s32 %s16, %s35
      %s37 = ssub.s32 %s18, %s27
      %s38 = sor.u32 %s36, %s37
      %p39 = scmp.eq.s32.totalorder %s38, 0
      %s41 = sadd.s32 %s40, 1
      %s42 = scalar_select %p39, %s40, %s41
      %p45 = pneg %p39
      %p46 = scmp.eq.s32.totalorder %s9, 15
      %p47 = por %p45, %p46
      %p48 = scmp.ne.s32.totalorder %s40, %s43
      %p49 = scmp.eq.s32.totalorder %s9, 0
      %p50 = por %p48, %p49
      %p51 = scmp.ne.s32.totalorder %s40, %s43
      %p52 = scmp.eq.s32.totalorder %s14, 15
      %p53 = por %p51, %p52
      %p54 = scmp.ne.s32.totalorder %s43, %s44
      %p55 = scmp.eq.s32.totalorder %s14, 0
      %p56 = por %p54, %p55
      %p57 = scmp.ne.s32.totalorder %s43, %s44
      %p58 = scmp.eq.s32.totalorder %s15, 15
      %p59 = por %p57, %p58
      %p61 = scmp.ne.s32.totalorder %s44, %s60
      %p62 = scmp.eq.s32.totalorder %s15, 0
      %p63 = por %p61, %p62
      %s64 = ssub.s32 %s18, %s27
      %s65 = ssub.s32 %s17, %s31
      %s66 = sor.u32 %s64, %s65
      %p67 = scmp.eq.s32.totalorder %s66, 0
      %s69 = sadd.s32 %s68, 1
      %s70 = scalar_select %p67, %s68, %s69
      %p73 = pneg %p67
      %p74 = scmp.eq.s32.totalorder %s9, 15
      %p75 = por %p73, %p74
      %p76 = scmp.ne.s32.totalorder %s68, %s71
      %p77 = scmp.eq.s32.totalorder %s9, 0
      %p78 = por %p76, %p77
      %p79 = scmp.ne.s32.totalorder %s68, %s71
      %p80 = scmp.eq.s32.totalorder %s14, 15
      %p81 = por %p79, %p80
      %p82 = scmp.ne.s32.totalorder %s71, %s72
      %p83 = scmp.eq.s32.totalorder %s14, 0
      %p84 = por %p82, %p83
      %p85 = scmp.ne.s32.totalorder %s71, %s72
      %p86 = scmp.eq.s32.totalorder %s15, 15
      %p87 = por %p85, %p86
      %p89 = scmp.ne.s32.totalorder %s72, %s88
      %p90 = scmp.eq.s32.totalorder %s15, 0
      %p91 = por %p89, %p90
      %s92 = ssub.s32 %s17, %s31
      %p93 = scmp.eq.s32.totalorder %s92, 0
      %s95 = sadd.s32 %s94, 1
      %s96 = scalar_select %p93, %s94, %s95
      %p99 = pneg %p93
      %p100 = scmp.eq.s32.totalorder %s9, 15
      %p101 = por %p99, %p100
      %p102 = scmp.ne.s32.totalorder %s94, %s97
      %p103 = scmp.eq.s32.totalorder %s9, 0
      %p104 = por %p102, %p103
      %p105 = scmp.ne.s32.totalorder %s94, %s97
      %p106 = scmp.eq.s32.totalorder %s14, 15
      %p107 = por %p105, %p106
      %p108 = scmp.ne.s32.totalorder %s97, %s98
      %p109 = scmp.eq.s32.totalorder %s14, 0
      %p110 = por %p108, %p109
      %p111 = scmp.ne.s32.totalorder %s97, %s98
      %p112 = scmp.eq.s32.totalorder %s15, 15
      %p113 = por %p111, %p112
      %p115 = scmp.ne.s32.totalorder %s98, %s114
      %p116 = scmp.eq.s32.totalorder %s15, 0
      %p117 = por %p115, %p116
      %s118 = ssub.s32 %s16, %s35
      %s119 = ssub.s32 %s17, %s31
      %s120 = sor.u32 %s118, %s119
      %p121 = scmp.eq.s32.totalorder %s120, 0
      %s123 = sadd.s32 %s122, 1
      %s124 = scalar_select %p121, %s122, %s123
      %p127 = pneg %p121
      %p128 = scmp.eq.s32.totalorder %s9, 15
      %p129 = por %p127, %p128
      %p130 = scmp.ne.s32.totalorder %s122, %s125
      %p131 = scmp.eq.s32.totalorder %s9, 0
      %p132 = por %p130, %p131
      %p133 = scmp.ne.s32.totalorder %s122, %s125
      %p134 = scmp.eq.s32.totalorder %s14, 15
      %p135 = por %p133, %p134
      %p136 = scmp.ne.s32.totalorder %s125, %s126
      %p137 = scmp.eq.s32.totalorder %s14, 0
      %p138 = por %p136, %p137
      %p139 = scmp.ne.s32.totalorder %s125, %s126
      %p140 = scmp.eq.s32.totalorder %s15, 15
      %p141 = por %p139, %p140
      %p143 = scmp.ne.s32.totalorder %s126, %s142
      %p144 = scmp.eq.s32.totalorder %s15, 0
      %p145 = por %p143, %p144
      %p146 = scmp.le.s32.totalorder 1, %s9
      %p147 = scmp.lt.s32.totalorder %s9, 17
      %p148 = pnand %p146, %p147
      %p149 = pneg %p148
      // Predicated region
      $region9: #{dis_forward.9} parent=5 // pred_check
        _
      $region10: #{dis_forward.9} parent=5 // pred_check_branch
        %151 = sbr.rel (%p148) target = $region12
      $region11: #{dis_forward.9} parent=5 // pred_region
        %s152 = ssub.s32 %s9, 1
        // Predicated region
        $region13: #{dis_forward.9} parent=11 // pred_check
          %p153 = pneg %p110
        $region14: #{dis_forward.9} parent=11 // pred_check_branch
          %155 = sbr.rel (%p153) target = $region16
        $region15: #{dis_forward.9} parent=11 // pred_region
          %p156 = scmp.lt.s32.totalorder %s20, 0
          %s157 = scalar_select %p156, %s20, 0
          %s158 = scalar_lea.vmem %s2, %s157
        $region16: #{dis_forward.9} parent=11 // pred_fallthru
          _
      $region12: #{dis_forward.9} parent=5 // pred_fallthru
        _
      %p159 = scmp.lt.s32.totalorder %s9, 16
      // Predicated region
      $region17: #{dis_forward.9} parent=5 // pred_check
        %p160 = pneg %p159
      $region18: #{dis_forward.9} parent=5 // pred_check_branch
        %162 = sbr.rel (%p160) target = $region20
      $region19: #{dis_forward.9} parent=5 // pred_region
        // Predicated region
        $region21: #{dis_forward.9} parent=19 // pred_check
          %p163 = pneg %p50
        $region22: #{dis_forward.9} parent=19 // pred_check_branch
          %165 = sbr.rel (%p163) target = $region24
        $region23: #{dis_forward.9} parent=19 // pred_region
          %s166 = sand.u32 %s40, 1
          %s167 = sand.u32 %s40, 1
          %s168 = smul.addr %s167, 32
          %s169 = scalar_lea.vmem [#allocation3], %s168
          %s170 = smul.u32 2, %s16
          %s171 = smul.u32 4, %s18
          %s172 = smul.addr %s170, 64
          %s173 = sadd.s32 %s171, %s172
          %s174 = smul.addr %s173, 4
          %s175 = scalar_lea.vmem %s0, %s174
          // Predicated region
          $region25: #{dis_forward.9} parent=23 // pred_check
            _
          $region26: #{dis_forward.9} parent=23 // pred_check_branch
            %177 = sbr.rel (0) target = $region28
          $region27: #{dis_forward.9} parent=23 // pred_region
            // Predicated region
            $region29: #{dis_forward.9} parent=27 // pred_check
              _
            $region30: #{dis_forward.9} parent=27 // pred_check_branch
              %179 = sbr.rel (0) target = $region32
            $region31: #{dis_forward.9} parent=27 // pred_region
              loop: start=0, step=1, limit=1
              $region33: #{dis_forward.9} parent=31 // loop_pre_header
                _
              $region34: #{dis_forward.9} parent=31 // loop_header
                %s181 = sphi 0, %s185
                %p182 = scmp.ge.s32.totalorder %s181, 1
                %s186 = sphi %s175, %s175
                %s187 = sphi %s169, %s169
              $region35: #{dis_forward.9} parent=31 // loop_header_branch
                %184 = sbr.rel (%p182) target = $region39
              $region36: #{dis_forward.9} parent=31 // loop_body
                %v188 = vld [vmem:[%s186] sm:$0xff]
                %189 = vst [vmem:[%s187] sm:$0xff] %v188
                %v190 = vld [vmem:[%s186 + $0x8] sm:$0xff]
                %191 = vst [vmem:[%s187 + $0x8] sm:$0xff] %v190
                %v192 = vld [vmem:[%s186 + $0x100] sm:$0xff]
                %193 = vst [vmem:[%s187 + $0x10] sm:$0xff] %v192
                %v194 = vld [vmem:[%s186 + $0x108] sm:$0xff]
                %195 = vst [vmem:[%s187 + $0x18] sm:$0xff] %v194
              $region37: #{dis_forward.9} parent=31 // loop_footer
                %s185 = sadd.s32 1, %s181
              $region38: #{dis_forward.9} parent=31 // loop_footer_branch
                %180 = sbr.rel target = $region34
              $region39: #{dis_forward.9} parent=31 // loop_exit
                _
            $region32: #{dis_forward.9} parent=27 // pred_fallthru
              _
            // Predicated region
            $region40: #{dis_forward.9} parent=27 // pred_check
              _
            $region41: #{dis_forward.9} parent=27 // pred_check_branch
              %197 = sbr.rel target = $region43
            $region42: #{dis_forward.9} parent=27 // pred_region
              _
            $region43: #{dis_forward.9} parent=27 // pred_fallthru
              _
          $region28: #{dis_forward.9} parent=23 // pred_fallthru
            _
          %198 = vnop
        $region24: #{dis_forward.9} parent=19 // pred_fallthru
          _
        // Predicated region
        $region44: #{dis_forward.9} parent=19 // pred_check
          %p199 = pneg %p78
        $region45: #{dis_forward.9} parent=19 // pred_check_branch
          %201 = sbr.rel (%p199) target = $region47
        $region46: #{dis_forward.9} parent=19 // pred_region
          %s202 = smul.u32 64, %s18
          %p203 = scmp.lt.s32.totalorder %s202, 1023
          %s204 = scalar_select %p203, %s202, 1023
          %p205 = scmp.lt.s32.totalorder %s17, 0
          %s206 = scalar_select %p205, %s17, 0
          %s207 = sadd.s32 %s206, %s204
          %s208 = smul.addr %s207, 4
          %s209 = scalar_lea.vmem %s1, %s208
          %s210 = smul.u32 64, %s18
        $region47: #{dis_forward.9} parent=19 // pred_fallthru
          _
      $region20: #{dis_forward.9} parent=5 // pred_fallthru
        _
      %p211 = scmp.le.s32.totalorder 1, %s9
      %p212 = scmp.lt.s32.totalorder %s9, 17
      %p213 = pnand %p211, %p212
      %p214 = pneg %p213
      // Predicated region
      $region48: #{dis_forward.9} parent=5 // pred_check
        _
      $region49: #{dis_forward.9} parent=5 // pred_check_branch
        %216 = sbr.rel (%p213) target = $region51
      $region50: #{dis_forward.9} parent=5 // pred_region
        %s217 = ssub.s32 %s9, 1
        %s218 = sand.u32 %s43, 1
        %s219 = sand.u32 %s43, 1
        %s220 = smul.addr %s219, 32
        %s221 = scalar_lea.vmem [#allocation3], %s220
        // Predicated region
        $region52: #{dis_forward.9} parent=50 // pred_check
          %p222 = pneg %p56
        $region53: #{dis_forward.9} parent=50 // pred_check_branch
          %224 = sbr.rel (%p222) target = $region55
        $region54: #{dis_forward.9} parent=50 // pred_region
          _
        $region55: #{dis_forward.9} parent=50 // pred_fallthru
          _
        %s225 = sand.u32 %s43, 1
        %s226 = sand.u32 %s43, 1
        %s227 = smul.addr %s226, 32
        %s228 = scalar_lea.vmem [#allocation3], %s227
        %p229 = pneg %p56
        %p230 = pneg %p53
        %s231 = smul.u32 64, %s21
        %p232 = scmp.lt.s32.totalorder %s231, 1023
        %s233 = scalar_select %p232, %s231, 1023
        %p234 = scmp.lt.s32.totalorder %s20, 0
        %s235 = scalar_select %p234, %s20, 0
        %s236 = sadd.s32 %s235, %s233
        %s237 = smul.addr %s236, 4
        %s238 = scalar_lea.vmem %s1, %s237
        %p239 = pneg %p84
        %p240 = pneg %p81
        %p241 = scmp.lt.s32.totalorder %s20, 0
        %s242 = scalar_select %p241, %s20, 0
        %s243 = scalar_lea.vmem %s2, %s242
        %p244 = pneg %p110
        %p245 = pneg %p107
        %p246 = pneg %p138
        %p247 = pneg %p135
        %s248 = smul.u32 2, %s19
        %p249 = scmp.lt.s32.totalorder %s248, 1
        %s250 = scalar_select %p249, %s248, 1
        %p251 = scmp.lt.s32.totalorder %s20, 0
        %s252 = scalar_select %p251, %s20, 0
        %s253 = sadd.s32 %s252, %s250
        %s254 = smul.addr %s253, 8
        %s255 = scalar_lea.vmem %s3, %s254
        %s256 = smul.u32 2, %s19
        %s257 = smul.u32 4, %s21
        %s258 = smul.u32 64, %s21
        %p259 = scmp.lt.s32.totalorder %s258, 1023
        %s260 = scalar_select %p259, %s258, 1023
        %p261 = scmp.lt.s32.totalorder %s20, 0
        %s262 = scalar_select %p261, %s20, 0
        %s263 = sadd.s32 %s262, %s260
        %s264 = smul.addr %s263, 4
        %s265 = scalar_lea.vmem %s1, %s264
        %s266 = smul.u32 64, %s21
        %p267 = scmp.lt.s32.totalorder %s20, 0
        %s268 = scalar_select %p267, %s20, 0
        %s269 = scalar_lea.vmem %s2, %s268
        %s270 = smul.u32 2, %s19
        %p271 = scmp.lt.s32.totalorder %s270, 1
        %s272 = scalar_select %p271, %s270, 1
        %p273 = scmp.lt.s32.totalorder %s20, 0
        %s274 = scalar_select %p273, %s20, 0
        %s275 = sadd.s32 %s274, %s272
        %s276 = smul.addr %s275, 8
        %s277 = scalar_lea.vmem %s3, %s276
        %s278 = smul.u32 2, %s19
        %p280 = scmp.eq.s32.totalorder %s21, 0
        // Predicated region
        $region56: #{dis_forward.9} parent=50 // pred_check
          %p281 = pneg %p280
        $region57: #{dis_forward.9} parent=50 // pred_check_branch
          %283 = sbr.rel (%p281) target = $region59
        $region58: #{dis_forward.9} parent=50 // pred_region
          %284 = vst [vmem:[#allocation2] sm:$0xff] 0.0
          %285 = vst [vmem:[#allocation2 + $0x8] sm:$0xff] 0.0
        $region59: #{dis_forward.9} parent=50 // pred_fallthru
          _
        %v286 = vld [vmem:[#allocation2] sm:$0xff]
        %v287 = vld [vmem:[#allocation2 + $0x8] sm:$0xff]
        %v288 = vld [vmem:[%s221] sm:$0xff]
        %v289 = vld [vmem:[%s221 + $0x8] sm:$0xff]
        %v290 = vld [vmem:[%s221 + $0x10] sm:$0xff]
        %v291 = vld [vmem:[%s221 + $0x18] sm:$0xff]
        %v292 = vld [vmem:[%s265] sm:$0xf]
        %v293 = vld [vmem:[%s265 + $0x4] sm:$0xf]
        %v294 = vld [vmem:[%s265 + $0x8] sm:$0xf]
        %v295 = vld [vmem:[%s265 + $0xc] sm:$0xf]
        %v296 = vld [vmem:[%s265 + $0x10] sm:$0xf]
        %v297 = vld [vmem:[%s265 + $0x14] sm:$0xf]
        %v298 = vld [vmem:[%s265 + $0x18] sm:$0xf]
        %v299 = vld [vmem:[%s265 + $0x1c] sm:$0xf]
        %v300 = vld [vmem:[%s265 + $0x20] sm:$0xf]
        %v301 = vld [vmem:[%s265 + $0x24] sm:$0xf]
        %v302 = vld [vmem:[%s265 + $0x28] sm:$0xf]
        %v303 = vld [vmem:[%s265 + $0x2c] sm:$0xf]
        %v304 = vld [vmem:[%s265 + $0x30] sm:$0xf]
        %v305 = vld [vmem:[%s265 + $0x34] sm:$0xf]
        %v306 = vld [vmem:[%s265 + $0x38] sm:$0xf]
        %v307 = vld [vmem:[%s265 + $0x3c] sm:$0xf]
        %v308 = vld [vmem:[%s265 + $0x40] sm:$0xf]
        %v309 = vld [vmem:[%s265 + $0x44] sm:$0xf]
        %v310 = vld [vmem:[%s265 + $0x48] sm:$0xf]
        %v311 = vld [vmem:[%s265 + $0x4c] sm:$0xf]
        %v312 = vld [vmem:[%s265 + $0x50] sm:$0xf]
        %v313 = vld [vmem:[%s265 + $0x54] sm:$0xf]
        %v314 = vld [vmem:[%s265 + $0x58] sm:$0xf]
        %v315 = vld [vmem:[%s265 + $0x5c] sm:$0xf]
        %v316 = vld [vmem:[%s265 + $0x60] sm:$0xf]
        %v317 = vld [vmem:[%s265 + $0x64] sm:$0xf]
        %v318 = vld [vmem:[%s265 + $0x68] sm:$0xf]
        %v319 = vld [vmem:[%s265 + $0x6c] sm:$0xf]
        %v320 = vld [vmem:[%s265 + $0x70] sm:$0xf]
        %v321 = vld [vmem:[%s265 + $0x74] sm:$0xf]
        %v322 = vld [vmem:[%s265 + $0x78] sm:$0xf]
        %v323 = vld [vmem:[%s265 + $0x7c] sm:$0xf]
        %v324 = vld [vmem:[%s265 + $0x80] sm:$0xf]
        %v325 = vld [vmem:[%s265 + $0x84] sm:$0xf]
        %v326 = vld [vmem:[%s265 + $0x88] sm:$0xf]
        %v327 = vld [vmem:[%s265 + $0x8c] sm:$0xf]
        %v328 = vld [vmem:[%s265 + $0x90] sm:$0xf]
        %v329 = vld [vmem:[%s265 + $0x94] sm:$0xf]
        %v330 = vld [vmem:[%s265 + $0x98] sm:$0xf]
        %v331 = vld [vmem:[%s265 + $0x9c] sm:$0xf]
        %v332 = vld [vmem:[%s265 + $0xa0] sm:$0xf]
        %v333 = vld [vmem:[%s265 + $0xa4] sm:$0xf]
        %v334 = vld [vmem:[%s265 + $0xa8] sm:$0xf]
        %v335 = vld [vmem:[%s265 + $0xac] sm:$0xf]
        %v336 = vld [vmem:[%s265 + $0xb0] sm:$0xf]
        %v337 = vld [vmem:[%s265 + $0xb4] sm:$0xf]
        %v338 = vld [vmem:[%s265 + $0xb8] sm:$0xf]
        %v339 = vld [vmem:[%s265 + $0xbc] sm:$0xf]
        %v340 = vld [vmem:[%s265 + $0xc0] sm:$0xf]
        %v341 = vld [vmem:[%s265 + $0xc4] sm:$0xf]
        %v342 = vld [vmem:[%s265 + $0xc8] sm:$0xf]
        %v343 = vld [vmem:[%s265 + $0xcc] sm:$0xf]
        %v344 = vld [vmem:[%s265 + $0xd0] sm:$0xf]
        %v345 = vld [vmem:[%s265 + $0xd4] sm:$0xf]
        %v346 = vld [vmem:[%s265 + $0xd8] sm:$0xf]
        %v347 = vld [vmem:[%s265 + $0xdc] sm:$0xf]
        %v348 = vld [vmem:[%s265 + $0xe0] sm:$0xf]
        %v349 = vld [vmem:[%s265 + $0xe4] sm:$0xf]
        %v350 = vld [vmem:[%s265 + $0xe8] sm:$0xf]
        %v351 = vld [vmem:[%s265 + $0xec] sm:$0xf]
        %v352 = vld [vmem:[%s265 + $0xf0] sm:$0xf]
        %v353 = vld [vmem:[%s265 + $0xf4] sm:$0xf]
        %v354 = vld [vmem:[%s265 + $0xf8] sm:$0xf]
        %v355 = vld [vmem:[%s265 + $0xfc] sm:$0xf]
        %v360 = vunpack.c.l.b16 %v288
        %v361 = vunpack.c.h.b16 %v288
        %v362 = vunpack.c.l.b16 %v289
        %v363 = vunpack.c.h.b16 %v289
        %v364 = vunpack.c.l.b16 %v290
        %v365 = vunpack.c.h.b16 %v290
        %v366 = vunpack.c.l.b16 %v291
        %v367 = vunpack.c.h.b16 %v291
        %v368 = vpack.c.b16 %v364, %v360
        %v369 = vpack.c.b16 %v365, %v361
        %v370 = vpack.c.b16 %v366, %v362
        %v371 = vpack.c.b16 %v367, %v363
        %v440 = vunpack.c.l.b16 %v292
        %v441 = vunpack.c.l.b16 %v293
        %v442 = vunpack.c.l.b16 %v294
        %v443 = vunpack.c.l.b16 %v295
        %v444 = vunpack.c.l.b16 %v296
        %v445 = vunpack.c.l.b16 %v297
        %v446 = vunpack.c.l.b16 %v298
        %v447 = vunpack.c.l.b16 %v299
        %v448 = vunpack.c.l.b16 %v300
        %v449 = vunpack.c.l.b16 %v301
        %v450 = vunpack.c.l.b16 %v302
        %v451 = vunpack.c.l.b16 %v303
        %v452 = vunpack.c.l.b16 %v304
        %v453 = vunpack.c.l.b16 %v305
        %v454 = vunpack.c.l.b16 %v306
        %v455 = vunpack.c.l.b16 %v307
        %v456 = vunpack.c.l.b16 %v308
        %v457 = vunpack.c.l.b16 %v309
        %v458 = vunpack.c.l.b16 %v310
        %v459 = vunpack.c.l.b16 %v311
        %v460 = vunpack.c.l.b16 %v312
        %v461 = vunpack.c.l.b16 %v313
        %v462 = vunpack.c.l.b16 %v314
        %v463 = vunpack.c.l.b16 %v315
        %v464 = vunpack.c.l.b16 %v316
        %v465 = vunpack.c.l.b16 %v317
        %v466 = vunpack.c.l.b16 %v318
        %v467 = vunpack.c.l.b16 %v319
        %v468 = vunpack.c.l.b16 %v320
        %v469 = vunpack.c.l.b16 %v321
        %v470 = vunpack.c.l.b16 %v322
        %v471 = vunpack.c.l.b16 %v323
        %v472 = vunpack.c.l.b16 %v324
        %v473 = vunpack.c.l.b16 %v325
        %v474 = vunpack.c.l.b16 %v326
        %v475 = vunpack.c.l.b16 %v327
        %v476 = vunpack.c.l.b16 %v328
        %v477 = vunpack.c.l.b16 %v329
        %v478 = vunpack.c.l.b16 %v330
        %v479 = vunpack.c.l.b16 %v331
        %v480 = vunpack.c.l.b16 %v332
        %v481 = vunpack.c.l.b16 %v333
        %v482 = vunpack.c.l.b16 %v334
        %v483 = vunpack.c.l.b16 %v335
        %v484 = vunpack.c.l.b16 %v336
        %v485 = vunpack.c.l.b16 %v337
        %v486 = vunpack.c.l.b16 %v338
        %v487 = vunpack.c.l.b16 %v339
        %v488 = vunpack.c.l.b16 %v340
        %v489 = vunpack.c.l.b16 %v341
        %v490 = vunpack.c.l.b16 %v342
        %v491 = vunpack.c.l.b16 %v343
        %v492 = vunpack.c.l.b16 %v344
        %v493 = vunpack.c.l.b16 %v345
        %v494 = vunpack.c.l.b16 %v346
        %v495 = vunpack.c.l.b16 %v347
        %v496 = vunpack.c.l.b16 %v348
        %v497 = vunpack.c.l.b16 %v349
        %v498 = vunpack.c.l.b16 %v350
        %v499 = vunpack.c.l.b16 %v351
        %v500 = vunpack.c.l.b16 %v352
        %v501 = vunpack.c.l.b16 %v353
        %v502 = vunpack.c.l.b16 %v354
        %v503 = vunpack.c.l.b16 %v355
        %v504 = vpack.c.b16 %v441, %v440
        %v505 = vpack.c.b16 %v443, %v442
        %v506 = vpack.c.b16 %v445, %v444
        %v507 = vpack.c.b16 %v447, %v446
        %v508 = vpack.c.b16 %v449, %v448
        %v509 = vpack.c.b16 %v451, %v450
        %v510 = vpack.c.b16 %v453, %v452
        %v511 = vpack.c.b16 %v455, %v454
        %v512 = vpack.c.b16 %v457, %v456
        %v513 = vpack.c.b16 %v459, %v458
        %v514 = vpack.c.b16 %v461, %v460
        %v515 = vpack.c.b16 %v463, %v462
        %v516 = vpack.c.b16 %v465, %v464
        %v517 = vpack.c.b16 %v467, %v466
        %v518 = vpack.c.b16 %v469, %v468
        %v519 = vpack.c.b16 %v471, %v470
        %v520 = vpack.c.b16 %v473, %v472
        %v521 = vpack.c.b16 %v475, %v474
        %v522 = vpack.c.b16 %v477, %v476
        %v523 = vpack.c.b16 %v479, %v478
        %v524 = vpack.c.b16 %v481, %v480
        %v525 = vpack.c.b16 %v483, %v482
        %v526 = vpack.c.b16 %v485, %v484
        %v527 = vpack.c.b16 %v487, %v486
        %v528 = vpack.c.b16 %v489, %v488
        %v529 = vpack.c.b16 %v491, %v490
        %v530 = vpack.c.b16 %v493, %v492
        %v531 = vpack.c.b16 %v495, %v494
        %v532 = vpack.c.b16 %v497, %v496
        %v533 = vpack.c.b16 %v499, %v498
        %v534 = vpack.c.b16 %v501, %v500
        %v535 = vpack.c.b16 %v503, %v502
        %568 = vmatprep.subr.bf16.mxu0 0
        %569 = vmatpush1.bf16.msra.mxu0 %v504
        %570 = vmatprep.subr.bf16.mxu0 0
        %571 = vmatpush1.bf16.msra.mxu0 %v505
        %572 = vmatprep.subr.bf16.mxu0 0
        %573 = vmatpush1.bf16.msra.mxu0 %v506
        %574 = vmatprep.subr.bf16.mxu0 0
        %575 = vmatpush1.bf16.msra.mxu0 %v507
        %576 = vmatprep.subr.bf16.mxu0 0
        %577 = vmatpush1.bf16.msra.mxu0 %v508
        %578 = vmatprep.subr.bf16.mxu0 0
        %579 = vmatpush1.bf16.msra.mxu0 %v509
        %580 = vmatprep.subr.bf16.mxu0 0
        %581 = vmatpush1.bf16.msra.mxu0 %v510
        %582 = vmatprep.subr.bf16.mxu0 0
        %583 = vmatpush1.bf16.msra.mxu0 %v511
        %584 = vmatprep.subr.bf16.mxu0 0
        %585 = vmatpush1.bf16.msra.mxu0 %v512
        %586 = vmatprep.subr.bf16.mxu0 0
        %587 = vmatpush1.bf16.msra.mxu0 %v513
        %588 = vmatprep.subr.bf16.mxu0 0
        %589 = vmatpush1.bf16.msra.mxu0 %v514
        %590 = vmatprep.subr.bf16.mxu0 0
        %591 = vmatpush1.bf16.msra.mxu0 %v515
        %592 = vmatprep.subr.bf16.mxu0 0
        %593 = vmatpush1.bf16.msra.mxu0 %v516
        %594 = vmatprep.subr.bf16.mxu0 0
        %595 = vmatpush1.bf16.msra.mxu0 %v517
        %596 = vmatprep.subr.bf16.mxu0 0
        %597 = vmatpush1.bf16.msra.mxu0 %v518
        %598 = vmatprep.subr.bf16.mxu0 0
        %599 = vmatpush1.bf16.msra.mxu0 %v519
        %600 = vmatprep.mubr.bf16.mxu0 %v369
        %601 = vmatmul.mubr.bf16.gmra.mrb[0].mxu0 %v368
        %v602 = vpop.f32.mrb[0].mxu0
        %v603 = vadd.f32 0.0, %v602
        %v604 = vpop.f32.mrb[0].mxu0
        %v605 = vpop.f32.mrb[0].mxu0
        %v606 = vadd.f32 0.0, %v605
        %v607 = vpop.f32.mrb[0].mxu0
        %608 = vdwg.mxu0
        %609 = vmatprep.subr.bf16.mxu0 0
        %610 = vmatpush1.bf16.msra.mxu0 %v520
        %611 = vmatprep.subr.bf16.mxu0 0
        %612 = vmatpush1.bf16.msra.mxu0 %v521
        %613 = vmatprep.subr.bf16.mxu0 0
        %614 = vmatpush1.bf16.msra.mxu0 %v522
        %615 = vmatprep.subr.bf16.mxu0 0
        %616 = vmatpush1.bf16.msra.mxu0 %v523
        %617 = vmatprep.subr.bf16.mxu0 0
        %618 = vmatpush1.bf16.msra.mxu0 %v524
        %619 = vmatprep.subr.bf16.mxu0 0
        %620 = vmatpush1.bf16.msra.mxu0 %v525
        %621 = vmatprep.subr.bf16.mxu0 0
        %622 = vmatpush1.bf16.msra.mxu0 %v526
        %623 = vmatprep.subr.bf16.mxu0 0
        %624 = vmatpush1.bf16.msra.mxu0 %v527
        %625 = vmatprep.subr.bf16.mxu0 0
        %626 = vmatpush1.bf16.msra.mxu0 %v528
        %627 = vmatprep.subr.bf16.mxu0 0
        %628 = vmatpush1.bf16.msra.mxu0 %v529
        %629 = vmatprep.subr.bf16.mxu0 0
        %630 = vmatpush1.bf16.msra.mxu0 %v530
        %631 = vmatprep.subr.bf16.mxu0 0
        %632 = vmatpush1.bf16.msra.mxu0 %v531
        %633 = vmatprep.subr.bf16.mxu0 0
        %634 = vmatpush1.bf16.msra.mxu0 %v532
        %635 = vmatprep.subr.bf16.mxu0 0
        %636 = vmatpush1.bf16.msra.mxu0 %v533
        %637 = vmatprep.subr.bf16.mxu0 0
        %638 = vmatpush1.bf16.msra.mxu0 %v534
        %639 = vmatprep.subr.bf16.mxu0 0
        %640 = vmatpush1.bf16.msra.mxu0 %v535
        %641 = vmatprep.mubr.bf16.mxu0 %v371
        %642 = vmatmul.mubr.bf16.gmra.mrb[0].mxu0 %v370
        %v643 = vpop.f32.mrb[0].mxu0
        %v644 = vadd.f32 %v603, %v643
        %v645 = vpop.f32.mrb[0].mxu0
        %v646 = vpop.f32.mrb[0].mxu0
        %v647 = vadd.f32 %v606, %v646
        %v648 = vpop.f32.mrb[0].mxu0
        %649 = vdwg.mxu0
        %v650 = vadd.f32 %v286, %v644
        %v651 = vadd.f32 %v287, %v647
        %652 = vst [vmem:[#allocation2] sm:$0xff] %v650
        %653 = vst [vmem:[#allocation2 + $0x8] sm:$0xff] %v651
        %p654 = scmp.eq.s32.totalorder %s21, 15
        // Predicated region
        $region60: #{dis_forward.9} parent=50 // pred_check
          %p655 = pneg %p654
        $region61: #{dis_forward.9} parent=50 // pred_check_branch
          %657 = sbr.rel (%p655) target = $region63
        $region62: #{dis_forward.9} parent=50 // pred_region
          %v658 = vld [vmem:[#allocation2] sm:$0xff]
          %v659 = vld [vmem:[#allocation2 + $0x8] sm:$0xff]
          %v660 = vld [vmem:[%s269] sm:$0x1]
          %v662 = vlaneseq
          %v663 = vshrl.u32 %v662, 7
          %v664 = vsub.s32 0, %v663
          %v665 = vrot.slane %v660, %v664
          %v667 = vadd.f32 %v658, %v665
          %v668 = vadd.f32 %v659, %v665
          %669 = vst [vmem:[%s277] sm:$0xff] %v667
          %670 = vst [vmem:[%s277 + $0x8] sm:$0xff] %v668
        $region63: #{dis_forward.9} parent=50 // pred_fallthru
          _
        %s671 = smul.u32 2, %s19
        %p672 = scmp.lt.s32.totalorder %s671, 1
        %s673 = scalar_select %p672, %s671, 1
        %p674 = scmp.lt.s32.totalorder %s20, 0
        %s675 = scalar_select %p674, %s20, 0
        %s676 = sadd.s32 %s675, %s673
        %s677 = smul.addr %s676, 8
        %s678 = scalar_lea.vmem %s3, %s677
        // Predicated region
        $region64: #{dis_forward.9} parent=50 // pred_check
          %p679 = pneg %p135
        $region65: #{dis_forward.9} parent=50 // pred_check_branch
          %681 = sbr.rel (%p679) target = $region67
        $region66: #{dis_forward.9} parent=50 // pred_region
          %s682 = smul.u32 2, %s19
        $region67: #{dis_forward.9} parent=50 // pred_fallthru
          _
        // Predicated region
        $region68: #{dis_forward.9} parent=50 // pred_check
          %p683 = pneg %p135
        $region69: #{dis_forward.9} parent=50 // pred_check_branch
          %685 = sbr.rel (%p683) target = $region71
        $region70: #{dis_forward.9} parent=50 // pred_region
          %s686 = smul.u32 2, %s19
          %p687 = scmp.lt.s32.totalorder %s686, 1
          %s688 = scalar_select %p687, %s686, 1
          %p689 = scmp.lt.s32.totalorder %s20, 0
          %s690 = scalar_select %p689, %s20, 0
          %s691 = sadd.s32 %s690, %s688
          %s692 = smul.addr %s691, 8
          %s693 = scalar_lea.vmem %s3, %s692
        $region71: #{dis_forward.9} parent=50 // pred_fallthru
          _
      $region51: #{dis_forward.9} parent=5 // pred_fallthru
        _
      %p694 = scmp.le.s32.totalorder 2, %s9
      // Predicated region
      $region72: #{dis_forward.9} parent=5 // pred_check
        %p695 = pneg %p694
      $region73: #{dis_forward.9} parent=5 // pred_check_branch
        %697 = sbr.rel (%p695) target = $region75
      $region74: #{dis_forward.9} parent=5 // pred_region
        %s698 = ssub.s32 %s9, 2
      $region75: #{dis_forward.9} parent=5 // pred_fallthru
        _
    $region6: #{dis_forward.9} parent=1 // loop_footer
      %s13 = sadd.s32 1, %s9
    $region7: #{dis_forward.9} parent=1 // loop_footer_branch
      %8 = sbr.rel target = $region3
    $region8: #{dis_forward.9} parent=1 // loop_exit
      _

</llo_original>
